<compile_context>
chip_gen: v7x
topology: tpu7x:2x2x1
jax: 0.10.0
libtpu: 0.0.40
codegen_flags: <defaults>
</compile_context>

<pallas_src>
import functools
import math

import jax
import jax.numpy as jnp
from jax.experimental import pallas as pl
from jax.experimental.pallas import tpu as pltpu


def _scalar_net_kernel(Bb, S, H, x_ref, y_ref, w_ref, r_ref, out_ref):
    """One batch-row block: Bb batch rows -> Bb*S flattened sample rows."""
    f32 = jnp.float32
    N = Bb * S

    W = w_ref[...]            # (5H, H)  f32 or bf16 (matmul operand dtype)
    R = r_ref[...]            # (10, H)  f32 (K=1 weights, biases, b4)
    cdt = W.dtype

    # static row slices of the packed slabs (layout plumbing, no runtime cost)
    w2x    = W[0 * H:1 * H]
    w1xy_x = W[1 * H:2 * H]
    w1xy_y = W[2 * H:3 * H]
    w2xy   = W[3 * H:4 * H]
    w3xy   = W[4 * H:5 * H]

    w1x, w1y, w4r = R[0:1], R[1:2], R[2:3]
    b1x, b2x, b1y = R[3:4], R[4:5], R[5:6]
    b1xy, b2xy, b3xy = R[6:7], R[7:8], R[8:9]
    b4 = R[9:10, 0:1]                                   # (1, 1) broadcast add, no scalar extract

    # ---- FeatureNet: x_feat = relu(fc2_x(relu(fc1_x(x)))) ----
    x = x_ref[...]                                      # (Bb, 1)
    h = jnp.maximum(x * w1x + b1x, 0.0)                 # fc1_x has K=1 -> broadcast mul
    x_feat = jnp.maximum(
        jnp.dot(h.astype(cdt), w2x, preferred_element_type=f32) + b2x, 0.0)     # (Bb, H)

    # x-half of fc1_xy hoisted out of the sample axis (computed once per batch row)
    x_contrib = jnp.dot(x_feat.astype(cdt), w1xy_x,
                        preferred_element_type=f32) + b1xy                       # (Bb, H)

    # ---- PredictorNet on flattened (Bb*S, H) rows ----
    yv = y_ref[...]                                     # (N, 1) pre-flattened in wrapper
    y_feat = jnp.tanh(yv * w1y + b1y)                   # fc1_y has K=1 -> broadcast mul, (N, H)

    y_term = jnp.dot(y_feat.astype(cdt), w1xy_y, preferred_element_type=f32)     # (N, H)
    xy = jnp.tanh(x_contrib[:, None, :] + y_term.reshape(Bb, S, H)).reshape(N, H)

    # residual tanh blocks, single 2-D matmul each
    xy = jnp.tanh(jnp.dot(xy.astype(cdt), w2xy, preferred_element_type=f32) + b2xy) + xy
    xy = jnp.tanh(jnp.dot(xy.astype(cdt), w3xy, preferred_element_type=f32) + b3xy) + xy

    # fc4_xy has out_dim == 1: lane reduction against the w4 row + bias
    score = jnp.sum(xy * w4r, axis=-1)                  # (N,)
    out_ref[...] = (score[None, :] + b4).astype(out_ref.dtype)   # (1, N) lane-dense store


def scalar_net_forward(x, y, packed, *, block_b=None, use_bf16=False):
    """x: (B, 1) f32, y: (B, S) f32, packed: dict from pack_params -> (B, S) f32."""
    B = x.shape[0]
    S = y.shape[1]
    H = packed['r_slab'].shape[1]

    if block_b is None or block_b >= B:
        block_b = B                       # single block (grid of 1)
    else:
        assert B % block_b == 0, "block_b must divide B"
        assert block_b % 8 == 0, "row block must be sublane (8) aligned"
        assert (block_b * S) % 128 == 0, "per-block output must be lane (128) aligned"
    num_blocks = B // block_b

    w_slab = packed['w_slab']
    if use_bf16:
        # bf16 matmul operands, f32 accumulation (MXU fast path on v6e/v7x).
        w_slab = w_slab.astype(jnp.bfloat16)
    r_slab = packed['r_slab']
    y_flat = y.reshape(B * S, 1)          # free row-major reshape in the wrapper

    kernel = functools.partial(_scalar_net_kernel, block_b, S, H)
    out = pl.pallas_call(
        kernel,
        out_shape=jax.ShapeDtypeStruct((1, B * S), jnp.float32),
        grid=(num_blocks,),
        in_specs=[
            pl.BlockSpec((block_b, 1), lambda i: (i, 0)),        # x rows for this block
            pl.BlockSpec((block_b * S, 1), lambda i: (i, 0)),    # flattened y rows
            pl.BlockSpec((5 * H, H), lambda i: (0, 0)),          # packed (H,H) weights
            pl.BlockSpec((10, H), lambda i: (0, 0)),             # packed rows/biases/b4
        ],
        out_specs=pl.BlockSpec((1, block_b * S), lambda i: (0, i)),
        compiler_params=pltpu.CompilerParams(
            dimension_semantics=("parallel",)),                   # v7x: shard rows across TCs
    )(x, y_flat, w_slab, r_slab)
    return out.reshape(B, S)


# ---------------------------------------------------------------------------
# Deterministic parameter init (mimics PyTorch nn.Linear default: U(-k, k),
# k = 1/sqrt(fan_in)).  Weights are stored transposed: (in_dim, out_dim).
# ---------------------------------------------------------------------------
def init_params(key, hidden_dim):
    H = hidden_dim

    def linear(key, in_dim, out_dim):
        k = 1.0 / math.sqrt(in_dim)
        kw, kb = jax.random.split(key)
        w = jax.random.uniform(kw, (in_dim, out_dim), jnp.float32, -k, k)
        b = jax.random.uniform(kb, (1, out_dim), jnp.float32, -k, k)
        return w, b

    keys = jax.random.split(key, 7)
    p = {}
    p['w1x'], p['b1x'] = linear(keys[0], 1, H)          # fc1_x
    p['w2x'], p['b2x'] = linear(keys[1], H, H)          # fc2_x
    p['w1y'], p['b1y'] = linear(keys[2], 1, H)          # fc1_y
    w1xy, p['b1xy'] = linear(keys[3], 2 * H, H)         # fc1_xy (cat([x_feat, y_feat]))
    p['w1xy_x'] = w1xy[:H]                              # columns acting on x_feature
    p['w1xy_y'] = w1xy[H:]                              # columns acting on y_feature
    p['w2xy'], p['b2xy'] = linear(keys[4], H, H)        # fc2_xy
    p['w3xy'], p['b3xy'] = linear(keys[5], H, H)        # fc3_xy
    w4, p['b4'] = linear(keys[6], H, 1)                 # fc4_xy
    p['w4'] = w4.T                                      # (1, H) row
    return p


def pack_params(p):
    """Pack the 17 tiny tensors into two slabs (fewer DMAs / VMEM buffers)."""
    H = p['w2x'].shape[0]
    w_slab = jnp.concatenate(
        [p['w2x'], p['w1xy_x'], p['w1xy_y'], p['w2xy'], p['w3xy']], axis=0)      # (5H, H)
    b4_row = jnp.full((1, H), p['b4'][0, 0], jnp.float32)
    r_slab = jnp.concatenate(
        [p['w1x'], p['w1y'], p['w4'],
         p['b1x'], p['b2x'], p['b1y'], p['b1xy'], p['b2xy'], p['b3xy'],
         b4_row], axis=0)                                                         # (10, H)
    return {'w_slab': w_slab, 'r_slab': r_slab}


# ---------------------------------------------------------------------------
# Pure-JAX reference (mirrors the PyTorch forward exactly, including the cat)
# ---------------------------------------------------------------------------
def scalar_net_reference(x, y, p):
    B, S = y.shape
    H = p['w1x'].shape[1]
    # FeatureNet
    h = jax.nn.relu(x @ p['w1x'] + p['b1x'])
    x_feat = jax.nn.relu(h @ p['w2x'] + p['b2x'])                 # (B, H)
    # PredictorNet
    xf = jnp.broadcast_to(x_feat[:, None, :], (B, S, H)).reshape(B * S, H)
    yc = y.reshape(B * S, 1)
    y_feat = jnp.tanh(yc @ p['w1y'] + p['b1y'])                   # (B*S, H)
    w1xy = jnp.concatenate([p['w1xy_x'], p['w1xy_y']], axis=0)    # (2H, H)
    xy = jnp.tanh(jnp.concatenate([xf, y_feat], axis=1) @ w1xy + p['b1xy'])
    xy = jnp.tanh(xy @ p['w2xy'] + p['b2xy']) + xy
    xy = jnp.tanh(xy @ p['w3xy'] + p['b3xy']) + xy
    score = xy @ p['w4'].T + p['b4']                              # (B*S, 1)
    return score.reshape(B, S)


if __name__ == "__main__":
    B, S, H = 16, 16, 32   # batch, num_samples (columns of y), hidden_dim

    key = jax.random.PRNGKey(0)
    kx, ky, kp = jax.random.split(key, 3)
    x = jax.random.normal(kx, (B, 1), jnp.float32)
    y = jax.random.normal(ky, (B, S), jnp.float32)
    params = init_params(kp, H)
    packed = pack_params(params)

    ref = scalar_net_reference(x, y, params)

    # 1) f32, single block
    out = jax.block_until_ready(scalar_net_forward(x, y, packed))
    assert out.shape == (B, S)
    assert jnp.allclose(out, ref, atol=1e-5, rtol=1e-5), \
        f"f32 mismatch: max abs err {jnp.max(jnp.abs(out - ref))}"

    # 2) f32, batch-row grid (parallel axis -> both TensorCores on v7x)
    out_g = jax.block_until_ready(scalar_net_forward(x, y, packed, block_b=8))
    assert jnp.allclose(out_g, ref, atol=1e-5, rtol=1e-5), \
        f"grid mismatch: max abs err {jnp.max(jnp.abs(out_g - ref))}"

    # 3) bf16 matmul operands with f32 accumulation (v6e/v7x MXU fast path)
    out_bf = jax.block_until_ready(
        scalar_net_forward(x, y, packed, block_b=8, use_bf16=True))
    assert jnp.allclose(out_bf, ref, atol=1e-1, rtol=1e-1), \
        f"bf16 mismatch: max abs err {jnp.max(jnp.abs(out_bf - ref))}"

    print("KERNEL_OK")
</pallas_src>

<mosaic_0001>
module attributes {stable_mosaic.version = 11 : i64} {
  func.func @_scalar_net_kernel(%arg0: i32, %arg1: memref<16x1xf32, #tpu.memory_space<vmem>>, %arg2: memref<256x1xf32, #tpu.memory_space<vmem>>, %arg3: memref<160x32xf32, #tpu.memory_space<vmem>>, %arg4: memref<10x32xf32, #tpu.memory_space<vmem>>, %arg5: memref<1x256xf32, #tpu.memory_space<vmem>>) attributes {dimension_semantics = [#tpu.dimension_semantics<parallel>], iteration_bounds = array<i64: 1>, scalar_prefetch = 0 : i64, scratch_operands = 0 : i64, tpu.core_type = #tpu.core_type<tc>, window_params = [{transform_indices = @transform_0, window_bounds = array<i64: 16, 1>}, {transform_indices = @transform_1, window_bounds = array<i64: 256, 1>}, {pipeline_mode = #tpu.pipeline_mode<synchronous>, transform_indices = @transform_2, window_bounds = array<i64: 160, 32>}, {pipeline_mode = #tpu.pipeline_mode<synchronous>, transform_indices = @transform_3, window_bounds = array<i64: 10, 32>}, {transform_indices = @transform_4, window_bounds = array<i64: 1, 256>}]} {
    %c0 = arith.constant 0 : index
    %c0_0 = arith.constant 0 : index
    %0 = vector.load %arg3[%c0, %c0_0] : memref<160x32xf32, #tpu.memory_space<vmem>>, vector<160x32xf32>
    %c0_1 = arith.constant 0 : index
    %c0_2 = arith.constant 0 : index
    %1 = vector.load %arg4[%c0_1, %c0_2] : memref<10x32xf32, #tpu.memory_space<vmem>>, vector<10x32xf32>
    %2 = vector.extract_strided_slice %0 {offsets = [0, 0], sizes = [32, 32], strides = [1, 1]} : vector<160x32xf32> to vector<32x32xf32>
    %3 = vector.extract_strided_slice %0 {offsets = [32, 0], sizes = [32, 32], strides = [1, 1]} : vector<160x32xf32> to vector<32x32xf32>
    %4 = vector.extract_strided_slice %0 {offsets = [64, 0], sizes = [32, 32], strides = [1, 1]} : vector<160x32xf32> to vector<32x32xf32>
    %5 = vector.extract_strided_slice %0 {offsets = [96, 0], sizes = [32, 32], strides = [1, 1]} : vector<160x32xf32> to vector<32x32xf32>
    %6 = vector.extract_strided_slice %0 {offsets = [128, 0], sizes = [32, 32], strides = [1, 1]} : vector<160x32xf32> to vector<32x32xf32>
    %7 = vector.extract_strided_slice %1 {offsets = [0, 0], sizes = [1, 32], strides = [1, 1]} : vector<10x32xf32> to vector<1x32xf32>
    %8 = vector.extract_strided_slice %1 {offsets = [1, 0], sizes = [1, 32], strides = [1, 1]} : vector<10x32xf32> to vector<1x32xf32>
    %9 = vector.extract_strided_slice %1 {offsets = [2, 0], sizes = [1, 32], strides = [1, 1]} : vector<10x32xf32> to vector<1x32xf32>
    %10 = vector.extract_strided_slice %1 {offsets = [3, 0], sizes = [1, 32], strides = [1, 1]} : vector<10x32xf32> to vector<1x32xf32>
    %11 = vector.extract_strided_slice %1 {offsets = [4, 0], sizes = [1, 32], strides = [1, 1]} : vector<10x32xf32> to vector<1x32xf32>
    %12 = vector.extract_strided_slice %1 {offsets = [5, 0], sizes = [1, 32], strides = [1, 1]} : vector<10x32xf32> to vector<1x32xf32>
    %13 = vector.extract_strided_slice %1 {offsets = [6, 0], sizes = [1, 32], strides = [1, 1]} : vector<10x32xf32> to vector<1x32xf32>
    %14 = vector.extract_strided_slice %1 {offsets = [7, 0], sizes = [1, 32], strides = [1, 1]} : vector<10x32xf32> to vector<1x32xf32>
    %15 = vector.extract_strided_slice %1 {offsets = [8, 0], sizes = [1, 32], strides = [1, 1]} : vector<10x32xf32> to vector<1x32xf32>
    %16 = vector.extract_strided_slice %1 {offsets = [9, 0], sizes = [1, 1], strides = [1, 1]} : vector<10x32xf32> to vector<1x1xf32>
    %c0_3 = arith.constant 0 : index
    %c0_4 = arith.constant 0 : index
    %17 = vector.load %arg1[%c0_3, %c0_4] : memref<16x1xf32, #tpu.memory_space<vmem>>, vector<16x1xf32>
    %18 = vector.broadcast %17 : vector<16x1xf32> to vector<16x32xf32>
    %19 = vector.broadcast %7 : vector<1x32xf32> to vector<16x32xf32>
    %20 = arith.mulf %18, %19 : vector<16x32xf32>
    %21 = vector.broadcast %10 : vector<1x32xf32> to vector<16x32xf32>
    %22 = arith.addf %20, %21 : vector<16x32xf32>
    %cst = arith.constant 0.000000e+00 : f32
    %23 = vector.broadcast %cst : f32 to vector<16x32xf32>
    %24 = arith.maximumf %22, %23 : vector<16x32xf32>
    %cst_5 = arith.constant dense<0.000000e+00> : vector<16x32xf32>
    %25 = tpu.matmul %24, %2, %cst_5 {dimension_numbers = #tpu.dot_dimension_numbers<[1], [0], [0], [1], [0, 0, 1, 1], [], []>} : vector<16x32xf32>, vector<32x32xf32>, vector<16x32xf32> -> vector<16x32xf32>
    %26 = vector.broadcast %11 : vector<1x32xf32> to vector<16x32xf32>
    %27 = arith.addf %25, %26 : vector<16x32xf32>
    %cst_6 = arith.constant 0.000000e+00 : f32
    %28 = vector.broadcast %cst_6 : f32 to vector<16x32xf32>
    %29 = arith.maximumf %27, %28 : vector<16x32xf32>
    %cst_7 = arith.constant dense<0.000000e+00> : vector<16x32xf32>
    %30 = tpu.matmul %29, %3, %cst_7 {dimension_numbers = #tpu.dot_dimension_numbers<[1], [0], [0], [1], [0, 0, 1, 1], [], []>} : vector<16x32xf32>, vector<32x32xf32>, vector<16x32xf32> -> vector<16x32xf32>
    %31 = vector.broadcast %13 : vector<1x32xf32> to vector<16x32xf32>
    %32 = arith.addf %30, %31 : vector<16x32xf32>
    %c0_8 = arith.constant 0 : index
    %c0_9 = arith.constant 0 : index
    %33 = vector.load %arg2[%c0_8, %c0_9] : memref<256x1xf32, #tpu.memory_space<vmem>>, vector<256x1xf32>
    %34 = vector.broadcast %33 : vector<256x1xf32> to vector<256x32xf32>
    %35 = vector.broadcast %8 : vector<1x32xf32> to vector<256x32xf32>
    %36 = arith.mulf %34, %35 : vector<256x32xf32>
    %37 = vector.broadcast %12 : vector<1x32xf32> to vector<256x32xf32>
    %38 = arith.addf %36, %37 : vector<256x32xf32>
    %39 = math.tanh %38 : vector<256x32xf32>
    %cst_10 = arith.constant dense<0.000000e+00> : vector<256x32xf32>
    %40 = tpu.matmul %39, %4, %cst_10 {dimension_numbers = #tpu.dot_dimension_numbers<[1], [0], [0], [1], [0, 0, 1, 1], [], []>} : vector<256x32xf32>, vector<32x32xf32>, vector<256x32xf32> -> vector<256x32xf32>
    %41 = vector.shape_cast %32 : vector<16x32xf32> to vector<16x1x32xf32>
    %42 = vector.shape_cast %40 : vector<256x32xf32> to vector<16x16x32xf32>
    %43 = vector.broadcast %41 : vector<16x1x32xf32> to vector<16x16x32xf32>
    %44 = arith.addf %43, %42 : vector<16x16x32xf32>
    %45 = math.tanh %44 : vector<16x16x32xf32>
    %46 = vector.shape_cast %45 : vector<16x16x32xf32> to vector<256x32xf32>
    %cst_11 = arith.constant dense<0.000000e+00> : vector<256x32xf32>
    %47 = tpu.matmul %46, %5, %cst_11 {dimension_numbers = #tpu.dot_dimension_numbers<[1], [0], [0], [1], [0, 0, 1, 1], [], []>} : vector<256x32xf32>, vector<32x32xf32>, vector<256x32xf32> -> vector<256x32xf32>
    %48 = vector.broadcast %14 : vector<1x32xf32> to vector<256x32xf32>
    %49 = arith.addf %47, %48 : vector<256x32xf32>
    %50 = math.tanh %49 : vector<256x32xf32>
    %51 = arith.addf %50, %46 : vector<256x32xf32>
    %cst_12 = arith.constant dense<0.000000e+00> : vector<256x32xf32>
    %52 = tpu.matmul %51, %6, %cst_12 {dimension_numbers = #tpu.dot_dimension_numbers<[1], [0], [0], [1], [0, 0, 1, 1], [], []>} : vector<256x32xf32>, vector<32x32xf32>, vector<256x32xf32> -> vector<256x32xf32>
    %53 = vector.broadcast %15 : vector<1x32xf32> to vector<256x32xf32>
    %54 = arith.addf %52, %53 : vector<256x32xf32>
    %55 = math.tanh %54 : vector<256x32xf32>
    %56 = arith.addf %55, %51 : vector<256x32xf32>
    %57 = vector.broadcast %9 : vector<1x32xf32> to vector<256x32xf32>
    %58 = arith.mulf %56, %57 : vector<256x32xf32>
    %cst_13 = arith.constant dense<0.000000e+00> : vector<256xf32>
    %59 = vector.multi_reduction <add>, %58, %cst_13 [1] : vector<256x32xf32> to vector<256xf32>
    %60 = vector.shape_cast %59 : vector<256xf32> to vector<1x256xf32>
    %61 = vector.broadcast %16 : vector<1x1xf32> to vector<1x256xf32>
    %62 = arith.addf %60, %61 : vector<1x256xf32>
    %c0_14 = arith.constant 0 : index
    %c0_15 = arith.constant 0 : index
    %63 = vector.load %arg5[%c0_14, %c0_15] : memref<1x256xf32, #tpu.memory_space<vmem>>, vector<1x256xf32>
    tpu.vector_store %arg5[%c0_14, %c0_15], %62 {strides = array<i32>} : memref<1x256xf32, #tpu.memory_space<vmem>>, vector<1x256xf32>,
    return
  }
  func.func @transform_0(%arg0: i32) -> (i32, i32) {
    %c0_i32 = arith.constant 0 : i32
    %c0_i32_0 = arith.constant 0 : i32
    return %arg0, %c0_i32 : i32, i32
  }
  func.func @transform_1(%arg0: i32) -> (i32, i32) {
    %c0_i32 = arith.constant 0 : i32
    %c0_i32_0 = arith.constant 0 : i32
    return %arg0, %c0_i32 : i32, i32
  }
  func.func @transform_2(%arg0: i32) -> (i32, i32) {
    %c0_i32 = arith.constant 0 : i32
    %c0_i32_0 = arith.constant 0 : i32
    %c0_i32_1 = arith.constant 0 : i32
    return %c0_i32, %c0_i32_0 : i32, i32
  }
  func.func @transform_3(%arg0: i32) -> (i32, i32) {
    %c0_i32 = arith.constant 0 : i32
    %c0_i32_0 = arith.constant 0 : i32
    %c0_i32_1 = arith.constant 0 : i32
    return %c0_i32, %c0_i32_0 : i32, i32
  }
  func.func @transform_4(%arg0: i32) -> (i32, i32) {
    %c0_i32 = arith.constant 0 : i32
    %c0_i32_0 = arith.constant 0 : i32
    return %c0_i32, %arg0 : i32, i32
  }
}

</mosaic_0001>

<llo_original>
// kernel: tpu_custom_call.1
$region0: #{tpu_custom_call.1}
  #allocation0 [shape = 'u32[]', space=smem, size = 0x4, offset = 0x4, fixed_abs, tag = 'smem constant byte address 0x4 - core index']
  #allocation1 [shape = 'u32[144,128]{1,0:T(1,128)}', space=vmem, size = 0x12000, scoped, tag = 'internal scratch']
  %s0 = inlined_call_operand.vmem [shape: f32[16,1], index: 0, kind: input, shape index: {}]
  %s1 = inlined_call_operand.vmem [shape: f32[256,1], index: 1, kind: input, shape index: {}]
  %s2 = inlined_call_operand.vmem [shape: f32[160,32], index: 2, kind: input, shape index: {}]
  %s3 = inlined_call_operand.vmem [shape: f32[10,32], index: 3, kind: input, shape index: {}]
  %s4 = inlined_call_operand.hbm [shape: f32[1,256], index: 4, kind: output, shape index: {}]
  %s5 = sld [smem:[#allocation0]]
  $region26: #{tpu_custom_call.1} parent=0
    _
  %s7 = ssub.s32 1, %s5
  %s8 = scalar_select 0, %s7, %s5
  $region1: #{tpu_custom_call.1} parent=0
    #allocation2 [shape = 'u8[1024]{0}', space=vmem, size = 0x400, scoped, tag = 'output window, operand 0, single buffered']
    #allocation3 [shape = 's32[1]{0}', space=sflag, size = 0x4, scoped, tag = 'scoped memory for tpu_custom_call.1']
    %9 = vsyncpa [#allocation3], 0
    // Predicated region
    $region2: #{tpu_custom_call.1} parent=1 // pred_check
      _
    $region3: #{tpu_custom_call.1} parent=1 // pred_check_branch
      %11 = sbr.rel (0) target = $region5
    $region4: #{tpu_custom_call.1} parent=1 // pred_region
      _
    $region5: #{tpu_custom_call.1} parent=1 // pred_fallthru
      _
    // Predicated region
    $region6: #{tpu_custom_call.1} parent=1 // pred_check
      _
    $region7: #{tpu_custom_call.1} parent=1 // pred_check_branch
      %13 = sbr.rel (0) target = $region9
    $region8: #{tpu_custom_call.1} parent=1 // pred_region
      _
    $region9: #{tpu_custom_call.1} parent=1 // pred_fallthru
      _
    // Predicated region
    $region10: #{tpu_custom_call.1} parent=1 // pred_check
      _
    $region11: #{tpu_custom_call.1} parent=1 // pred_check_branch
      %15 = sbr.rel (0) target = $region13
    $region12: #{tpu_custom_call.1} parent=1 // pred_region
      _
    $region13: #{tpu_custom_call.1} parent=1 // pred_fallthru
      _
    // Predicated region
    $region14: #{tpu_custom_call.1} parent=1 // pred_check
      _
    $region15: #{tpu_custom_call.1} parent=1 // pred_check_branch
      %17 = sbr.rel (0) target = $region17
    $region16: #{tpu_custom_call.1} parent=1 // pred_region
      _
    $region17: #{tpu_custom_call.1} parent=1 // pred_fallthru
      _
    %v18 = vld [vmem:[%s2] sm:$0xff]
    %v19 = vld [vmem:[%s2 + $0x8] sm:$0xff]
    %v20 = vld [vmem:[%s2 + $0x10] sm:$0xff]
    %v21 = vld [vmem:[%s2 + $0x18] sm:$0xff]
    %v22 = vld [vmem:[%s2 + $0x20] sm:$0xff]
    %v23 = vld [vmem:[%s2 + $0x28] sm:$0xff]
    %v24 = vld [vmem:[%s2 + $0x30] sm:$0xff]
    %v25 = vld [vmem:[%s2 + $0x38] sm:$0xff]
    %v26 = vld [vmem:[%s2 + $0x40] sm:$0xff]
    %v27 = vld [vmem:[%s2 + $0x48] sm:$0xff]
    %v28 = vld [vmem:[%s2 + $0x50] sm:$0xff]
    %v29 = vld [vmem:[%s2 + $0x58] sm:$0xff]
    %v30 = vld [vmem:[%s2 + $0x60] sm:$0xff]
    %v31 = vld [vmem:[%s2 + $0x68] sm:$0xff]
    %v32 = vld [vmem:[%s2 + $0x70] sm:$0xff]
    %v33 = vld [vmem:[%s2 + $0x78] sm:$0xff]
    %v34 = vld [vmem:[%s2 + $0x80] sm:$0xff]
    %v35 = vld [vmem:[%s2 + $0x88] sm:$0xff]
    %v36 = vld [vmem:[%s2 + $0x90] sm:$0xff]
    %v37 = vld [vmem:[%s2 + $0x98] sm:$0xff]
    %v38 = vld [vmem:[%s3] sm:$0xff]
    %v39 = vld [vmem:[%s3 + $0x8] sm:$0x3]
    %v40 = vld [vmem:[%s0] sm:$0xff]
    %v41 = vld [vmem:[%s0 + $0x8] sm:$0xff]
    %43 = vset.pattern.permute.xlu0 0
    %44 = vperm.xlu0 %43, %v40
    %v45 = vpop.permute.xlu0 %44
    %48 = vset.pattern.permute.xlu0 0
    %49 = vperm.xlu0 %48, %v41
    %v50 = vpop.permute.xlu0 %49
    %v52 = vlaneseq
    %v53 = vshrl.u32 %v52, 7
    %v54 = vsub.s32 0, %v53
    %v55 = vrot.slane %v38, %v54
    %v56 = vmul.f32 %v45, %v55
    %v57 = vmul.f32 %v50, %v55
    %v58 = vlaneseq
    %v59 = vshrl.u32 %v58, 7
    %v60 = vsub.s32 3, %v59
    %v61 = vrot.slane %v38, %v60
    %v62 = vadd.f32 %v56, %v61
    %v63 = vadd.f32 %v57, %v61
    %v64 = vmax.f32 %v62, 0.0
    %v65 = vmax.f32 %v63, 0.0
    %v66 = vlaneseq
    %v67 = vshrl.u32 %v66, 7
    %v68 = vsub.s32 4, %v67
    %v69 = vrot.slane %v38, %v68
    %vm70 = vcmask 261120
    %v72 = vsel %vm70, %v64, 0
    %v75 = vsel %vm70, %v65, 0
    %77 = vmatprep.subr.mxu0 0.0
    %78 = vmatpush1.msra.mxu0 %v18
    %79 = vmatprep.subr.mxu0 0.0
    %80 = vmatpush1.msra.mxu0 %v19
    %81 = vmatprep.subr.mxu0 0.0
    %82 = vmatpush1.msra.mxu0 %v20
    %83 = vmatprep.subr.mxu0 0.0
    %84 = vmatpush1.msra.mxu0 %v21
    %85 = vmatprep.subr.mxu0 0.0
    %86 = vmatpush1.msra.mxu0 0.0
    %87 = vmatprep.subr.mxu0 0.0
    %88 = vmatpush1.msra.mxu0 0.0
    %89 = vmatprep.subr.mxu0 0.0
    %90 = vmatpush1.msra.mxu0 0.0
    %91 = vmatprep.subr.mxu0 0.0
    %92 = vmatpush1.msra.mxu0 0.0
    %93 = vmatprep.subr.mxu0 0.0
    %94 = vmatpush1.msra.mxu0 0.0
    %95 = vmatprep.subr.mxu0 0.0
    %96 = vmatpush1.msra.mxu0 0.0
    %97 = vmatprep.subr.mxu0 0.0
    %98 = vmatpush1.msra.mxu0 0.0
    %99 = vmatprep.subr.mxu0 0.0
    %100 = vmatpush1.msra.mxu0 0.0
    %101 = vmatprep.subr.mxu0 0.0
    %102 = vmatpush1.msra.mxu0 0.0
    %103 = vmatprep.subr.mxu0 0.0
    %104 = vmatpush1.msra.mxu0 0.0
    %105 = vmatprep.subr.mxu0 0.0
    %106 = vmatpush1.msra.mxu0 0.0
    %107 = vmatprep.subr.mxu0 0.0
    %108 = vmatpush1.msra.mxu0 0.0
    %109 = vmatprep.subr.mxu0 0.0
    %110 = vmatpush1.msra.mxu0 0.0
    %111 = vmatprep.subr.mxu0 0.0
    %112 = vmatpush1.msra.mxu0 0.0
    %113 = vmatprep.subr.mxu0 0.0
    %114 = vmatpush1.msra.mxu0 0.0
    %115 = vmatprep.subr.mxu0 0.0
    %116 = vmatpush1.msra.mxu0 0.0
    %117 = vmatprep.subr.mxu0 0.0
    %118 = vmatpush1.msra.mxu0 0.0
    %119 = vmatprep.subr.mxu0 0.0
    %120 = vmatpush1.msra.mxu0 0.0
    %121 = vmatprep.subr.mxu0 0.0
    %122 = vmatpush1.msra.mxu0 0.0
    %123 = vmatprep.subr.mxu0 0.0
    %124 = vmatpush1.msra.mxu0 0.0
    %125 = vmatprep.subr.mxu0 0.0
    %126 = vmatpush1.msra.mxu0 0.0
    %127 = vmatprep.subr.mxu0 0.0
    %128 = vmatpush1.msra.mxu0 0.0
    %129 = vmatprep.subr.mxu0 0.0
    %130 = vmatpush1.msra.mxu0 0.0
    %131 = vmatprep.subr.mxu0 0.0
    %132 = vmatpush1.msra.mxu0 0.0
    %133 = vmatprep.subr.mxu0 0.0
    %134 = vmatpush1.msra.mxu0 0.0
    %135 = vmatprep.subr.mxu0 0.0
    %136 = vmatpush1.msra.mxu0 0.0
    %137 = vmatprep.subr.mxu0 0.0
    %138 = vmatpush1.msra.mxu0 0.0
    %139 = vmatprep.subr.mxu0 0.0
    %140 = vmatpush1.msra.mxu0 0.0
    %141 = vmatprep.mubr.f32.mxu0 0.0
    %142 = vmatmul.mubr.f32.gmra.mrb[0].mxu0 %v72
    %v143 = vpop.f32.mrb[0].mxu0
    %v144 = vadd.f32 %v69, %v143
    %v145 = vpop.f32.mrb[0].mxu0
    %146 = vmatprep.mubr.f32.mxu0 0.0
    %147 = vmatmul.mubr.f32.gmra.mrb[0].mxu0 %v75
    %v148 = vpop.f32.mrb[0].mxu0
    %v149 = vadd.f32 %v69, %v148
    %v150 = vpop.f32.mrb[0].mxu0
    %151 = vdwg.mxu0
    %v152 = vmax.f32 %v144, 0.0
    %v153 = vmax.f32 %v149, 0.0
    %v154 = vlaneseq
    %v155 = vshrl.u32 %v154, 7
    %v156 = vsub.s32 6, %v155
    %v157 = vrot.slane %v38, %v156
    %v159 = vsel %vm70, %v152, 0
    %v162 = vsel %vm70, %v153, 0
    %164 = vmatprep.subr.mxu0 0.0
    %165 = vmatpush1.msra.mxu0 %v22
    %166 = vmatprep.subr.mxu0 0.0
    %167 = vmatpush1.msra.mxu0 %v23
    %168 = vmatprep.subr.mxu0 0.0
    %169 = vmatpush1.msra.mxu0 %v24
    %170 = vmatprep.subr.mxu0 0.0
    %171 = vmatpush1.msra.mxu0 %v25
    %172 = vmatprep.subr.mxu0 0.0
    %173 = vmatpush1.msra.mxu0 0.0
    %174 = vmatprep.subr.mxu0 0.0
    %175 = vmatpush1.msra.mxu0 0.0
    %176 = vmatprep.subr.mxu0 0.0
    %177 = vmatpush1.msra.mxu0 0.0
    %178 = vmatprep.subr.mxu0 0.0
    %179 = vmatpush1.msra.mxu0 0.0
    %180 = vmatprep.subr.mxu0 0.0
    %181 = vmatpush1.msra.mxu0 0.0
    %182 = vmatprep.subr.mxu0 0.0
    %183 = vmatpush1.msra.mxu0 0.0
    %184 = vmatprep.subr.mxu0 0.0
    %185 = vmatpush1.msra.mxu0 0.0
    %186 = vmatprep.subr.mxu0 0.0
    %187 = vmatpush1.msra.mxu0 0.0
    %188 = vmatprep.subr.mxu0 0.0
    %189 = vmatpush1.msra.mxu0 0.0
    %190 = vmatprep.subr.mxu0 0.0
    %191 = vmatpush1.msra.mxu0 0.0
    %192 = vmatprep.subr.mxu0 0.0
    %193 = vmatpush1.msra.mxu0 0.0
    %194 = vmatprep.subr.mxu0 0.0
    %195 = vmatpush1.msra.mxu0 0.0
    %196 = vmatprep.subr.mxu0 0.0
    %197 = vmatpush1.msra.mxu0 0.0
    %198 = vmatprep.subr.mxu0 0.0
    %199 = vmatpush1.msra.mxu0 0.0
    %200 = vmatprep.subr.mxu0 0.0
    %201 = vmatpush1.msra.mxu0 0.0
    %202 = vmatprep.subr.mxu0 0.0
    %203 = vmatpush1.msra.mxu0 0.0
    %204 = vmatprep.subr.mxu0 0.0
    %205 = vmatpush1.msra.mxu0 0.0
    %206 = vmatprep.subr.mxu0 0.0
    %207 = vmatpush1.msra.mxu0 0.0
    %208 = vmatprep.subr.mxu0 0.0
    %209 = vmatpush1.msra.mxu0 0.0
    %210 = vmatprep.subr.mxu0 0.0
    %211 = vmatpush1.msra.mxu0 0.0
    %212 = vmatprep.subr.mxu0 0.0
    %213 = vmatpush1.msra.mxu0 0.0
    %214 = vmatprep.subr.mxu0 0.0
    %215 = vmatpush1.msra.mxu0 0.0
    %216 = vmatprep.subr.mxu0 0.0
    %217 = vmatpush1.msra.mxu0 0.0
    %218 = vmatprep.subr.mxu0 0.0
    %219 = vmatpush1.msra.mxu0 0.0
    %220 = vmatprep.subr.mxu0 0.0
    %221 = vmatpush1.msra.mxu0 0.0
    %222 = vmatprep.subr.mxu0 0.0
    %223 = vmatpush1.msra.mxu0 0.0
    %224 = vmatprep.subr.mxu0 0.0
    %225 = vmatpush1.msra.mxu0 0.0
    %226 = vmatprep.subr.mxu0 0.0
    %227 = vmatpush1.msra.mxu0 0.0
    %228 = vmatprep.mubr.f32.mxu0 0.0
    %229 = vmatmul.mubr.f32.gmra.mrb[0].mxu0 %v159
    %v230 = vpop.f32.mrb[0].mxu0
    %v231 = vadd.f32 %v157, %v230
    %v232 = vpop.f32.mrb[0].mxu0
    %233 = vmatprep.mubr.f32.mxu0 0.0
    %234 = vmatmul.mubr.f32.gmra.mrb[0].mxu0 %v162
    %v235 = vpop.f32.mrb[0].mxu0
    %v236 = vadd.f32 %v157, %v235
    %v237 = vpop.f32.mrb[0].mxu0
    %238 = vdwg.mxu0
    %v239 = vld [vmem:[%s1] sm:$0xff]
    %v240 = vld [vmem:[%s1 + $0x8] sm:$0xff]
    %v241 = vld [vmem:[%s1 + $0x10] sm:$0xff]
    %v242 = vld [vmem:[%s1 + $0x18] sm:$0xff]
    %v243 = vld [vmem:[%s1 + $0x20] sm:$0xff]
    %v244 = vld [vmem:[%s1 + $0x28] sm:$0xff]
    %v245 = vld [vmem:[%s1 + $0x30] sm:$0xff]
    %v246 = vld [vmem:[%s1 + $0x38] sm:$0xff]
    %v247 = vld [vmem:[%s1 + $0x40] sm:$0xff]
    %v248 = vld [vmem:[%s1 + $0x48] sm:$0xff]
    %v249 = vld [vmem:[%s1 + $0x50] sm:$0xff]
    %v250 = vld [vmem:[%s1 + $0x58] sm:$0xff]
    %v251 = vld [vmem:[%s1 + $0x60] sm:$0xff]
    %v252 = vld [vmem:[%s1 + $0x68] sm:$0xff]
    %v253 = vld [vmem:[%s1 + $0x70] sm:$0xff]
    %v254 = vld [vmem:[%s1 + $0x78] sm:$0xff]
    %v255 = vld [vmem:[%s1 + $0x80] sm:$0xff]
    %v256 = vld [vmem:[%s1 + $0x88] sm:$0xff]
    %v257 = vld [vmem:[%s1 + $0x90] sm:$0xff]
    %v258 = vld [vmem:[%s1 + $0x98] sm:$0xff]
    %v259 = vld [vmem:[%s1 + $0xa0] sm:$0xff]
    %v260 = vld [vmem:[%s1 + $0xa8] sm:$0xff]
    %v261 = vld [vmem:[%s1 + $0xb0] sm:$0xff]
    %v262 = vld [vmem:[%s1 + $0xb8] sm:$0xff]
    %v263 = vld [vmem:[%s1 + $0xc0] sm:$0xff]
    %v264 = vld [vmem:[%s1 + $0xc8] sm:$0xff]
    %v265 = vld [vmem:[%s1 + $0xd0] sm:$0xff]
    %v266 = vld [vmem:[%s1 + $0xd8] sm:$0xff]
    %v267 = vld [vmem:[%s1 + $0xe0] sm:$0xff]
    %v268 = vld [vmem:[%s1 + $0xe8] sm:$0xff]
    %v269 = vld [vmem:[%s1 + $0xf0] sm:$0xff]
    %v270 = vld [vmem:[%s1 + $0xf8] sm:$0xff]
    %272 = vset.pattern.permute.xlu0 0
    %273 = vperm.xlu0 %272, %v239
    %v274 = vpop.permute.xlu0 %273
    %277 = vset.pattern.permute.xlu0 0
    %278 = vperm.xlu0 %277, %v240
    %v279 = vpop.permute.xlu0 %278
    %282 = vset.pattern.permute.xlu0 0
    %283 = vperm.xlu0 %282, %v241
    %v284 = vpop.permute.xlu0 %283
    %287 = vset.pattern.permute.xlu0 0
    %288 = vperm.xlu0 %287, %v242
    %v289 = vpop.permute.xlu0 %288
    %292 = vset.pattern.permute.xlu0 0
    %293 = vperm.xlu0 %292, %v243
    %v294 = vpop.permute.xlu0 %293
    %297 = vset.pattern.permute.xlu0 0
    %298 = vperm.xlu0 %297, %v244
    %v299 = vpop.permute.xlu0 %298
    %302 = vset.pattern.permute.xlu0 0
    %303 = vperm.xlu0 %302, %v245
    %v304 = vpop.permute.xlu0 %303
    %307 = vset.pattern.permute.xlu0 0
    %308 = vperm.xlu0 %307, %v246
    %v309 = vpop.permute.xlu0 %308
    %312 = vset.pattern.permute.xlu0 0
    %313 = vperm.xlu0 %312, %v247
    %v314 = vpop.permute.xlu0 %313
    %317 = vset.pattern.permute.xlu0 0
    %318 = vperm.xlu0 %317, %v248
    %v319 = vpop.permute.xlu0 %318
    %322 = vset.pattern.permute.xlu0 0
    %323 = vperm.xlu0 %322, %v249
    %v324 = vpop.permute.xlu0 %323
    %327 = vset.pattern.permute.xlu0 0
    %328 = vperm.xlu0 %327, %v250
    %v329 = vpop.permute.xlu0 %328
    %332 = vset.pattern.permute.xlu0 0
    %333 = vperm.xlu0 %332, %v251
    %v334 = vpop.permute.xlu0 %333
    %337 = vset.pattern.permute.xlu0 0
    %338 = vperm.xlu0 %337, %v252
    %v339 = vpop.permute.xlu0 %338
    %342 = vset.pattern.permute.xlu0 0
    %343 = vperm.xlu0 %342, %v253
    %v344 = vpop.permute.xlu0 %343
    %347 = vset.pattern.permute.xlu0 0
    %348 = vperm.xlu0 %347, %v254
    %v349 = vpop.permute.xlu0 %348
    %352 = vset.pattern.permute.xlu0 0
    %353 = vperm.xlu0 %352, %v255
    %v354 = vpop.permute.xlu0 %353
    %357 = vset.pattern.permute.xlu0 0
    %358 = vperm.xlu0 %357, %v256
    %v359 = vpop.permute.xlu0 %358
    %362 = vset.pattern.permute.xlu0 0
    %363 = vperm.xlu0 %362, %v257
    %v364 = vpop.permute.xlu0 %363
    %367 = vset.pattern.permute.xlu0 0
    %368 = vperm.xlu0 %367, %v258
    %v369 = vpop.permute.xlu0 %368
    %372 = vset.pattern.permute.xlu0 0
    %373 = vperm.xlu0 %372, %v259
    %v374 = vpop.permute.xlu0 %373
    %377 = vset.pattern.permute.xlu0 0
    %378 = vperm.xlu0 %377, %v260
    %v379 = vpop.permute.xlu0 %378
    %382 = vset.pattern.permute.xlu0 0
    %383 = vperm.xlu0 %382, %v261
    %v384 = vpop.permute.xlu0 %383
    %387 = vset.pattern.permute.xlu0 0
    %388 = vperm.xlu0 %387, %v262
    %v389 = vpop.permute.xlu0 %388
    %392 = vset.pattern.permute.xlu0 0
    %393 = vperm.xlu0 %392, %v263
    %v394 = vpop.permute.xlu0 %393
    %397 = vset.pattern.permute.xlu0 0
    %398 = vperm.xlu0 %397, %v264
    %v399 = vpop.permute.xlu0 %398
    %402 = vset.pattern.permute.xlu0 0
    %403 = vperm.xlu0 %402, %v265
    %v404 = vpop.permute.xlu0 %403
    %407 = vset.pattern.permute.xlu0 0
    %408 = vperm.xlu0 %407, %v266
    %v409 = vpop.permute.xlu0 %408
    %412 = vset.pattern.permute.xlu0 0
    %413 = vperm.xlu0 %412, %v267
    %v414 = vpop.permute.xlu0 %413
    %417 = vset.pattern.permute.xlu0 0
    %418 = vperm.xlu0 %417, %v268
    %v419 = vpop.permute.xlu0 %418
    %422 = vset.pattern.permute.xlu0 0
    %423 = vperm.xlu0 %422, %v269
    %v424 = vpop.permute.xlu0 %423
    %427 = vset.pattern.permute.xlu0 0
    %428 = vperm.xlu0 %427, %v270
    %v429 = vpop.permute.xlu0 %428
    %v431 = vlaneseq
    %v432 = vshrl.u32 %v431, 7
    %v433 = vsub.s32 1, %v432
    %v434 = vrot.slane %v38, %v433
    %v435 = vmul.f32 %v274, %v434
    %v436 = vmul.f32 %v279, %v434
    %v437 = vmul.f32 %v284, %v434
    %v438 = vmul.f32 %v289, %v434
    %v439 = vmul.f32 %v294, %v434
    %v440 = vmul.f32 %v299, %v434
    %v441 = vmul.f32 %v304, %v434
    %v442 = vmul.f32 %v309, %v434
    %v443 = vmul.f32 %v314, %v434
    %v444 = vmul.f32 %v319, %v434
    %v445 = vmul.f32 %v324, %v434
    %v446 = vmul.f32 %v329, %v434
    %v447 = vmul.f32 %v334, %v434
    %v448 = vmul.f32 %v339, %v434
    %v449 = vmul.f32 %v344, %v434
    %v450 = vmul.f32 %v349, %v434
    %v451 = vmul.f32 %v354, %v434
    %v452 = vmul.f32 %v359, %v434
    %v453 = vmul.f32 %v364, %v434
    %v454 = vmul.f32 %v369, %v434
    %v455 = vmul.f32 %v374, %v434
    %v456 = vmul.f32 %v379, %v434
    %v457 = vmul.f32 %v384, %v434
    %v458 = vmul.f32 %v389, %v434
    %v459 = vmul.f32 %v394, %v434
    %v460 = vmul.f32 %v399, %v434
    %v461 = vmul.f32 %v404, %v434
    %v462 = vmul.f32 %v409, %v434
    %v463 = vmul.f32 %v414, %v434
    %v464 = vmul.f32 %v419, %v434
    %v465 = vmul.f32 %v424, %v434
    %v466 = vmul.f32 %v429, %v434
    %v467 = vlaneseq
    %v468 = vshrl.u32 %v467, 7
    %v469 = vsub.s32 5, %v468
    %v470 = vrot.slane %v38, %v469
    %v471 = vadd.f32 %v435, %v470
    %v472 = vadd.f32 %v436, %v470
    %v473 = vadd.f32 %v437, %v470
    %v474 = vadd.f32 %v438, %v470
    %v475 = vadd.f32 %v439, %v470
    %v476 = vadd.f32 %v440, %v470
    %v477 = vadd.f32 %v441, %v470
    %v478 = vadd.f32 %v442, %v470
    %v479 = vadd.f32 %v443, %v470
    %v480 = vadd.f32 %v444, %v470
    %v481 = vadd.f32 %v445, %v470
    %v482 = vadd.f32 %v446, %v470
    %v483 = vadd.f32 %v447, %v470
    %v484 = vadd.f32 %v448, %v470
    %v485 = vadd.f32 %v449, %v470
    %v486 = vadd.f32 %v450, %v470
    %v487 = vadd.f32 %v451, %v470
    %v488 = vadd.f32 %v452, %v470
    %v489 = vadd.f32 %v453, %v470
    %v490 = vadd.f32 %v454, %v470
    %v491 = vadd.f32 %v455, %v470
    %v492 = vadd.f32 %v456, %v470
    %v493 = vadd.f32 %v457, %v470
    %v494 = vadd.f32 %v458, %v470
    %v495 = vadd.f32 %v459, %v470
    %v496 = vadd.f32 %v460, %v470
    %v497 = vadd.f32 %v461, %v470
    %v498 = vadd.f32 %v462, %v470
    %v499 = vadd.f32 %v463, %v470
    %v500 = vadd.f32 %v464, %v470
    %v501 = vadd.f32 %v465, %v470
    %v502 = vadd.f32 %v466, %v470
    %v503 = vtanh.pop %v471
    %v504 = vtanh.pop %v472
    %v505 = vtanh.pop %v473
    %v506 = vtanh.pop %v474
    %v507 = vtanh.pop %v475
    %v508 = vtanh.pop %v476
    %v509 = vtanh.pop %v477
    %v510 = vtanh.pop %v478
    %v511 = vtanh.pop %v479
    %v512 = vtanh.pop %v480
    %v513 = vtanh.pop %v481
    %v514 = vtanh.pop %v482
    %v515 = vtanh.pop %v483
    %v516 = vtanh.pop %v484
    %v517 = vtanh.pop %v485
    %v518 = vtanh.pop %v486
    %v519 = vtanh.pop %v487
    %v520 = vtanh.pop %v488
    %v521 = vtanh.pop %v489
    %v522 = vtanh.pop %v490
    %v523 = vtanh.pop %v491
    %v524 = vtanh.pop %v492
    %v525 = vtanh.pop %v493
    %v526 = vtanh.pop %v494
    %v527 = vtanh.pop %v495
    %v528 = vtanh.pop %v496
    %v529 = vtanh.pop %v497
    %v530 = vtanh.pop %v498
    %v531 = vtanh.pop %v499
    %v532 = vtanh.pop %v500
    %v533 = vtanh.pop %v501
    %v534 = vtanh.pop %v502
    %v536 = vsel %vm70, %v503, 0
    %v539 = vsel %vm70, %v504, 0
    %v542 = vsel %vm70, %v505, 0
    %v545 = vsel %vm70, %v506, 0
    %v548 = vsel %vm70, %v507, 0
    %v551 = vsel %vm70, %v508, 0
    %v554 = vsel %vm70, %v509, 0
    %v557 = vsel %vm70, %v510, 0
    %v560 = vsel %vm70, %v511, 0
    %v563 = vsel %vm70, %v512, 0
    %v566 = vsel %vm70, %v513, 0
    %v569 = vsel %vm70, %v514, 0
    %v572 = vsel %vm70, %v515, 0
    %v575 = vsel %vm70, %v516, 0
    %v578 = vsel %vm70, %v517, 0
    %v581 = vsel %vm70, %v518, 0
    %v584 = vsel %vm70, %v519, 0
    %v587 = vsel %vm70, %v520, 0
    %v590 = vsel %vm70, %v521, 0
    %v593 = vsel %vm70, %v522, 0
    %v596 = vsel %vm70, %v523, 0
    %v599 = vsel %vm70, %v524, 0
    %v602 = vsel %vm70, %v525, 0
    %v605 = vsel %vm70, %v526, 0
    %v608 = vsel %vm70, %v527, 0
    %v611 = vsel %vm70, %v528, 0
    %v614 = vsel %vm70, %v529, 0
    %v617 = vsel %vm70, %v530, 0
    %v620 = vsel %vm70, %v531, 0
    %v623 = vsel %vm70, %v532, 0
    %v626 = vsel %vm70, %v533, 0
    %v629 = vsel %vm70, %v534, 0
    %631 = vmatprep.subr.mxu0 0.0
    %632 = vmatpush1.msra.mxu0 %v26
    %633 = vmatprep.subr.mxu0 0.0
    %634 = vmatpush1.msra.mxu0 %v27
    %635 = vmatprep.subr.mxu0 0.0
    %636 = vmatpush1.msra.mxu0 %v28
    %637 = vmatprep.subr.mxu0 0.0
    %638 = vmatpush1.msra.mxu0 %v29
    %639 = vmatprep.subr.mxu0 0.0
    %640 = vmatpush1.msra.mxu0 0.0
    %641 = vmatprep.subr.mxu0 0.0
    %642 = vmatpush1.msra.mxu0 0.0
    %643 = vmatprep.subr.mxu0 0.0
    %644 = vmatpush1.msra.mxu0 0.0
    %645 = vmatprep.subr.mxu0 0.0
    %646 = vmatpush1.msra.mxu0 0.0
    %647 = vmatprep.subr.mxu0 0.0
    %648 = vmatpush1.msra.mxu0 0.0
    %649 = vmatprep.subr.mxu0 0.0
    %650 = vmatpush1.msra.mxu0 0.0
    %651 = vmatprep.subr.mxu0 0.0
    %652 = vmatpush1.msra.mxu0 0.0
    %653 = vmatprep.subr.mxu0 0.0
    %654 = vmatpush1.msra.mxu0 0.0
    %655 = vmatprep.subr.mxu0 0.0
    %656 = vmatpush1.msra.mxu0 0.0
    %657 = vmatprep.subr.mxu0 0.0
    %658 = vmatpush1.msra.mxu0 0.0
    %659 = vmatprep.subr.mxu0 0.0
    %660 = vmatpush1.msra.mxu0 0.0
    %661 = vmatprep.subr.mxu0 0.0
    %662 = vmatpush1.msra.mxu0 0.0
    %663 = vmatprep.subr.mxu0 0.0
    %664 = vmatpush1.msra.mxu0 0.0
    %665 = vmatprep.subr.mxu0 0.0
    %666 = vmatpush1.msra.mxu0 0.0
    %667 = vmatprep.subr.mxu0 0.0
    %668 = vmatpush1.msra.mxu0 0.0
    %669 = vmatprep.subr.mxu0 0.0
    %670 = vmatpush1.msra.mxu0 0.0
    %671 = vmatprep.subr.mxu0 0.0
    %672 = vmatpush1.msra.mxu0 0.0
    %673 = vmatprep.subr.mxu0 0.0
    %674 = vmatpush1.msra.mxu0 0.0
    %675 = vmatprep.subr.mxu0 0.0
    %676 = vmatpush1.msra.mxu0 0.0
    %677 = vmatprep.subr.mxu0 0.0
    %678 = vmatpush1.msra.mxu0 0.0
    %679 = vmatprep.subr.mxu0 0.0
    %680 = vmatpush1.msra.mxu0 0.0
    %681 = vmatprep.subr.mxu0 0.0
    %682 = vmatpush1.msra.mxu0 0.0
    %683 = vmatprep.subr.mxu0 0.0
    %684 = vmatpush1.msra.mxu0 0.0
    %685 = vmatprep.subr.mxu0 0.0
    %686 = vmatpush1.msra.mxu0 0.0
    %687 = vmatprep.subr.mxu0 0.0
    %688 = vmatpush1.msra.mxu0 0.0
    %689 = vmatprep.subr.mxu0 0.0
    %690 = vmatpush1.msra.mxu0 0.0
    %691 = vmatprep.subr.mxu0 0.0
    %692 = vmatpush1.msra.mxu0 0.0
    %693 = vmatprep.subr.mxu0 0.0
    %694 = vmatpush1.msra.mxu0 0.0
    %695 = vmatprep.mubr.f32.mxu0 0.0
    %696 = vmatmul.mubr.f32.gmra.mrb[0].mxu0 %v536
    %v697 = vpop.f32.mrb[0].mxu0
    %v698 = vadd.f32 0.0, %v697
    %v699 = vpop.f32.mrb[0].mxu0
    %700 = vmatprep.mubr.f32.mxu0 0.0
    %701 = vmatmul.mubr.f32.gmra.mrb[0].mxu0 %v539
    %v702 = vpop.f32.mrb[0].mxu0
    %v703 = vadd.f32 0.0, %v702
    %v704 = vpop.f32.mrb[0].mxu0
    %705 = vmatprep.mubr.f32.mxu0 0.0
    %706 = vmatmul.mubr.f32.gmra.mrb[0].mxu0 %v542
    %v707 = vpop.f32.mrb[0].mxu0
    %v708 = vadd.f32 0.0, %v707
    %v709 = vpop.f32.mrb[0].mxu0
    %710 = vmatprep.mubr.f32.mxu0 0.0
    %711 = vmatmul.mubr.f32.gmra.mrb[0].mxu0 %v545
    %v712 = vpop.f32.mrb[0].mxu0
    %v713 = vadd.f32 0.0, %v712
    %v714 = vpop.f32.mrb[0].mxu0
    %715 = vmatprep.mubr.f32.mxu0 0.0
    %716 = vmatmul.mubr.f32.gmra.mrb[0].mxu0 %v548
    %v717 = vpop.f32.mrb[0].mxu0
    %v718 = vadd.f32 0.0, %v717
    %v719 = vpop.f32.mrb[0].mxu0
    %720 = vmatprep.mubr.f32.mxu0 0.0
    %721 = vmatmul.mubr.f32.gmra.mrb[0].mxu0 %v551
    %v722 = vpop.f32.mrb[0].mxu0
    %v723 = vadd.f32 0.0, %v722
    %v724 = vpop.f32.mrb[0].mxu0
    %725 = vmatprep.mubr.f32.mxu0 0.0
    %726 = vmatmul.mubr.f32.gmra.mrb[0].mxu0 %v554
    %v727 = vpop.f32.mrb[0].mxu0
    %v728 = vadd.f32 0.0, %v727
    %v729 = vpop.f32.mrb[0].mxu0
    %730 = vmatprep.mubr.f32.mxu0 0.0
    %731 = vmatmul.mubr.f32.gmra.mrb[0].mxu0 %v557
    %v732 = vpop.f32.mrb[0].mxu0
    %v733 = vadd.f32 0.0, %v732
    %v734 = vpop.f32.mrb[0].mxu0
    %735 = vmatprep.mubr.f32.mxu0 0.0
    %736 = vmatmul.mubr.f32.gmra.mrb[0].mxu0 %v560
    %v737 = vpop.f32.mrb[0].mxu0
    %v738 = vadd.f32 0.0, %v737
    %v739 = vpop.f32.mrb[0].mxu0
    %740 = vmatprep.mubr.f32.mxu0 0.0
    %741 = vmatmul.mubr.f32.gmra.mrb[0].mxu0 %v563
    %v742 = vpop.f32.mrb[0].mxu0
    %v743 = vadd.f32 0.0, %v742
    %v744 = vpop.f32.mrb[0].mxu0
    %745 = vmatprep.mubr.f32.mxu0 0.0
    %746 = vmatmul.mubr.f32.gmra.mrb[0].mxu0 %v566
    %v747 = vpop.f32.mrb[0].mxu0
    %v748 = vadd.f32 0.0, %v747
    %v749 = vpop.f32.mrb[0].mxu0
    %750 = vmatprep.mubr.f32.mxu0 0.0
    %751 = vmatmul.mubr.f32.gmra.mrb[0].mxu0 %v569
    %v752 = vpop.f32.mrb[0].mxu0
    %v753 = vadd.f32 0.0, %v752
    %v754 = vpop.f32.mrb[0].mxu0
    %755 = vmatprep.mubr.f32.mxu0 0.0
    %756 = vmatmul.mubr.f32.gmra.mrb[0].mxu0 %v572
    %v757 = vpop.f32.mrb[0].mxu0
    %v758 = vadd.f32 0.0, %v757
    %v759 = vpop.f32.mrb[0].mxu0
    %760 = vmatprep.mubr.f32.mxu0 0.0
    %761 = vmatmul.mubr.f32.gmra.mrb[0].mxu0 %v575
    %v762 = vpop.f32.mrb[0].mxu0
    %v763 = vadd.f32 0.0, %v762
    %v764 = vpop.f32.mrb[0].mxu0
    %765 = vmatprep.mubr.f32.mxu0 0.0
    %766 = vmatmul.mubr.f32.gmra.mrb[0].mxu0 %v578
    %v767 = vpop.f32.mrb[0].mxu0
    %v768 = vadd.f32 0.0, %v767
    %v769 = vpop.f32.mrb[0].mxu0
    %770 = vmatprep.mubr.f32.mxu0 0.0
    %771 = vmatmul.mubr.f32.gmra.mrb[0].mxu0 %v581
    %v772 = vpop.f32.mrb[0].mxu0
    %v773 = vadd.f32 0.0, %v772
    %v774 = vpop.f32.mrb[0].mxu0
    %775 = vmatprep.mubr.f32.mxu0 0.0
    %776 = vmatmul.mubr.f32.gmra.mrb[0].mxu0 %v584
    %v777 = vpop.f32.mrb[0].mxu0
    %v778 = vadd.f32 0.0, %v777
    %v779 = vpop.f32.mrb[0].mxu0
    %780 = vmatprep.mubr.f32.mxu0 0.0
    %781 = vmatmul.mubr.f32.gmra.mrb[0].mxu0 %v587
    %v782 = vpop.f32.mrb[0].mxu0
    %v783 = vadd.f32 0.0, %v782
    %v784 = vpop.f32.mrb[0].mxu0
    %785 = vmatprep.mubr.f32.mxu0 0.0
    %786 = vmatmul.mubr.f32.gmra.mrb[0].mxu0 %v590
    %v787 = vpop.f32.mrb[0].mxu0
    %v788 = vadd.f32 0.0, %v787
    %v789 = vpop.f32.mrb[0].mxu0
    %790 = vmatprep.mubr.f32.mxu0 0.0
    %791 = vmatmul.mubr.f32.gmra.mrb[0].mxu0 %v593
    %v792 = vpop.f32.mrb[0].mxu0
    %v793 = vadd.f32 0.0, %v792
    %v794 = vpop.f32.mrb[0].mxu0
    %795 = vmatprep.mubr.f32.mxu0 0.0
    %796 = vmatmul.mubr.f32.gmra.mrb[0].mxu0 %v596
    %v797 = vpop.f32.mrb[0].mxu0
    %v798 = vadd.f32 0.0, %v797
    %v799 = vpop.f32.mrb[0].mxu0
    %800 = vmatprep.mubr.f32.mxu0 0.0
    %801 = vmatmul.mubr.f32.gmra.mrb[0].mxu0 %v599
    %v802 = vpop.f32.mrb[0].mxu0
    %v803 = vadd.f32 0.0, %v802
    %v804 = vpop.f32.mrb[0].mxu0
    %805 = vmatprep.mubr.f32.mxu0 0.0
    %806 = vmatmul.mubr.f32.gmra.mrb[0].mxu0 %v602
    %v807 = vpop.f32.mrb[0].mxu0
    %v808 = vadd.f32 0.0, %v807
    %v809 = vpop.f32.mrb[0].mxu0
    %810 = vmatprep.mubr.f32.mxu0 0.0
    %811 = vmatmul.mubr.f32.gmra.mrb[0].mxu0 %v605
    %v812 = vpop.f32.mrb[0].mxu0
    %v813 = vadd.f32 0.0, %v812
    %v814 = vpop.f32.mrb[0].mxu0
    %815 = vmatprep.mubr.f32.mxu0 0.0
    %816 = vmatmul.mubr.f32.gmra.mrb[0].mxu0 %v608
    %v817 = vpop.f32.mrb[0].mxu0
    %v818 = vadd.f32 0.0, %v817
    %v819 = vpop.f32.mrb[0].mxu0
    %820 = vmatprep.mubr.f32.mxu0 0.0
    %821 = vmatmul.mubr.f32.gmra.mrb[0].mxu0 %v611
    %v822 = vpop.f32.mrb[0].mxu0
    %v823 = vadd.f32 0.0, %v822
    %v824 = vpop.f32.mrb[0].mxu0
    %825 = vmatprep.mubr.f32.mxu0 0.0
    %826 = vmatmul.mubr.f32.gmra.mrb[0].mxu0 %v614
    %v827 = vpop.f32.mrb[0].mxu0
    %v828 = vadd.f32 0.0, %v827
    %v829 = vpop.f32.mrb[0].mxu0
    %830 = vmatprep.mubr.f32.mxu0 0.0
    %831 = vmatmul.mubr.f32.gmra.mrb[0].mxu0 %v617
    %v832 = vpop.f32.mrb[0].mxu0
    %v833 = vadd.f32 0.0, %v832
    %v834 = vpop.f32.mrb[0].mxu0
    %835 = vmatprep.mubr.f32.mxu0 0.0
    %836 = vmatmul.mubr.f32.gmra.mrb[0].mxu0 %v620
    %v837 = vpop.f32.mrb[0].mxu0
    %v838 = vadd.f32 0.0, %v837
    %v839 = vpop.f32.mrb[0].mxu0
    %840 = vmatprep.mubr.f32.mxu0 0.0
    %841 = vmatmul.mubr.f32.gmra.mrb[0].mxu0 %v623
    %v842 = vpop.f32.mrb[0].mxu0
    %v843 = vadd.f32 0.0, %v842
    %v844 = vpop.f32.mrb[0].mxu0
    %845 = vmatprep.mubr.f32.mxu0 0.0
    %846 = vmatmul.mubr.f32.gmra.mrb[0].mxu0 %v626
    %v847 = vpop.f32.mrb[0].mxu0
    %v848 = vadd.f32 0.0, %v847
    %v849 = vpop.f32.mrb[0].mxu0
    %850 = vmatprep.mubr.f32.mxu0 0.0
    %851 = vmatmul.mubr.f32.gmra.mrb[0].mxu0 %v629
    %v852 = vpop.f32.mrb[0].mxu0
    %v853 = vadd.f32 0.0, %v852
    %v854 = vpop.f32.mrb[0].mxu0
    %855 = vdwg.mxu0
    %v858 = vcombine.high %v231, %v231
    %v860 = vunpack.c.l.s4 1966171168
    %v861 = vunpack.c.0.s8 %v860
    %v862 = vlaneseq
    %v863 = vshrl.u32 %v862, 7
    %v864 = vsub.s32 %v861, %v863
    %v865 = vrot.slane %v231, %v864
    %v867 = vunpack.c.l.s4 1966171168
    %v868 = vunpack.c.0.s8 %v867
    %v869 = vlaneseq
    %v870 = vshrl.u32 %v869, 7
    %v871 = vsub.s32 %v868, %v870
    %v872 = vrot.slane %v858, %v871
    %v873 = vcombine.high %v865, %v865
    %v874 = vcombine.high %v872, %v872
    %v876 = vunpack.c.l.s4 1966171168
    %v877 = vunpack.c.0.s8 %v876
    %v878 = vlaneseq
    %v879 = vshrl.u32 %v878, 7
    %v880 = vsub.s32 %v877, %v879
    %v881 = vrot.slane %v865, %v880
    %v883 = vunpack.c.l.s4 1966171168
    %v884 = vunpack.c.0.s8 %v883
    %v885 = vlaneseq
    %v886 = vshrl.u32 %v885, 7
    %v887 = vsub.s32 %v884, %v886
    %v888 = vrot.slane %v872, %v887
    %v890 = vunpack.c.l.s4 1966171168
    %v891 = vunpack.c.0.s8 %v890
    %v892 = vlaneseq
    %v893 = vshrl.u32 %v892, 7
    %v894 = vsub.s32 %v891, %v893
    %v895 = vrot.slane %v873, %v894
    %v897 = vunpack.c.l.s4 1966171168
    %v898 = vunpack.c.0.s8 %v897
    %v899 = vlaneseq
    %v900 = vshrl.u32 %v899, 7
    %v901 = vsub.s32 %v898, %v900
    %v902 = vrot.slane %v874, %v901
    %v903 = vcombine.high %v881, %v881
    %v904 = vcombine.high %v888, %v888
    %v905 = vcombine.high %v895, %v895
    %v906 = vcombine.high %v902, %v902
    %v907 = vcombine.high %v236, %v236
    %v909 = vunpack.c.l.s4 1966171168
    %v910 = vunpack.c.0.s8 %v909
    %v911 = vlaneseq
    %v912 = vshrl.u32 %v911, 7
    %v913 = vsub.s32 %v910, %v912
    %v914 = vrot.slane %v236, %v913
    %v916 = vunpack.c.l.s4 1966171168
    %v917 = vunpack.c.0.s8 %v916
    %v918 = vlaneseq
    %v919 = vshrl.u32 %v918, 7
    %v920 = vsub.s32 %v917, %v919
    %v921 = vrot.slane %v907, %v920
    %v922 = vcombine.high %v914, %v914
    %v923 = vcombine.high %v921, %v921
    %v925 = vunpack.c.l.s4 1966171168
    %v926 = vunpack.c.0.s8 %v925
    %v927 = vlaneseq
    %v928 = vshrl.u32 %v927, 7
    %v929 = vsub.s32 %v926, %v928
    %v930 = vrot.slane %v914, %v929
    %v932 = vunpack.c.l.s4 1966171168
    %v933 = vunpack.c.0.s8 %v932
    %v934 = vlaneseq
    %v935 = vshrl.u32 %v934, 7
    %v936 = vsub.s32 %v933, %v935
    %v937 = vrot.slane %v921, %v936
    %v939 = vunpack.c.l.s4 1966171168
    %v940 = vunpack.c.0.s8 %v939
    %v941 = vlaneseq
    %v942 = vshrl.u32 %v941, 7
    %v943 = vsub.s32 %v940, %v942
    %v944 = vrot.slane %v922, %v943
    %v946 = vunpack.c.l.s4 1966171168
    %v947 = vunpack.c.0.s8 %v946
    %v948 = vlaneseq
    %v949 = vshrl.u32 %v948, 7
    %v950 = vsub.s32 %v947, %v949
    %v951 = vrot.slane %v923, %v950
    %v952 = vcombine.high %v930, %v930
    %v953 = vcombine.high %v937, %v937
    %v954 = vcombine.high %v944, %v944
    %v955 = vcombine.high %v951, %v951
    %v956 = vlaneseq
    %v957 = vshrl.u32 %v956, 7
    %v958 = vsub.s32 0, %v957
    %v959 = vrot.slane %v881, %v958
    %v960 = vlaneseq
    %v961 = vshrl.u32 %v960, 7
    %v962 = vsub.s32 0, %v961
    %v963 = vrot.slane %v895, %v962
    %v964 = vlaneseq
    %v965 = vshrl.u32 %v964, 7
    %v966 = vsub.s32 0, %v965
    %v967 = vrot.slane %v903, %v966
    %v968 = vlaneseq
    %v969 = vshrl.u32 %v968, 7
    %v970 = vsub.s32 0, %v969
    %v971 = vrot.slane %v905, %v970
    %v972 = vlaneseq
    %v973 = vshrl.u32 %v972, 7
    %v974 = vsub.s32 0, %v973
    %v975 = vrot.slane %v888, %v974
    %v976 = vlaneseq
    %v977 = vshrl.u32 %v976, 7
    %v978 = vsub.s32 0, %v977
    %v979 = vrot.slane %v902, %v978
    %v980 = vlaneseq
    %v981 = vshrl.u32 %v980, 7
    %v982 = vsub.s32 0, %v981
    %v983 = vrot.slane %v904, %v982
    %v984 = vlaneseq
    %v985 = vshrl.u32 %v984, 7
    %v986 = vsub.s32 0, %v985
    %v987 = vrot.slane %v906, %v986
    %v988 = vlaneseq
    %v989 = vshrl.u32 %v988, 7
    %v990 = vsub.s32 0, %v989
    %v991 = vrot.slane %v930, %v990
    %v992 = vlaneseq
    %v993 = vshrl.u32 %v992, 7
    %v994 = vsub.s32 0, %v993
    %v995 = vrot.slane %v944, %v994
    %v996 = vlaneseq
    %v997 = vshrl.u32 %v996, 7
    %v998 = vsub.s32 0, %v997
    %v999 = vrot.slane %v952, %v998
    %v1000 = vlaneseq
    %v1001 = vshrl.u32 %v1000, 7
    %v1002 = vsub.s32 0, %v1001
    %v1003 = vrot.slane %v954, %v1002
    %v1004 = vlaneseq
    %v1005 = vshrl.u32 %v1004, 7
    %v1006 = vsub.s32 0, %v1005
    %v1007 = vrot.slane %v937, %v1006
    %v1008 = vlaneseq
    %v1009 = vshrl.u32 %v1008, 7
    %v1010 = vsub.s32 0, %v1009
    %v1011 = vrot.slane %v951, %v1010
    %v1012 = vlaneseq
    %v1013 = vshrl.u32 %v1012, 7
    %v1014 = vsub.s32 0, %v1013
    %v1015 = vrot.slane %v953, %v1014
    %v1016 = vlaneseq
    %v1017 = vshrl.u32 %v1016, 7
    %v1018 = vsub.s32 0, %v1017
    %v1019 = vrot.slane %v955, %v1018
    %v1036 = vadd.f32 %v959, %v698
    %v1037 = vadd.f32 %v959, %v703
    %v1038 = vadd.f32 %v963, %v708
    %v1039 = vadd.f32 %v963, %v713
    %v1040 = vadd.f32 %v967, %v718
    %v1041 = vadd.f32 %v967, %v723
    %v1042 = vadd.f32 %v971, %v728
    %v1043 = vadd.f32 %v971, %v733
    %v1044 = vadd.f32 %v975, %v738
    %v1045 = vadd.f32 %v975, %v743
    %v1046 = vadd.f32 %v979, %v748
    %v1047 = vadd.f32 %v979, %v753
    %v1048 = vadd.f32 %v983, %v758
    %v1049 = vadd.f32 %v983, %v763
    %v1050 = vadd.f32 %v987, %v768
    %v1051 = vadd.f32 %v987, %v773
    %v1052 = vadd.f32 %v991, %v778
    %v1053 = vadd.f32 %v991, %v783
    %v1054 = vadd.f32 %v995, %v788
    %v1055 = vadd.f32 %v995, %v793
    %v1056 = vadd.f32 %v999, %v798
    %v1057 = vadd.f32 %v999, %v803
    %v1058 = vadd.f32 %v1003, %v808
    %v1059 = vadd.f32 %v1003, %v813
    %v1060 = vadd.f32 %v1007, %v818
    %v1061 = vadd.f32 %v1007, %v823
    %v1062 = vadd.f32 %v1011, %v828
    %v1063 = vadd.f32 %v1011, %v833
    %v1064 = vadd.f32 %v1015, %v838
    %v1065 = vadd.f32 %v1015, %v843
    %v1066 = vadd.f32 %v1019, %v848
    %v1067 = vadd.f32 %v1019, %v853
    %v1068 = vtanh.pop %v1036
    %v1069 = vtanh.pop %v1037
    %v1070 = vtanh.pop %v1038
    %v1071 = vtanh.pop %v1039
    %v1072 = vtanh.pop %v1040
    %v1073 = vtanh.pop %v1041
    %v1074 = vtanh.pop %v1042
    %v1075 = vtanh.pop %v1043
    %v1076 = vtanh.pop %v1044
    %v1077 = vtanh.pop %v1045
    %v1078 = vtanh.pop %v1046
    %v1079 = vtanh.pop %v1047
    %v1080 = vtanh.pop %v1048
    %v1081 = vtanh.pop %v1049
    %v1082 = vtanh.pop %v1050
    %v1083 = vtanh.pop %v1051
    %v1084 = vtanh.pop %v1052
    %v1085 = vtanh.pop %v1053
    %v1086 = vtanh.pop %v1054
    %v1087 = vtanh.pop %v1055
    %v1088 = vtanh.pop %v1056
    %v1089 = vtanh.pop %v1057
    %v1090 = vtanh.pop %v1058
    %v1091 = vtanh.pop %v1059
    %v1092 = vtanh.pop %v1060
    %v1093 = vtanh.pop %v1061
    %v1094 = vtanh.pop %v1062
    %v1095 = vtanh.pop %v1063
    %v1096 = vtanh.pop %v1064
    %v1097 = vtanh.pop %v1065
    %v1098 = vtanh.pop %v1066
    %v1099 = vtanh.pop %v1067
    %v1100 = vlaneseq
    %v1101 = vshrl.u32 %v1100, 7
    %v1102 = vsub.s32 7, %v1101
    %v1103 = vrot.slane %v38, %v1102
    %v1105 = vsel %vm70, %v1068, 0
    %v1108 = vsel %vm70, %v1069, 0
    %v1111 = vsel %vm70, %v1070, 0
    %v1114 = vsel %vm70, %v1071, 0
    %v1117 = vsel %vm70, %v1072, 0
    %v1120 = vsel %vm70, %v1073, 0
    %v1123 = vsel %vm70, %v1074, 0
    %v1126 = vsel %vm70, %v1075, 0
    %v1129 = vsel %vm70, %v1076, 0
    %v1132 = vsel %vm70, %v1077, 0
    %v1135 = vsel %vm70, %v1078, 0
    %v1138 = vsel %vm70, %v1079, 0
    %v1141 = vsel %vm70, %v1080, 0
    %v1144 = vsel %vm70, %v1081, 0
    %v1147 = vsel %vm70, %v1082, 0
    %v1150 = vsel %vm70, %v1083, 0
    %v1153 = vsel %vm70, %v1084, 0
    %v1156 = vsel %vm70, %v1085, 0
    %v1159 = vsel %vm70, %v1086, 0
    %v1162 = vsel %vm70, %v1087, 0
    %v1165 = vsel %vm70, %v1088, 0
    %v1168 = vsel %vm70, %v1089, 0
    %v1171 = vsel %vm70, %v1090, 0
    %v1174 = vsel %vm70, %v1091, 0
    %v1177 = vsel %vm70, %v1092, 0
    %v1180 = vsel %vm70, %v1093, 0
    %v1183 = vsel %vm70, %v1094, 0
    %v1186 = vsel %vm70, %v1095, 0
    %v1189 = vsel %vm70, %v1096, 0
    %v1192 = vsel %vm70, %v1097, 0
    %v1195 = vsel %vm70, %v1098, 0
    %v1198 = vsel %vm70, %v1099, 0
    %1200 = vmatprep.subr.mxu0 0.0
    %1201 = vmatpush1.msra.mxu0 %v30
    %1202 = vmatprep.subr.mxu0 0.0
    %1203 = vmatpush1.msra.mxu0 %v31
    %1204 = vmatprep.subr.mxu0 0.0
    %1205 = vmatpush1.msra.mxu0 %v32
    %1206 = vmatprep.subr.mxu0 0.0
    %1207 = vmatpush1.msra.mxu0 %v33
    %1208 = vmatprep.subr.mxu0 0.0
    %1209 = vmatpush1.msra.mxu0 0.0
    %1210 = vmatprep.subr.mxu0 0.0
    %1211 = vmatpush1.msra.mxu0 0.0
    %1212 = vmatprep.subr.mxu0 0.0
    %1213 = vmatpush1.msra.mxu0 0.0
    %1214 = vmatprep.subr.mxu0 0.0
    %1215 = vmatpush1.msra.mxu0 0.0
    %1216 = vmatprep.subr.mxu0 0.0
    %1217 = vmatpush1.msra.mxu0 0.0
    %1218 = vmatprep.subr.mxu0 0.0
    %1219 = vmatpush1.msra.mxu0 0.0
    %1220 = vmatprep.subr.mxu0 0.0
    %1221 = vmatpush1.msra.mxu0 0.0
    %1222 = vmatprep.subr.mxu0 0.0
    %1223 = vmatpush1.msra.mxu0 0.0
    %1224 = vmatprep.subr.mxu0 0.0
    %1225 = vmatpush1.msra.mxu0 0.0
    %1226 = vmatprep.subr.mxu0 0.0
    %1227 = vmatpush1.msra.mxu0 0.0
    %1228 = vmatprep.subr.mxu0 0.0
    %1229 = vmatpush1.msra.mxu0 0.0
    %1230 = vmatprep.subr.mxu0 0.0
    %1231 = vmatpush1.msra.mxu0 0.0
    %1232 = vmatprep.subr.mxu0 0.0
    %1233 = vmatpush1.msra.mxu0 0.0
    %1234 = vmatprep.subr.mxu0 0.0
    %1235 = vmatpush1.msra.mxu0 0.0
    %1236 = vmatprep.subr.mxu0 0.0
    %1237 = vmatpush1.msra.mxu0 0.0
    %1238 = vmatprep.subr.mxu0 0.0
    %1239 = vmatpush1.msra.mxu0 0.0
    %1240 = vmatprep.subr.mxu0 0.0
    %1241 = vmatpush1.msra.mxu0 0.0
    %1242 = vmatprep.subr.mxu0 0.0
    %1243 = vmatpush1.msra.mxu0 0.0
    %1244 = vmatprep.subr.mxu0 0.0
    %1245 = vmatpush1.msra.mxu0 0.0
    %1246 = vmatprep.subr.mxu0 0.0
    %1247 = vmatpush1.msra.mxu0 0.0
    %1248 = vmatprep.subr.mxu0 0.0
    %1249 = vmatpush1.msra.mxu0 0.0
    %1250 = vmatprep.subr.mxu0 0.0
    %1251 = vmatpush1.msra.mxu0 0.0
    %1252 = vmatprep.subr.mxu0 0.0
    %1253 = vmatpush1.msra.mxu0 0.0
    %1254 = vmatprep.subr.mxu0 0.0
    %1255 = vmatpush1.msra.mxu0 0.0
    %1256 = vmatprep.subr.mxu0 0.0
    %1257 = vmatpush1.msra.mxu0 0.0
    %1258 = vmatprep.subr.mxu0 0.0
    %1259 = vmatpush1.msra.mxu0 0.0
    %1260 = vmatprep.subr.mxu0 0.0
    %1261 = vmatpush1.msra.mxu0 0.0
    %1262 = vmatprep.subr.mxu0 0.0
    %1263 = vmatpush1.msra.mxu0 0.0
    %1264 = vmatprep.mubr.f32.mxu0 0.0
    %1265 = vmatmul.mubr.f32.gmra.mrb[0].mxu0 %v1105
    %v1266 = vpop.f32.mrb[0].mxu0
    %v1267 = vadd.f32 %v1103, %v1266
    %v1268 = vpop.f32.mrb[0].mxu0
    %1269 = vmatprep.mubr.f32.mxu0 0.0
    %1270 = vmatmul.mubr.f32.gmra.mrb[0].mxu0 %v1108
    %v1271 = vpop.f32.mrb[0].mxu0
    %v1272 = vadd.f32 %v1103, %v1271
    %v1273 = vpop.f32.mrb[0].mxu0
    %1274 = vmatprep.mubr.f32.mxu0 0.0
    %1275 = vmatmul.mubr.f32.gmra.mrb[0].mxu0 %v1111
    %v1276 = vpop.f32.mrb[0].mxu0
    %v1277 = vadd.f32 %v1103, %v1276
    %v1278 = vpop.f32.mrb[0].mxu0
    %1279 = vmatprep.mubr.f32.mxu0 0.0
    %1280 = vmatmul.mubr.f32.gmra.mrb[0].mxu0 %v1114
    %v1281 = vpop.f32.mrb[0].mxu0
    %v1282 = vadd.f32 %v1103, %v1281
    %v1283 = vpop.f32.mrb[0].mxu0
    %1284 = vmatprep.mubr.f32.mxu0 0.0
    %1285 = vmatmul.mubr.f32.gmra.mrb[0].mxu0 %v1117
    %v1286 = vpop.f32.mrb[0].mxu0
    %v1287 = vadd.f32 %v1103, %v1286
    %v1288 = vpop.f32.mrb[0].mxu0
    %1289 = vmatprep.mubr.f32.mxu0 0.0
    %1290 = vmatmul.mubr.f32.gmra.mrb[0].mxu0 %v1120
    %v1291 = vpop.f32.mrb[0].mxu0
    %v1292 = vadd.f32 %v1103, %v1291
    %v1293 = vpop.f32.mrb[0].mxu0
    %1294 = vmatprep.mubr.f32.mxu0 0.0
    %1295 = vmatmul.mubr.f32.gmra.mrb[0].mxu0 %v1123
    %v1296 = vpop.f32.mrb[0].mxu0
    %v1297 = vadd.f32 %v1103, %v1296
    %v1298 = vpop.f32.mrb[0].mxu0
    %1299 = vmatprep.mubr.f32.mxu0 0.0
    %1300 = vmatmul.mubr.f32.gmra.mrb[0].mxu0 %v1126
    %v1301 = vpop.f32.mrb[0].mxu0
    %v1302 = vadd.f32 %v1103, %v1301
    %v1303 = vpop.f32.mrb[0].mxu0
    %1304 = vmatprep.mubr.f32.mxu0 0.0
    %1305 = vmatmul.mubr.f32.gmra.mrb[0].mxu0 %v1129
    %v1306 = vpop.f32.mrb[0].mxu0
    %v1307 = vadd.f32 %v1103, %v1306
    %v1308 = vpop.f32.mrb[0].mxu0
    %1309 = vmatprep.mubr.f32.mxu0 0.0
    %1310 = vmatmul.mubr.f32.gmra.mrb[0].mxu0 %v1132
    %v1311 = vpop.f32.mrb[0].mxu0
    %v1312 = vadd.f32 %v1103, %v1311
    %v1313 = vpop.f32.mrb[0].mxu0
    %1314 = vmatprep.mubr.f32.mxu0 0.0
    %1315 = vmatmul.mubr.f32.gmra.mrb[0].mxu0 %v1135
    %v1316 = vpop.f32.mrb[0].mxu0
    %v1317 = vadd.f32 %v1103, %v1316
    %v1318 = vpop.f32.mrb[0].mxu0
    %1319 = vmatprep.mubr.f32.mxu0 0.0
    %1320 = vmatmul.mubr.f32.gmra.mrb[0].mxu0 %v1138
    %v1321 = vpop.f32.mrb[0].mxu0
    %v1322 = vadd.f32 %v1103, %v1321
    %v1323 = vpop.f32.mrb[0].mxu0
    %1324 = vmatprep.mubr.f32.mxu0 0.0
    %1325 = vmatmul.mubr.f32.gmra.mrb[0].mxu0 %v1141
    %v1326 = vpop.f32.mrb[0].mxu0
    %v1327 = vadd.f32 %v1103, %v1326
    %v1328 = vpop.f32.mrb[0].mxu0
    %1329 = vmatprep.mubr.f32.mxu0 0.0
    %1330 = vmatmul.mubr.f32.gmra.mrb[0].mxu0 %v1144
    %v1331 = vpop.f32.mrb[0].mxu0
    %v1332 = vadd.f32 %v1103, %v1331
    %v1333 = vpop.f32.mrb[0].mxu0
    %1334 = vmatprep.mubr.f32.mxu0 0.0
    %1335 = vmatmul.mubr.f32.gmra.mrb[0].mxu0 %v1147
    %v1336 = vpop.f32.mrb[0].mxu0
    %v1337 = vadd.f32 %v1103, %v1336
    %v1338 = vpop.f32.mrb[0].mxu0
    %1339 = vmatprep.mubr.f32.mxu0 0.0
    %1340 = vmatmul.mubr.f32.gmra.mrb[0].mxu0 %v1150
    %v1341 = vpop.f32.mrb[0].mxu0
    %v1342 = vadd.f32 %v1103, %v1341
    %v1343 = vpop.f32.mrb[0].mxu0
    %1344 = vmatprep.mubr.f32.mxu0 0.0
    %1345 = vmatmul.mubr.f32.gmra.mrb[0].mxu0 %v1153
    %v1346 = vpop.f32.mrb[0].mxu0
    %v1347 = vadd.f32 %v1103, %v1346
    %v1348 = vpop.f32.mrb[0].mxu0
    %1349 = vmatprep.mubr.f32.mxu0 0.0
    %1350 = vmatmul.mubr.f32.gmra.mrb[0].mxu0 %v1156
    %v1351 = vpop.f32.mrb[0].mxu0
    %v1352 = vadd.f32 %v1103, %v1351
    %v1353 = vpop.f32.mrb[0].mxu0
    %1354 = vmatprep.mubr.f32.mxu0 0.0
    %1355 = vmatmul.mubr.f32.gmra.mrb[0].mxu0 %v1159
    %v1356 = vpop.f32.mrb[0].mxu0
    %v1357 = vadd.f32 %v1103, %v1356
    %v1358 = vpop.f32.mrb[0].mxu0
    %1359 = vmatprep.mubr.f32.mxu0 0.0
    %1360 = vmatmul.mubr.f32.gmra.mrb[0].mxu0 %v1162
    %v1361 = vpop.f32.mrb[0].mxu0
    %v1362 = vadd.f32 %v1103, %v1361
    %v1363 = vpop.f32.mrb[0].mxu0
    %1364 = vmatprep.mubr.f32.mxu0 0.0
    %1365 = vmatmul.mubr.f32.gmra.mrb[0].mxu0 %v1165
    %v1366 = vpop.f32.mrb[0].mxu0
    %v1367 = vadd.f32 %v1103, %v1366
    %v1368 = vpop.f32.mrb[0].mxu0
    %1369 = vmatprep.mubr.f32.mxu0 0.0
    %1370 = vmatmul.mubr.f32.gmra.mrb[0].mxu0 %v1168
    %v1371 = vpop.f32.mrb[0].mxu0
    %v1372 = vadd.f32 %v1103, %v1371
    %v1373 = vpop.f32.mrb[0].mxu0
    %1374 = vmatprep.mubr.f32.mxu0 0.0
    %1375 = vmatmul.mubr.f32.gmra.mrb[0].mxu0 %v1171
    %v1376 = vpop.f32.mrb[0].mxu0
    %v1377 = vadd.f32 %v1103, %v1376
    %v1378 = vpop.f32.mrb[0].mxu0
    %1379 = vmatprep.mubr.f32.mxu0 0.0
    %1380 = vmatmul.mubr.f32.gmra.mrb[0].mxu0 %v1174
    %v1381 = vpop.f32.mrb[0].mxu0
    %v1382 = vadd.f32 %v1103, %v1381
    %v1383 = vpop.f32.mrb[0].mxu0
    %1384 = vmatprep.mubr.f32.mxu0 0.0
    %1385 = vmatmul.mubr.f32.gmra.mrb[0].mxu0 %v1177
    %v1386 = vpop.f32.mrb[0].mxu0
    %v1387 = vadd.f32 %v1103, %v1386
    %v1388 = vpop.f32.mrb[0].mxu0
    %1389 = vmatprep.mubr.f32.mxu0 0.0
    %1390 = vmatmul.mubr.f32.gmra.mrb[0].mxu0 %v1180
    %v1391 = vpop.f32.mrb[0].mxu0
    %v1392 = vadd.f32 %v1103, %v1391
    %v1393 = vpop.f32.mrb[0].mxu0
    %1394 = vmatprep.mubr.f32.mxu0 0.0
    %1395 = vmatmul.mubr.f32.gmra.mrb[0].mxu0 %v1183
    %v1396 = vpop.f32.mrb[0].mxu0
    %v1397 = vadd.f32 %v1103, %v1396
    %v1398 = vpop.f32.mrb[0].mxu0
    %1399 = vmatprep.mubr.f32.mxu0 0.0
    %1400 = vmatmul.mubr.f32.gmra.mrb[0].mxu0 %v1186
    %v1401 = vpop.f32.mrb[0].mxu0
    %v1402 = vadd.f32 %v1103, %v1401
    %v1403 = vpop.f32.mrb[0].mxu0
    %1404 = vmatprep.mubr.f32.mxu0 0.0
    %1405 = vmatmul.mubr.f32.gmra.mrb[0].mxu0 %v1189
    %v1406 = vpop.f32.mrb[0].mxu0
    %v1407 = vadd.f32 %v1103, %v1406
    %v1408 = vpop.f32.mrb[0].mxu0
    %1409 = vmatprep.mubr.f32.mxu0 0.0
    %1410 = vmatmul.mubr.f32.gmra.mrb[0].mxu0 %v1192
    %v1411 = vpop.f32.mrb[0].mxu0
    %v1412 = vadd.f32 %v1103, %v1411
    %v1413 = vpop.f32.mrb[0].mxu0
    %1414 = vmatprep.mubr.f32.mxu0 0.0
    %1415 = vmatmul.mubr.f32.gmra.mrb[0].mxu0 %v1195
    %v1416 = vpop.f32.mrb[0].mxu0
    %v1417 = vadd.f32 %v1103, %v1416
    %v1418 = vpop.f32.mrb[0].mxu0
    %1419 = vmatprep.mubr.f32.mxu0 0.0
    %1420 = vmatmul.mubr.f32.gmra.mrb[0].mxu0 %v1198
    %v1421 = vpop.f32.mrb[0].mxu0
    %v1422 = vadd.f32 %v1103, %v1421
    %v1423 = vpop.f32.mrb[0].mxu0
    %1424 = vdwg.mxu0
    %v1425 = vtanh.pop %v1267
    %v1426 = vtanh.pop %v1272
    %v1427 = vtanh.pop %v1277
    %v1428 = vtanh.pop %v1282
    %v1429 = vtanh.pop %v1287
    %v1430 = vtanh.pop %v1292
    %v1431 = vtanh.pop %v1297
    %v1432 = vtanh.pop %v1302
    %v1433 = vtanh.pop %v1307
    %v1434 = vtanh.pop %v1312
    %v1435 = vtanh.pop %v1317
    %v1436 = vtanh.pop %v1322
    %v1437 = vtanh.pop %v1327
    %v1438 = vtanh.pop %v1332
    %v1439 = vtanh.pop %v1337
    %v1440 = vtanh.pop %v1342
    %v1441 = vtanh.pop %v1347
    %v1442 = vtanh.pop %v1352
    %v1443 = vtanh.pop %v1357
    %v1444 = vtanh.pop %v1362
    %v1445 = vtanh.pop %v1367
    %v1446 = vtanh.pop %v1372
    %v1447 = vtanh.pop %v1377
    %v1448 = vtanh.pop %v1382
    %v1449 = vtanh.pop %v1387
    %v1450 = vtanh.pop %v1392
    %v1451 = vtanh.pop %v1397
    %v1452 = vtanh.pop %v1402
    %v1453 = vtanh.pop %v1407
    %v1454 = vtanh.pop %v1412
    %v1455 = vtanh.pop %v1417
    %v1456 = vtanh.pop %v1422
    %v1457 = vadd.f32 %v1425, %v1068
    %v1458 = vadd.f32 %v1426, %v1069
    %v1459 = vadd.f32 %v1427, %v1070
    %v1460 = vadd.f32 %v1428, %v1071
    %v1461 = vadd.f32 %v1429, %v1072
    %v1462 = vadd.f32 %v1430, %v1073
    %v1463 = vadd.f32 %v1431, %v1074
    %v1464 = vadd.f32 %v1432, %v1075
    %v1465 = vadd.f32 %v1433, %v1076
    %v1466 = vadd.f32 %v1434, %v1077
    %v1467 = vadd.f32 %v1435, %v1078
    %v1468 = vadd.f32 %v1436, %v1079
    %v1469 = vadd.f32 %v1437, %v1080
    %v1470 = vadd.f32 %v1438, %v1081
    %v1471 = vadd.f32 %v1439, %v1082
    %v1472 = vadd.f32 %v1440, %v1083
    %v1473 = vadd.f32 %v1441, %v1084
    %v1474 = vadd.f32 %v1442, %v1085
    %v1475 = vadd.f32 %v1443, %v1086
    %v1476 = vadd.f32 %v1444, %v1087
    %v1477 = vadd.f32 %v1445, %v1088
    %v1478 = vadd.f32 %v1446, %v1089
    %v1479 = vadd.f32 %v1447, %v1090
    %v1480 = vadd.f32 %v1448, %v1091
    %v1481 = vadd.f32 %v1449, %v1092
    %v1482 = vadd.f32 %v1450, %v1093
    %v1483 = vadd.f32 %v1451, %v1094
    %v1484 = vadd.f32 %v1452, %v1095
    %v1485 = vadd.f32 %v1453, %v1096
    %v1486 = vadd.f32 %v1454, %v1097
    %v1487 = vadd.f32 %v1455, %v1098
    %v1488 = vadd.f32 %v1456, %v1099
    %v1489 = vlaneseq
    %v1490 = vshrl.u32 %v1489, 7
    %v1491 = vsub.s32 0, %v1490
    %v1492 = vrot.slane %v39, %v1491
    %v1494 = vsel %vm70, %v1457, 0
    %v1497 = vsel %vm70, %v1458, 0
    %v1500 = vsel %vm70, %v1459, 0
    %v1503 = vsel %vm70, %v1460, 0
    %v1506 = vsel %vm70, %v1461, 0
    %v1509 = vsel %vm70, %v1462, 0
    %v1512 = vsel %vm70, %v1463, 0
    %v1515 = vsel %vm70, %v1464, 0
    %v1518 = vsel %vm70, %v1465, 0
    %v1521 = vsel %vm70, %v1466, 0
    %v1524 = vsel %vm70, %v1467, 0
    %v1527 = vsel %vm70, %v1468, 0
    %v1530 = vsel %vm70, %v1469, 0
    %v1533 = vsel %vm70, %v1470, 0
    %v1536 = vsel %vm70, %v1471, 0
    %v1539 = vsel %vm70, %v1472, 0
    %v1542 = vsel %vm70, %v1473, 0
    %v1545 = vsel %vm70, %v1474, 0
    %v1548 = vsel %vm70, %v1475, 0
    %v1551 = vsel %vm70, %v1476, 0
    %v1554 = vsel %vm70, %v1477, 0
    %v1557 = vsel %vm70, %v1478, 0
    %v1560 = vsel %vm70, %v1479, 0
    %v1563 = vsel %vm70, %v1480, 0
    %v1566 = vsel %vm70, %v1481, 0
    %v1569 = vsel %vm70, %v1482, 0
    %v1572 = vsel %vm70, %v1483, 0
    %v1575 = vsel %vm70, %v1484, 0
    %v1578 = vsel %vm70, %v1485, 0
    %v1581 = vsel %vm70, %v1486, 0
    %v1584 = vsel %vm70, %v1487, 0
    %v1587 = vsel %vm70, %v1488, 0
    %1589 = vmatprep.subr.mxu0 0.0
    %1590 = vmatpush1.msra.mxu0 %v34
    %1591 = vmatprep.subr.mxu0 0.0
    %1592 = vmatpush1.msra.mxu0 %v35
    %1593 = vmatprep.subr.mxu0 0.0
    %1594 = vmatpush1.msra.mxu0 %v36
    %1595 = vmatprep.subr.mxu0 0.0
    %1596 = vmatpush1.msra.mxu0 %v37
    %1597 = vmatprep.subr.mxu0 0.0
    %1598 = vmatpush1.msra.mxu0 0.0
    %1599 = vmatprep.subr.mxu0 0.0
    %1600 = vmatpush1.msra.mxu0 0.0
    %1601 = vmatprep.subr.mxu0 0.0
    %1602 = vmatpush1.msra.mxu0 0.0
    %1603 = vmatprep.subr.mxu0 0.0
    %1604 = vmatpush1.msra.mxu0 0.0
    %1605 = vmatprep.subr.mxu0 0.0
    %1606 = vmatpush1.msra.mxu0 0.0
    %1607 = vmatprep.subr.mxu0 0.0
    %1608 = vmatpush1.msra.mxu0 0.0
    %1609 = vmatprep.subr.mxu0 0.0
    %1610 = vmatpush1.msra.mxu0 0.0
    %1611 = vmatprep.subr.mxu0 0.0
    %1612 = vmatpush1.msra.mxu0 0.0
    %1613 = vmatprep.subr.mxu0 0.0
    %1614 = vmatpush1.msra.mxu0 0.0
    %1615 = vmatprep.subr.mxu0 0.0
    %1616 = vmatpush1.msra.mxu0 0.0
    %1617 = vmatprep.subr.mxu0 0.0
    %1618 = vmatpush1.msra.mxu0 0.0
    %1619 = vmatprep.subr.mxu0 0.0
    %1620 = vmatpush1.msra.mxu0 0.0
    %1621 = vmatprep.subr.mxu0 0.0
    %1622 = vmatpush1.msra.mxu0 0.0
    %1623 = vmatprep.subr.mxu0 0.0
    %1624 = vmatpush1.msra.mxu0 0.0
    %1625 = vmatprep.subr.mxu0 0.0
    %1626 = vmatpush1.msra.mxu0 0.0
    %1627 = vmatprep.subr.mxu0 0.0
    %1628 = vmatpush1.msra.mxu0 0.0
    %1629 = vmatprep.subr.mxu0 0.0
    %1630 = vmatpush1.msra.mxu0 0.0
    %1631 = vmatprep.subr.mxu0 0.0
    %1632 = vmatpush1.msra.mxu0 0.0
    %1633 = vmatprep.subr.mxu0 0.0
    %1634 = vmatpush1.msra.mxu0 0.0
    %1635 = vmatprep.subr.mxu0 0.0
    %1636 = vmatpush1.msra.mxu0 0.0
    %1637 = vmatprep.subr.mxu0 0.0
    %1638 = vmatpush1.msra.mxu0 0.0
    %1639 = vmatprep.subr.mxu0 0.0
    %1640 = vmatpush1.msra.mxu0 0.0
    %1641 = vmatprep.subr.mxu0 0.0
    %1642 = vmatpush1.msra.mxu0 0.0
    %1643 = vmatprep.subr.mxu0 0.0
    %1644 = vmatpush1.msra.mxu0 0.0
    %1645 = vmatprep.subr.mxu0 0.0
    %1646 = vmatpush1.msra.mxu0 0.0
    %1647 = vmatprep.subr.mxu0 0.0
    %1648 = vmatpush1.msra.mxu0 0.0
    %1649 = vmatprep.subr.mxu0 0.0
    %1650 = vmatpush1.msra.mxu0 0.0
    %1651 = vmatprep.subr.mxu0 0.0
    %1652 = vmatpush1.msra.mxu0 0.0
    %1653 = vmatprep.mubr.f32.mxu0 0.0
    %1654 = vmatmul.mubr.f32.gmra.mrb[0].mxu0 %v1494
    %v1655 = vpop.f32.mrb[0].mxu0
    %v1656 = vadd.f32 %v1492, %v1655
    %v1657 = vpop.f32.mrb[0].mxu0
    %1658 = vmatprep.mubr.f32.mxu0 0.0
    %1659 = vmatmul.mubr.f32.gmra.mrb[0].mxu0 %v1497
    %v1660 = vpop.f32.mrb[0].mxu0
    %v1661 = vadd.f32 %v1492, %v1660
    %v1662 = vpop.f32.mrb[0].mxu0
    %1663 = vmatprep.mubr.f32.mxu0 0.0
    %1664 = vmatmul.mubr.f32.gmra.mrb[0].mxu0 %v1500
    %v1665 = vpop.f32.mrb[0].mxu0
    %v1666 = vadd.f32 %v1492, %v1665
    %v1667 = vpop.f32.mrb[0].mxu0
    %1668 = vmatprep.mubr.f32.mxu0 0.0
    %1669 = vmatmul.mubr.f32.gmra.mrb[0].mxu0 %v1503
    %v1670 = vpop.f32.mrb[0].mxu0
    %v1671 = vadd.f32 %v1492, %v1670
    %v1672 = vpop.f32.mrb[0].mxu0
    %1673 = vmatprep.mubr.f32.mxu0 0.0
    %1674 = vmatmul.mubr.f32.gmra.mrb[0].mxu0 %v1506
    %v1675 = vpop.f32.mrb[0].mxu0
    %v1676 = vadd.f32 %v1492, %v1675
    %v1677 = vpop.f32.mrb[0].mxu0
    %1678 = vmatprep.mubr.f32.mxu0 0.0
    %1679 = vmatmul.mubr.f32.gmra.mrb[0].mxu0 %v1509
    %v1680 = vpop.f32.mrb[0].mxu0
    %v1681 = vadd.f32 %v1492, %v1680
    %v1682 = vpop.f32.mrb[0].mxu0
    %1683 = vmatprep.mubr.f32.mxu0 0.0
    %1684 = vmatmul.mubr.f32.gmra.mrb[0].mxu0 %v1512
    %v1685 = vpop.f32.mrb[0].mxu0
    %v1686 = vadd.f32 %v1492, %v1685
    %v1687 = vpop.f32.mrb[0].mxu0
    %1688 = vmatprep.mubr.f32.mxu0 0.0
    %1689 = vmatmul.mubr.f32.gmra.mrb[0].mxu0 %v1515
    %v1690 = vpop.f32.mrb[0].mxu0
    %v1691 = vadd.f32 %v1492, %v1690
    %v1692 = vpop.f32.mrb[0].mxu0
    %1693 = vmatprep.mubr.f32.mxu0 0.0
    %1694 = vmatmul.mubr.f32.gmra.mrb[0].mxu0 %v1518
    %v1695 = vpop.f32.mrb[0].mxu0
    %v1696 = vadd.f32 %v1492, %v1695
    %v1697 = vpop.f32.mrb[0].mxu0
    %1698 = vmatprep.mubr.f32.mxu0 0.0
    %1699 = vmatmul.mubr.f32.gmra.mrb[0].mxu0 %v1521
    %v1700 = vpop.f32.mrb[0].mxu0
    %v1701 = vadd.f32 %v1492, %v1700
    %v1702 = vpop.f32.mrb[0].mxu0
    %1703 = vmatprep.mubr.f32.mxu0 0.0
    %1704 = vmatmul.mubr.f32.gmra.mrb[0].mxu0 %v1524
    %v1705 = vpop.f32.mrb[0].mxu0
    %v1706 = vadd.f32 %v1492, %v1705
    %v1707 = vpop.f32.mrb[0].mxu0
    %1708 = vmatprep.mubr.f32.mxu0 0.0
    %1709 = vmatmul.mubr.f32.gmra.mrb[0].mxu0 %v1527
    %v1710 = vpop.f32.mrb[0].mxu0
    %v1711 = vadd.f32 %v1492, %v1710
    %v1712 = vpop.f32.mrb[0].mxu0
    %1713 = vmatprep.mubr.f32.mxu0 0.0
    %1714 = vmatmul.mubr.f32.gmra.mrb[0].mxu0 %v1530
    %v1715 = vpop.f32.mrb[0].mxu0
    %v1716 = vadd.f32 %v1492, %v1715
    %v1717 = vpop.f32.mrb[0].mxu0
    %1718 = vmatprep.mubr.f32.mxu0 0.0
    %1719 = vmatmul.mubr.f32.gmra.mrb[0].mxu0 %v1533
    %v1720 = vpop.f32.mrb[0].mxu0
    %v1721 = vadd.f32 %v1492, %v1720
    %v1722 = vpop.f32.mrb[0].mxu0
    %1723 = vmatprep.mubr.f32.mxu0 0.0
    %1724 = vmatmul.mubr.f32.gmra.mrb[0].mxu0 %v1536
    %v1725 = vpop.f32.mrb[0].mxu0
    %v1726 = vadd.f32 %v1492, %v1725
    %v1727 = vpop.f32.mrb[0].mxu0
    %1728 = vmatprep.mubr.f32.mxu0 0.0
    %1729 = vmatmul.mubr.f32.gmra.mrb[0].mxu0 %v1539
    %v1730 = vpop.f32.mrb[0].mxu0
    %v1731 = vadd.f32 %v1492, %v1730
    %v1732 = vpop.f32.mrb[0].mxu0
    %1733 = vmatprep.mubr.f32.mxu0 0.0
    %1734 = vmatmul.mubr.f32.gmra.mrb[0].mxu0 %v1542
    %v1735 = vpop.f32.mrb[0].mxu0
    %v1736 = vadd.f32 %v1492, %v1735
    %v1737 = vpop.f32.mrb[0].mxu0
    %1738 = vmatprep.mubr.f32.mxu0 0.0
    %1739 = vmatmul.mubr.f32.gmra.mrb[0].mxu0 %v1545
    %v1740 = vpop.f32.mrb[0].mxu0
    %v1741 = vadd.f32 %v1492, %v1740
    %v1742 = vpop.f32.mrb[0].mxu0
    %1743 = vmatprep.mubr.f32.mxu0 0.0
    %1744 = vmatmul.mubr.f32.gmra.mrb[0].mxu0 %v1548
    %v1745 = vpop.f32.mrb[0].mxu0
    %v1746 = vadd.f32 %v1492, %v1745
    %v1747 = vpop.f32.mrb[0].mxu0
    %1748 = vmatprep.mubr.f32.mxu0 0.0
    %1749 = vmatmul.mubr.f32.gmra.mrb[0].mxu0 %v1551
    %v1750 = vpop.f32.mrb[0].mxu0
    %v1751 = vadd.f32 %v1492, %v1750
    %v1752 = vpop.f32.mrb[0].mxu0
    %1753 = vmatprep.mubr.f32.mxu0 0.0
    %1754 = vmatmul.mubr.f32.gmra.mrb[0].mxu0 %v1554
    %v1755 = vpop.f32.mrb[0].mxu0
    %v1756 = vadd.f32 %v1492, %v1755
    %v1757 = vpop.f32.mrb[0].mxu0
    %1758 = vmatprep.mubr.f32.mxu0 0.0
    %1759 = vmatmul.mubr.f32.gmra.mrb[0].mxu0 %v1557
    %v1760 = vpop.f32.mrb[0].mxu0
    %v1761 = vadd.f32 %v1492, %v1760
    %v1762 = vpop.f32.mrb[0].mxu0
    %1763 = vmatprep.mubr.f32.mxu0 0.0
    %1764 = vmatmul.mubr.f32.gmra.mrb[0].mxu0 %v1560
    %v1765 = vpop.f32.mrb[0].mxu0
    %v1766 = vadd.f32 %v1492, %v1765
    %v1767 = vpop.f32.mrb[0].mxu0
    %1768 = vmatprep.mubr.f32.mxu0 0.0
    %1769 = vmatmul.mubr.f32.gmra.mrb[0].mxu0 %v1563
    %v1770 = vpop.f32.mrb[0].mxu0
    %v1771 = vadd.f32 %v1492, %v1770
    %v1772 = vpop.f32.mrb[0].mxu0
    %1773 = vmatprep.mubr.f32.mxu0 0.0
    %1774 = vmatmul.mubr.f32.gmra.mrb[0].mxu0 %v1566
    %v1775 = vpop.f32.mrb[0].mxu0
    %v1776 = vadd.f32 %v1492, %v1775
    %v1777 = vpop.f32.mrb[0].mxu0
    %1778 = vmatprep.mubr.f32.mxu0 0.0
    %1779 = vmatmul.mubr.f32.gmra.mrb[0].mxu0 %v1569
    %v1780 = vpop.f32.mrb[0].mxu0
    %v1781 = vadd.f32 %v1492, %v1780
    %v1782 = vpop.f32.mrb[0].mxu0
    %1783 = vmatprep.mubr.f32.mxu0 0.0
    %1784 = vmatmul.mubr.f32.gmra.mrb[0].mxu0 %v1572
    %v1785 = vpop.f32.mrb[0].mxu0
    %v1786 = vadd.f32 %v1492, %v1785
    %v1787 = vpop.f32.mrb[0].mxu0
    %1788 = vmatprep.mubr.f32.mxu0 0.0
    %1789 = vmatmul.mubr.f32.gmra.mrb[0].mxu0 %v1575
    %v1790 = vpop.f32.mrb[0].mxu0
    %v1791 = vadd.f32 %v1492, %v1790
    %v1792 = vpop.f32.mrb[0].mxu0
    %1793 = vmatprep.mubr.f32.mxu0 0.0
    %1794 = vmatmul.mubr.f32.gmra.mrb[0].mxu0 %v1578
    %v1795 = vpop.f32.mrb[0].mxu0
    %v1796 = vadd.f32 %v1492, %v1795
    %v1797 = vpop.f32.mrb[0].mxu0
    %1798 = vmatprep.mubr.f32.mxu0 0.0
    %1799 = vmatmul.mubr.f32.gmra.mrb[0].mxu0 %v1581
    %v1800 = vpop.f32.mrb[0].mxu0
    %v1801 = vadd.f32 %v1492, %v1800
    %v1802 = vpop.f32.mrb[0].mxu0
    %1803 = vmatprep.mubr.f32.mxu0 0.0
    %1804 = vmatmul.mubr.f32.gmra.mrb[0].mxu0 %v1584
    %v1805 = vpop.f32.mrb[0].mxu0
    %v1806 = vadd.f32 %v1492, %v1805
    %v1807 = vpop.f32.mrb[0].mxu0
    %1808 = vmatprep.mubr.f32.mxu0 0.0
    %1809 = vmatmul.mubr.f32.gmra.mrb[0].mxu0 %v1587
    %v1810 = vpop.f32.mrb[0].mxu0
    %v1811 = vadd.f32 %v1492, %v1810
    %v1812 = vpop.f32.mrb[0].mxu0
    %1813 = vdwg.mxu0
    %v1814 = vtanh.pop %v1656
    %v1815 = vtanh.pop %v1661
    %v1816 = vtanh.pop %v1666
    %v1817 = vtanh.pop %v1671
    %v1818 = vtanh.pop %v1676
    %v1819 = vtanh.pop %v1681
    %v1820 = vtanh.pop %v1686
    %v1821 = vtanh.pop %v1691
    %v1822 = vtanh.pop %v1696
    %v1823 = vtanh.pop %v1701
    %v1824 = vtanh.pop %v1706
    %v1825 = vtanh.pop %v1711
    %v1826 = vtanh.pop %v1716
    %v1827 = vtanh.pop %v1721
    %v1828 = vtanh.pop %v1726
    %v1829 = vtanh.pop %v1731
    %v1830 = vtanh.pop %v1736
    %v1831 = vtanh.pop %v1741
    %v1832 = vtanh.pop %v1746
    %v1833 = vtanh.pop %v1751
    %v1834 = vtanh.pop %v1756
    %v1835 = vtanh.pop %v1761
    %v1836 = vtanh.pop %v1766
    %v1837 = vtanh.pop %v1771
    %v1838 = vtanh.pop %v1776
    %v1839 = vtanh.pop %v1781
    %v1840 = vtanh.pop %v1786
    %v1841 = vtanh.pop %v1791
    %v1842 = vtanh.pop %v1796
    %v1843 = vtanh.pop %v1801
    %v1844 = vtanh.pop %v1806
    %v1845 = vtanh.pop %v1811
    %v1846 = vadd.f32 %v1814, %v1457
    %v1847 = vadd.f32 %v1815, %v1458
    %v1848 = vadd.f32 %v1816, %v1459
    %v1849 = vadd.f32 %v1817, %v1460
    %v1850 = vadd.f32 %v1818, %v1461
    %v1851 = vadd.f32 %v1819, %v1462
    %v1852 = vadd.f32 %v1820, %v1463
    %v1853 = vadd.f32 %v1821, %v1464
    %v1854 = vadd.f32 %v1822, %v1465
    %v1855 = vadd.f32 %v1823, %v1466
    %v1856 = vadd.f32 %v1824, %v1467
    %v1857 = vadd.f32 %v1825, %v1468
    %v1858 = vadd.f32 %v1826, %v1469
    %v1859 = vadd.f32 %v1827, %v1470
    %v1860 = vadd.f32 %v1828, %v1471
    %v1861 = vadd.f32 %v1829, %v1472
    %v1862 = vadd.f32 %v1830, %v1473
    %v1863 = vadd.f32 %v1831, %v1474
    %v1864 = vadd.f32 %v1832, %v1475
    %v1865 = vadd.f32 %v1833, %v1476
    %v1866 = vadd.f32 %v1834, %v1477
    %v1867 = vadd.f32 %v1835, %v1478
    %v1868 = vadd.f32 %v1836, %v1479
    %v1869 = vadd.f32 %v1837, %v1480
    %v1870 = vadd.f32 %v1838, %v1481
    %v1871 = vadd.f32 %v1839, %v1482
    %v1872 = vadd.f32 %v1840, %v1483
    %v1873 = vadd.f32 %v1841, %v1484
    %v1874 = vadd.f32 %v1842, %v1485
    %v1875 = vadd.f32 %v1843, %v1486
    %v1876 = vadd.f32 %v1844, %v1487
    %v1877 = vadd.f32 %v1845, %v1488
    %v1878 = vlaneseq
    %v1879 = vshrl.u32 %v1878, 7
    %v1880 = vsub.s32 2, %v1879
    %v1881 = vrot.slane %v38, %v1880
    %v1882 = vmul.f32 %v1846, %v1881
    %v1883 = vmul.f32 %v1847, %v1881
    %v1884 = vmul.f32 %v1848, %v1881
    %v1885 = vmul.f32 %v1849, %v1881
    %v1886 = vmul.f32 %v1850, %v1881
    %v1887 = vmul.f32 %v1851, %v1881
    %v1888 = vmul.f32 %v1852, %v1881
    %v1889 = vmul.f32 %v1853, %v1881
    %v1890 = vmul.f32 %v1854, %v1881
    %v1891 = vmul.f32 %v1855, %v1881
    %v1892 = vmul.f32 %v1856, %v1881
    %v1893 = vmul.f32 %v1857, %v1881
    %v1894 = vmul.f32 %v1858, %v1881
    %v1895 = vmul.f32 %v1859, %v1881
    %v1896 = vmul.f32 %v1860, %v1881
    %v1897 = vmul.f32 %v1861, %v1881
    %v1898 = vmul.f32 %v1862, %v1881
    %v1899 = vmul.f32 %v1863, %v1881
    %v1900 = vmul.f32 %v1864, %v1881
    %v1901 = vmul.f32 %v1865, %v1881
    %v1902 = vmul.f32 %v1866, %v1881
    %v1903 = vmul.f32 %v1867, %v1881
    %v1904 = vmul.f32 %v1868, %v1881
    %v1905 = vmul.f32 %v1869, %v1881
    %v1906 = vmul.f32 %v1870, %v1881
    %v1907 = vmul.f32 %v1871, %v1881
    %v1908 = vmul.f32 %v1872, %v1881
    %v1909 = vmul.f32 %v1873, %v1881
    %v1910 = vmul.f32 %v1874, %v1881
    %v1911 = vmul.f32 %v1875, %v1881
    %v1912 = vmul.f32 %v1876, %v1881
    %v1913 = vmul.f32 %v1877, %v1881
    %v1914 = vsel %vm70, %v1882, 0.0
    %1915 = vadd.xlane.f32.xlu0 %v1914
    %v1916 = vpop.xlane.xlu0 %1915
    %v1917 = vsel %vm70, %v1883, 0.0
    %1918 = vadd.xlane.f32.xlu0 %v1917
    %v1919 = vpop.xlane.xlu0 %1918
    %v1920 = vsel %vm70, %v1884, 0.0
    %1921 = vadd.xlane.f32.xlu0 %v1920
    %v1922 = vpop.xlane.xlu0 %1921
    %v1923 = vsel %vm70, %v1885, 0.0
    %1924 = vadd.xlane.f32.xlu0 %v1923
    %v1925 = vpop.xlane.xlu0 %1924
    %v1926 = vsel %vm70, %v1886, 0.0
    %1927 = vadd.xlane.f32.xlu0 %v1926
    %v1928 = vpop.xlane.xlu0 %1927
    %v1929 = vsel %vm70, %v1887, 0.0
    %1930 = vadd.xlane.f32.xlu0 %v1929
    %v1931 = vpop.xlane.xlu0 %1930
    %v1932 = vsel %vm70, %v1888, 0.0
    %1933 = vadd.xlane.f32.xlu0 %v1932
    %v1934 = vpop.xlane.xlu0 %1933
    %v1935 = vsel %vm70, %v1889, 0.0
    %1936 = vadd.xlane.f32.xlu0 %v1935
    %v1937 = vpop.xlane.xlu0 %1936
    %v1938 = vsel %vm70, %v1890, 0.0
    %1939 = vadd.xlane.f32.xlu0 %v1938
    %v1940 = vpop.xlane.xlu0 %1939
    %v1941 = vsel %vm70, %v1891, 0.0
    %1942 = vadd.xlane.f32.xlu0 %v1941
    %v1943 = vpop.xlane.xlu0 %1942
    %v1944 = vsel %vm70, %v1892, 0.0
    %1945 = vadd.xlane.f32.xlu0 %v1944
    %v1946 = vpop.xlane.xlu0 %1945
    %v1947 = vsel %vm70, %v1893, 0.0
    %1948 = vadd.xlane.f32.xlu0 %v1947
    %v1949 = vpop.xlane.xlu0 %1948
    %v1950 = vsel %vm70, %v1894, 0.0
    %1951 = vadd.xlane.f32.xlu0 %v1950
    %v1952 = vpop.xlane.xlu0 %1951
    %v1953 = vsel %vm70, %v1895, 0.0
    %1954 = vadd.xlane.f32.xlu0 %v1953
    %v1955 = vpop.xlane.xlu0 %1954
    %v1956 = vsel %vm70, %v1896, 0.0
    %1957 = vadd.xlane.f32.xlu0 %v1956
    %v1958 = vpop.xlane.xlu0 %1957
    %v1959 = vsel %vm70, %v1897, 0.0
    %1960 = vadd.xlane.f32.xlu0 %v1959
    %v1961 = vpop.xlane.xlu0 %1960
    %v1962 = vsel %vm70, %v1898, 0.0
    %1963 = vadd.xlane.f32.xlu0 %v1962
    %v1964 = vpop.xlane.xlu0 %1963
    %v1965 = vsel %vm70, %v1899, 0.0
    %1966 = vadd.xlane.f32.xlu0 %v1965
    %v1967 = vpop.xlane.xlu0 %1966
    %v1968 = vsel %vm70, %v1900, 0.0
    %1969 = vadd.xlane.f32.xlu0 %v1968
    %v1970 = vpop.xlane.xlu0 %1969
    %v1971 = vsel %vm70, %v1901, 0.0
    %1972 = vadd.xlane.f32.xlu0 %v1971
    %v1973 = vpop.xlane.xlu0 %1972
    %v1974 = vsel %vm70, %v1902, 0.0
    %1975 = vadd.xlane.f32.xlu0 %v1974
    %v1976 = vpop.xlane.xlu0 %1975
    %v1977 = vsel %vm70, %v1903, 0.0
    %1978 = vadd.xlane.f32.xlu0 %v1977
    %v1979 = vpop.xlane.xlu0 %1978
    %v1980 = vsel %vm70, %v1904, 0.0
    %1981 = vadd.xlane.f32.xlu0 %v1980
    %v1982 = vpop.xlane.xlu0 %1981
    %v1983 = vsel %vm70, %v1905, 0.0
    %1984 = vadd.xlane.f32.xlu0 %v1983
    %v1985 = vpop.xlane.xlu0 %1984
    %v1986 = vsel %vm70, %v1906, 0.0
    %1987 = vadd.xlane.f32.xlu0 %v1986
    %v1988 = vpop.xlane.xlu0 %1987
    %v1989 = vsel %vm70, %v1907, 0.0
    %1990 = vadd.xlane.f32.xlu0 %v1989
    %v1991 = vpop.xlane.xlu0 %1990
    %v1992 = vsel %vm70, %v1908, 0.0
    %1993 = vadd.xlane.f32.xlu0 %v1992
    %v1994 = vpop.xlane.xlu0 %1993
    %v1995 = vsel %vm70, %v1909, 0.0
    %1996 = vadd.xlane.f32.xlu0 %v1995
    %v1997 = vpop.xlane.xlu0 %1996
    %v1998 = vsel %vm70, %v1910, 0.0
    %1999 = vadd.xlane.f32.xlu0 %v1998
    %v2000 = vpop.xlane.xlu0 %1999
    %v2001 = vsel %vm70, %v1911, 0.0
    %2002 = vadd.xlane.f32.xlu0 %v2001
    %v2003 = vpop.xlane.xlu0 %2002
    %v2004 = vsel %vm70, %v1912, 0.0
    %2005 = vadd.xlane.f32.xlu0 %v2004
    %v2006 = vpop.xlane.xlu0 %2005
    %v2007 = vsel %vm70, %v1913, 0.0
    %2008 = vadd.xlane.f32.xlu0 %v2007
    %v2009 = vpop.xlane.xlu0 %2008
    %2011 = vset.pattern.permute.xlu0 0
    %2012 = vperm.xlu0 %2011, %v39
    %v2013 = vpop.permute.xlu0 %2012
    %v2014 = vlaneseq
    %v2015 = vshrl.u32 %v2014, 7
    %v2016 = vsub.s32 1, %v2015
    %v2017 = vrot.slane %v2013, %v2016
    %v2019 = vadd.f32 %v1916, %v2017
    %v2020 = vadd.f32 %v1919, %v2017
    %v2021 = vadd.f32 %v1922, %v2017
    %v2022 = vadd.f32 %v1925, %v2017
    %v2023 = vadd.f32 %v1928, %v2017
    %v2024 = vadd.f32 %v1931, %v2017
    %v2025 = vadd.f32 %v1934, %v2017
    %v2026 = vadd.f32 %v1937, %v2017
    %v2027 = vadd.f32 %v1940, %v2017
    %v2028 = vadd.f32 %v1943, %v2017
    %v2029 = vadd.f32 %v1946, %v2017
    %v2030 = vadd.f32 %v1949, %v2017
    %v2031 = vadd.f32 %v1952, %v2017
    %v2032 = vadd.f32 %v1955, %v2017
    %v2033 = vadd.f32 %v1958, %v2017
    %v2034 = vadd.f32 %v1961, %v2017
    %v2035 = vadd.f32 %v1964, %v2017
    %v2036 = vadd.f32 %v1967, %v2017
    %v2037 = vadd.f32 %v1970, %v2017
    %v2038 = vadd.f32 %v1973, %v2017
    %v2039 = vadd.f32 %v1976, %v2017
    %v2040 = vadd.f32 %v1979, %v2017
    %v2041 = vadd.f32 %v1982, %v2017
    %v2042 = vadd.f32 %v1985, %v2017
    %v2043 = vadd.f32 %v1988, %v2017
    %v2044 = vadd.f32 %v1991, %v2017
    %v2045 = vadd.f32 %v1994, %v2017
    %v2046 = vadd.f32 %v1997, %v2017
    %v2047 = vadd.f32 %v2000, %v2017
    %v2048 = vadd.f32 %v2003, %v2017
    %v2049 = vadd.f32 %v2006, %v2017
    %v2050 = vadd.f32 %v2009, %v2017
    %v2083 = vcombine.high %v2019, %v2019
    %v2085 = vunpack.c.l.s4 1966171168
    %v2086 = vunpack.c.0.s8 %v2085
    %v2087 = vlaneseq
    %v2088 = vshrl.u32 %v2087, 7
    %v2089 = vsub.s32 %v2086, %v2088
    %v2090 = vrot.slane %v2019, %v2089
    %v2092 = vunpack.c.l.s4 1966171168
    %v2093 = vunpack.c.0.s8 %v2092
    %v2094 = vlaneseq
    %v2095 = vshrl.u32 %v2094, 7
    %v2096 = vsub.s32 %v2093, %v2095
    %v2097 = vrot.slane %v2083, %v2096
    %v2098 = vcombine.high %v2090, %v2090
    %v2099 = vcombine.high %v2097, %v2097
    %v2101 = vunpack.c.l.s4 1966171168
    %v2102 = vunpack.c.0.s8 %v2101
    %v2103 = vlaneseq
    %v2104 = vshrl.u32 %v2103, 7
    %v2105 = vsub.s32 %v2102, %v2104
    %v2106 = vrot.slane %v2090, %v2105
    %v2108 = vunpack.c.l.s4 1966171168
    %v2109 = vunpack.c.0.s8 %v2108
    %v2110 = vlaneseq
    %v2111 = vshrl.u32 %v2110, 7
    %v2112 = vsub.s32 %v2109, %v2111
    %v2113 = vrot.slane %v2097, %v2112
    %v2115 = vunpack.c.l.s4 1966171168
    %v2116 = vunpack.c.0.s8 %v2115
    %v2117 = vlaneseq
    %v2118 = vshrl.u32 %v2117, 7
    %v2119 = vsub.s32 %v2116, %v2118
    %v2120 = vrot.slane %v2098, %v2119
    %v2122 = vunpack.c.l.s4 1966171168
    %v2123 = vunpack.c.0.s8 %v2122
    %v2124 = vlaneseq
    %v2125 = vshrl.u32 %v2124, 7
    %v2126 = vsub.s32 %v2123, %v2125
    %v2127 = vrot.slane %v2099, %v2126
    %v2128 = vcombine.high %v2106, %v2106
    %v2129 = vcombine.high %v2113, %v2113
    %v2130 = vcombine.high %v2120, %v2120
    %v2131 = vcombine.high %v2127, %v2127
    %v2132 = vcombine.high %v2020, %v2020
    %v2134 = vunpack.c.l.s4 1966171168
    %v2135 = vunpack.c.0.s8 %v2134
    %v2136 = vlaneseq
    %v2137 = vshrl.u32 %v2136, 7
    %v2138 = vsub.s32 %v2135, %v2137
    %v2139 = vrot.slane %v2020, %v2138
    %v2141 = vunpack.c.l.s4 1966171168
    %v2142 = vunpack.c.0.s8 %v2141
    %v2143 = vlaneseq
    %v2144 = vshrl.u32 %v2143, 7
    %v2145 = vsub.s32 %v2142, %v2144
    %v2146 = vrot.slane %v2132, %v2145
    %v2147 = vcombine.high %v2139, %v2139
    %v2148 = vcombine.high %v2146, %v2146
    %v2150 = vunpack.c.l.s4 1966171168
    %v2151 = vunpack.c.0.s8 %v2150
    %v2152 = vlaneseq
    %v2153 = vshrl.u32 %v2152, 7
    %v2154 = vsub.s32 %v2151, %v2153
    %v2155 = vrot.slane %v2139, %v2154
    %v2157 = vunpack.c.l.s4 1966171168
    %v2158 = vunpack.c.0.s8 %v2157
    %v2159 = vlaneseq
    %v2160 = vshrl.u32 %v2159, 7
    %v2161 = vsub.s32 %v2158, %v2160
    %v2162 = vrot.slane %v2146, %v2161
    %v2164 = vunpack.c.l.s4 1966171168
    %v2165 = vunpack.c.0.s8 %v2164
    %v2166 = vlaneseq
    %v2167 = vshrl.u32 %v2166, 7
    %v2168 = vsub.s32 %v2165, %v2167
    %v2169 = vrot.slane %v2147, %v2168
    %v2171 = vunpack.c.l.s4 1966171168
    %v2172 = vunpack.c.0.s8 %v2171
    %v2173 = vlaneseq
    %v2174 = vshrl.u32 %v2173, 7
    %v2175 = vsub.s32 %v2172, %v2174
    %v2176 = vrot.slane %v2148, %v2175
    %v2177 = vcombine.high %v2155, %v2155
    %v2178 = vcombine.high %v2162, %v2162
    %v2179 = vcombine.high %v2169, %v2169
    %v2180 = vcombine.high %v2176, %v2176
    %v2181 = vcombine.high %v2021, %v2021
    %v2183 = vunpack.c.l.s4 1966171168
    %v2184 = vunpack.c.0.s8 %v2183
    %v2185 = vlaneseq
    %v2186 = vshrl.u32 %v2185, 7
    %v2187 = vsub.s32 %v2184, %v2186
    %v2188 = vrot.slane %v2021, %v2187
    %v2190 = vunpack.c.l.s4 1966171168
    %v2191 = vunpack.c.0.s8 %v2190
    %v2192 = vlaneseq
    %v2193 = vshrl.u32 %v2192, 7
    %v2194 = vsub.s32 %v2191, %v2193
    %v2195 = vrot.slane %v2181, %v2194
    %v2196 = vcombine.high %v2188, %v2188
    %v2197 = vcombine.high %v2195, %v2195
    %v2199 = vunpack.c.l.s4 1966171168
    %v2200 = vunpack.c.0.s8 %v2199
    %v2201 = vlaneseq
    %v2202 = vshrl.u32 %v2201, 7
    %v2203 = vsub.s32 %v2200, %v2202
    %v2204 = vrot.slane %v2188, %v2203
    %v2206 = vunpack.c.l.s4 1966171168
    %v2207 = vunpack.c.0.s8 %v2206
    %v2208 = vlaneseq
    %v2209 = vshrl.u32 %v2208, 7
    %v2210 = vsub.s32 %v2207, %v2209
    %v2211 = vrot.slane %v2195, %v2210
    %v2213 = vunpack.c.l.s4 1966171168
    %v2214 = vunpack.c.0.s8 %v2213
    %v2215 = vlaneseq
    %v2216 = vshrl.u32 %v2215, 7
    %v2217 = vsub.s32 %v2214, %v2216
    %v2218 = vrot.slane %v2196, %v2217
    %v2220 = vunpack.c.l.s4 1966171168
    %v2221 = vunpack.c.0.s8 %v2220
    %v2222 = vlaneseq
    %v2223 = vshrl.u32 %v2222, 7
    %v2224 = vsub.s32 %v2221, %v2223
    %v2225 = vrot.slane %v2197, %v2224
    %v2226 = vcombine.high %v2204, %v2204
    %v2227 = vcombine.high %v2211, %v2211
    %v2228 = vcombine.high %v2218, %v2218
    %v2229 = vcombine.high %v2225, %v2225
    %v2230 = vcombine.high %v2022, %v2022
    %v2232 = vunpack.c.l.s4 1966171168
    %v2233 = vunpack.c.0.s8 %v2232
    %v2234 = vlaneseq
    %v2235 = vshrl.u32 %v2234, 7
    %v2236 = vsub.s32 %v2233, %v2235
    %v2237 = vrot.slane %v2022, %v2236
    %v2239 = vunpack.c.l.s4 1966171168
    %v2240 = vunpack.c.0.s8 %v2239
    %v2241 = vlaneseq
    %v2242 = vshrl.u32 %v2241, 7
    %v2243 = vsub.s32 %v2240, %v2242
    %v2244 = vrot.slane %v2230, %v2243
    %v2245 = vcombine.high %v2237, %v2237
    %v2246 = vcombine.high %v2244, %v2244
    %v2248 = vunpack.c.l.s4 1966171168
    %v2249 = vunpack.c.0.s8 %v2248
    %v2250 = vlaneseq
    %v2251 = vshrl.u32 %v2250, 7
    %v2252 = vsub.s32 %v2249, %v2251
    %v2253 = vrot.slane %v2237, %v2252
    %v2255 = vunpack.c.l.s4 1966171168
    %v2256 = vunpack.c.0.s8 %v2255
    %v2257 = vlaneseq
    %v2258 = vshrl.u32 %v2257, 7
    %v2259 = vsub.s32 %v2256, %v2258
    %v2260 = vrot.slane %v2244, %v2259
    %v2262 = vunpack.c.l.s4 1966171168
    %v2263 = vunpack.c.0.s8 %v2262
    %v2264 = vlaneseq
    %v2265 = vshrl.u32 %v2264, 7
    %v2266 = vsub.s32 %v2263, %v2265
    %v2267 = vrot.slane %v2245, %v2266
    %v2269 = vunpack.c.l.s4 1966171168
    %v2270 = vunpack.c.0.s8 %v2269
    %v2271 = vlaneseq
    %v2272 = vshrl.u32 %v2271, 7
    %v2273 = vsub.s32 %v2270, %v2272
    %v2274 = vrot.slane %v2246, %v2273
    %v2275 = vcombine.high %v2253, %v2253
    %v2276 = vcombine.high %v2260, %v2260
    %v2277 = vcombine.high %v2267, %v2267
    %v2278 = vcombine.high %v2274, %v2274
    %v2279 = vcombine.high %v2023, %v2023
    %v2281 = vunpack.c.l.s4 1966171168
    %v2282 = vunpack.c.0.s8 %v2281
    %v2283 = vlaneseq
    %v2284 = vshrl.u32 %v2283, 7
    %v2285 = vsub.s32 %v2282, %v2284
    %v2286 = vrot.slane %v2023, %v2285
    %v2288 = vunpack.c.l.s4 1966171168
    %v2289 = vunpack.c.0.s8 %v2288
    %v2290 = vlaneseq
    %v2291 = vshrl.u32 %v2290, 7
    %v2292 = vsub.s32 %v2289, %v2291
    %v2293 = vrot.slane %v2279, %v2292
    %v2294 = vcombine.high %v2286, %v2286
    %v2295 = vcombine.high %v2293, %v2293
    %v2297 = vunpack.c.l.s4 1966171168
    %v2298 = vunpack.c.0.s8 %v2297
    %v2299 = vlaneseq
    %v2300 = vshrl.u32 %v2299, 7
    %v2301 = vsub.s32 %v2298, %v2300
    %v2302 = vrot.slane %v2286, %v2301
    %v2304 = vunpack.c.l.s4 1966171168
    %v2305 = vunpack.c.0.s8 %v2304
    %v2306 = vlaneseq
    %v2307 = vshrl.u32 %v2306, 7
    %v2308 = vsub.s32 %v2305, %v2307
    %v2309 = vrot.slane %v2293, %v2308
    %v2311 = vunpack.c.l.s4 1966171168
    %v2312 = vunpack.c.0.s8 %v2311
    %v2313 = vlaneseq
    %v2314 = vshrl.u32 %v2313, 7
    %v2315 = vsub.s32 %v2312, %v2314
    %v2316 = vrot.slane %v2294, %v2315
    %v2318 = vunpack.c.l.s4 1966171168
    %v2319 = vunpack.c.0.s8 %v2318
    %v2320 = vlaneseq
    %v2321 = vshrl.u32 %v2320, 7
    %v2322 = vsub.s32 %v2319, %v2321
    %v2323 = vrot.slane %v2295, %v2322
    %v2324 = vcombine.high %v2302, %v2302
    %v2325 = vcombine.high %v2309, %v2309
    %v2326 = vcombine.high %v2316, %v2316
    %v2327 = vcombine.high %v2323, %v2323
    %v2328 = vcombine.high %v2024, %v2024
    %v2330 = vunpack.c.l.s4 1966171168
    %v2331 = vunpack.c.0.s8 %v2330
    %v2332 = vlaneseq
    %v2333 = vshrl.u32 %v2332, 7
    %v2334 = vsub.s32 %v2331, %v2333
    %v2335 = vrot.slane %v2024, %v2334
    %v2337 = vunpack.c.l.s4 1966171168
    %v2338 = vunpack.c.0.s8 %v2337
    %v2339 = vlaneseq
    %v2340 = vshrl.u32 %v2339, 7
    %v2341 = vsub.s32 %v2338, %v2340
    %v2342 = vrot.slane %v2328, %v2341
    %v2343 = vcombine.high %v2335, %v2335
    %v2344 = vcombine.high %v2342, %v2342
    %v2346 = vunpack.c.l.s4 1966171168
    %v2347 = vunpack.c.0.s8 %v2346
    %v2348 = vlaneseq
    %v2349 = vshrl.u32 %v2348, 7
    %v2350 = vsub.s32 %v2347, %v2349
    %v2351 = vrot.slane %v2335, %v2350
    %v2353 = vunpack.c.l.s4 1966171168
    %v2354 = vunpack.c.0.s8 %v2353
    %v2355 = vlaneseq
    %v2356 = vshrl.u32 %v2355, 7
    %v2357 = vsub.s32 %v2354, %v2356
    %v2358 = vrot.slane %v2342, %v2357
    %v2360 = vunpack.c.l.s4 1966171168
    %v2361 = vunpack.c.0.s8 %v2360
    %v2362 = vlaneseq
    %v2363 = vshrl.u32 %v2362, 7
    %v2364 = vsub.s32 %v2361, %v2363
    %v2365 = vrot.slane %v2343, %v2364
    %v2367 = vunpack.c.l.s4 1966171168
    %v2368 = vunpack.c.0.s8 %v2367
    %v2369 = vlaneseq
    %v2370 = vshrl.u32 %v2369, 7
    %v2371 = vsub.s32 %v2368, %v2370
    %v2372 = vrot.slane %v2344, %v2371
    %v2373 = vcombine.high %v2351, %v2351
    %v2374 = vcombine.high %v2358, %v2358
    %v2375 = vcombine.high %v2365, %v2365
    %v2376 = vcombine.high %v2372, %v2372
    %v2377 = vcombine.high %v2025, %v2025
    %v2379 = vunpack.c.l.s4 1966171168
    %v2380 = vunpack.c.0.s8 %v2379
    %v2381 = vlaneseq
    %v2382 = vshrl.u32 %v2381, 7
    %v2383 = vsub.s32 %v2380, %v2382
    %v2384 = vrot.slane %v2025, %v2383
    %v2386 = vunpack.c.l.s4 1966171168
    %v2387 = vunpack.c.0.s8 %v2386
    %v2388 = vlaneseq
    %v2389 = vshrl.u32 %v2388, 7
    %v2390 = vsub.s32 %v2387, %v2389
    %v2391 = vrot.slane %v2377, %v2390
    %v2392 = vcombine.high %v2384, %v2384
    %v2393 = vcombine.high %v2391, %v2391
    %v2395 = vunpack.c.l.s4 1966171168
    %v2396 = vunpack.c.0.s8 %v2395
    %v2397 = vlaneseq
    %v2398 = vshrl.u32 %v2397, 7
    %v2399 = vsub.s32 %v2396, %v2398
    %v2400 = vrot.slane %v2384, %v2399
    %v2402 = vunpack.c.l.s4 1966171168
    %v2403 = vunpack.c.0.s8 %v2402
    %v2404 = vlaneseq
    %v2405 = vshrl.u32 %v2404, 7
    %v2406 = vsub.s32 %v2403, %v2405
    %v2407 = vrot.slane %v2391, %v2406
    %v2409 = vunpack.c.l.s4 1966171168
    %v2410 = vunpack.c.0.s8 %v2409
    %v2411 = vlaneseq
    %v2412 = vshrl.u32 %v2411, 7
    %v2413 = vsub.s32 %v2410, %v2412
    %v2414 = vrot.slane %v2392, %v2413
    %v2416 = vunpack.c.l.s4 1966171168
    %v2417 = vunpack.c.0.s8 %v2416
    %v2418 = vlaneseq
    %v2419 = vshrl.u32 %v2418, 7
    %v2420 = vsub.s32 %v2417, %v2419
    %v2421 = vrot.slane %v2393, %v2420
    %v2422 = vcombine.high %v2400, %v2400
    %v2423 = vcombine.high %v2407, %v2407
    %v2424 = vcombine.high %v2414, %v2414
    %v2425 = vcombine.high %v2421, %v2421
    %v2426 = vcombine.high %v2026, %v2026
    %v2428 = vunpack.c.l.s4 1966171168
    %v2429 = vunpack.c.0.s8 %v2428
    %v2430 = vlaneseq
    %v2431 = vshrl.u32 %v2430, 7
    %v2432 = vsub.s32 %v2429, %v2431
    %v2433 = vrot.slane %v2026, %v2432
    %v2435 = vunpack.c.l.s4 1966171168
    %v2436 = vunpack.c.0.s8 %v2435
    %v2437 = vlaneseq
    %v2438 = vshrl.u32 %v2437, 7
    %v2439 = vsub.s32 %v2436, %v2438
    %v2440 = vrot.slane %v2426, %v2439
    %v2441 = vcombine.high %v2433, %v2433
    %v2442 = vcombine.high %v2440, %v2440
    %v2444 = vunpack.c.l.s4 1966171168
    %v2445 = vunpack.c.0.s8 %v2444
    %v2446 = vlaneseq
    %v2447 = vshrl.u32 %v2446, 7
    %v2448 = vsub.s32 %v2445, %v2447
    %v2449 = vrot.slane %v2433, %v2448
    %v2451 = vunpack.c.l.s4 1966171168
    %v2452 = vunpack.c.0.s8 %v2451
    %v2453 = vlaneseq
    %v2454 = vshrl.u32 %v2453, 7
    %v2455 = vsub.s32 %v2452, %v2454
    %v2456 = vrot.slane %v2440, %v2455
    %v2458 = vunpack.c.l.s4 1966171168
    %v2459 = vunpack.c.0.s8 %v2458
    %v2460 = vlaneseq
    %v2461 = vshrl.u32 %v2460, 7
    %v2462 = vsub.s32 %v2459, %v2461
    %v2463 = vrot.slane %v2441, %v2462
    %v2465 = vunpack.c.l.s4 1966171168
    %v2466 = vunpack.c.0.s8 %v2465
    %v2467 = vlaneseq
    %v2468 = vshrl.u32 %v2467, 7
    %v2469 = vsub.s32 %v2466, %v2468
    %v2470 = vrot.slane %v2442, %v2469
    %v2471 = vcombine.high %v2449, %v2449
    %v2472 = vcombine.high %v2456, %v2456
    %v2473 = vcombine.high %v2463, %v2463
    %v2474 = vcombine.high %v2470, %v2470
    %v2475 = vcombine.high %v2027, %v2027
    %v2477 = vunpack.c.l.s4 1966171168
    %v2478 = vunpack.c.0.s8 %v2477
    %v2479 = vlaneseq
    %v2480 = vshrl.u32 %v2479, 7
    %v2481 = vsub.s32 %v2478, %v2480
    %v2482 = vrot.slane %v2027, %v2481
    %v2484 = vunpack.c.l.s4 1966171168
    %v2485 = vunpack.c.0.s8 %v2484
    %v2486 = vlaneseq
    %v2487 = vshrl.u32 %v2486, 7
    %v2488 = vsub.s32 %v2485, %v2487
    %v2489 = vrot.slane %v2475, %v2488
    %v2490 = vcombine.high %v2482, %v2482
    %v2491 = vcombine.high %v2489, %v2489
    %v2493 = vunpack.c.l.s4 1966171168
    %v2494 = vunpack.c.0.s8 %v2493
    %v2495 = vlaneseq
    %v2496 = vshrl.u32 %v2495, 7
    %v2497 = vsub.s32 %v2494, %v2496
    %v2498 = vrot.slane %v2482, %v2497
    %v2500 = vunpack.c.l.s4 1966171168
    %v2501 = vunpack.c.0.s8 %v2500
    %v2502 = vlaneseq
    %v2503 = vshrl.u32 %v2502, 7
    %v2504 = vsub.s32 %v2501, %v2503
    %v2505 = vrot.slane %v2489, %v2504
    %v2507 = vunpack.c.l.s4 1966171168
    %v2508 = vunpack.c.0.s8 %v2507
    %v2509 = vlaneseq
    %v2510 = vshrl.u32 %v2509, 7
    %v2511 = vsub.s32 %v2508, %v2510
    %v2512 = vrot.slane %v2490, %v2511
    %v2514 = vunpack.c.l.s4 1966171168
    %v2515 = vunpack.c.0.s8 %v2514
    %v2516 = vlaneseq
    %v2517 = vshrl.u32 %v2516, 7
    %v2518 = vsub.s32 %v2515, %v2517
    %v2519 = vrot.slane %v2491, %v2518
    %v2520 = vcombine.high %v2498, %v2498
    %v2521 = vcombine.high %v2505, %v2505
    %v2522 = vcombine.high %v2512, %v2512
    %v2523 = vcombine.high %v2519, %v2519
    %v2524 = vcombine.high %v2028, %v2028
    %v2526 = vunpack.c.l.s4 1966171168
    %v2527 = vunpack.c.0.s8 %v2526
    %v2528 = vlaneseq
    %v2529 = vshrl.u32 %v2528, 7
    %v2530 = vsub.s32 %v2527, %v2529
    %v2531 = vrot.slane %v2028, %v2530
    %v2533 = vunpack.c.l.s4 1966171168
    %v2534 = vunpack.c.0.s8 %v2533
    %v2535 = vlaneseq
    %v2536 = vshrl.u32 %v2535, 7
    %v2537 = vsub.s32 %v2534, %v2536
    %v2538 = vrot.slane %v2524, %v2537
    %v2539 = vcombine.high %v2531, %v2531
    %v2540 = vcombine.high %v2538, %v2538
    %v2542 = vunpack.c.l.s4 1966171168
    %v2543 = vunpack.c.0.s8 %v2542
    %v2544 = vlaneseq
    %v2545 = vshrl.u32 %v2544, 7
    %v2546 = vsub.s32 %v2543, %v2545
    %v2547 = vrot.slane %v2531, %v2546
    %v2549 = vunpack.c.l.s4 1966171168
    %v2550 = vunpack.c.0.s8 %v2549
    %v2551 = vlaneseq
    %v2552 = vshrl.u32 %v2551, 7
    %v2553 = vsub.s32 %v2550, %v2552
    %v2554 = vrot.slane %v2538, %v2553
    %v2556 = vunpack.c.l.s4 1966171168
    %v2557 = vunpack.c.0.s8 %v2556
    %v2558 = vlaneseq
    %v2559 = vshrl.u32 %v2558, 7
    %v2560 = vsub.s32 %v2557, %v2559
    %v2561 = vrot.slane %v2539, %v2560
    %v2563 = vunpack.c.l.s4 1966171168
    %v2564 = vunpack.c.0.s8 %v2563
    %v2565 = vlaneseq
    %v2566 = vshrl.u32 %v2565, 7
    %v2567 = vsub.s32 %v2564, %v2566
    %v2568 = vrot.slane %v2540, %v2567
    %v2569 = vcombine.high %v2547, %v2547
    %v2570 = vcombine.high %v2554, %v2554
    %v2571 = vcombine.high %v2561, %v2561
    %v2572 = vcombine.high %v2568, %v2568
    %v2573 = vcombine.high %v2029, %v2029
    %v2575 = vunpack.c.l.s4 1966171168
    %v2576 = vunpack.c.0.s8 %v2575
    %v2577 = vlaneseq
    %v2578 = vshrl.u32 %v2577, 7
    %v2579 = vsub.s32 %v2576, %v2578
    %v2580 = vrot.slane %v2029, %v2579
    %v2582 = vunpack.c.l.s4 1966171168
    %v2583 = vunpack.c.0.s8 %v2582
    %v2584 = vlaneseq
    %v2585 = vshrl.u32 %v2584, 7
    %v2586 = vsub.s32 %v2583, %v2585
    %v2587 = vrot.slane %v2573, %v2586
    %v2588 = vcombine.high %v2580, %v2580
    %v2589 = vcombine.high %v2587, %v2587
    %v2591 = vunpack.c.l.s4 1966171168
    %v2592 = vunpack.c.0.s8 %v2591
    %v2593 = vlaneseq
    %v2594 = vshrl.u32 %v2593, 7
    %v2595 = vsub.s32 %v2592, %v2594
    %v2596 = vrot.slane %v2580, %v2595
    %v2598 = vunpack.c.l.s4 1966171168
    %v2599 = vunpack.c.0.s8 %v2598
    %v2600 = vlaneseq
    %v2601 = vshrl.u32 %v2600, 7
    %v2602 = vsub.s32 %v2599, %v2601
    %v2603 = vrot.slane %v2587, %v2602
    %v2605 = vunpack.c.l.s4 1966171168
    %v2606 = vunpack.c.0.s8 %v2605
    %v2607 = vlaneseq
    %v2608 = vshrl.u32 %v2607, 7
    %v2609 = vsub.s32 %v2606, %v2608
    %v2610 = vrot.slane %v2588, %v2609
    %v2612 = vunpack.c.l.s4 1966171168
    %v2613 = vunpack.c.0.s8 %v2612
    %v2614 = vlaneseq
    %v2615 = vshrl.u32 %v2614, 7
    %v2616 = vsub.s32 %v2613, %v2615
    %v2617 = vrot.slane %v2589, %v2616
    %v2618 = vcombine.high %v2596, %v2596
    %v2619 = vcombine.high %v2603, %v2603
    %v2620 = vcombine.high %v2610, %v2610
    %v2621 = vcombine.high %v2617, %v2617
    %v2622 = vcombine.high %v2030, %v2030
    %v2624 = vunpack.c.l.s4 1966171168
    %v2625 = vunpack.c.0.s8 %v2624
    %v2626 = vlaneseq
    %v2627 = vshrl.u32 %v2626, 7
    %v2628 = vsub.s32 %v2625, %v2627
    %v2629 = vrot.slane %v2030, %v2628
    %v2631 = vunpack.c.l.s4 1966171168
    %v2632 = vunpack.c.0.s8 %v2631
    %v2633 = vlaneseq
    %v2634 = vshrl.u32 %v2633, 7
    %v2635 = vsub.s32 %v2632, %v2634
    %v2636 = vrot.slane %v2622, %v2635
    %v2637 = vcombine.high %v2629, %v2629
    %v2638 = vcombine.high %v2636, %v2636
    %v2640 = vunpack.c.l.s4 1966171168
    %v2641 = vunpack.c.0.s8 %v2640
    %v2642 = vlaneseq
    %v2643 = vshrl.u32 %v2642, 7
    %v2644 = vsub.s32 %v2641, %v2643
    %v2645 = vrot.slane %v2629, %v2644
    %v2647 = vunpack.c.l.s4 1966171168
    %v2648 = vunpack.c.0.s8 %v2647
    %v2649 = vlaneseq
    %v2650 = vshrl.u32 %v2649, 7
    %v2651 = vsub.s32 %v2648, %v2650
    %v2652 = vrot.slane %v2636, %v2651
    %v2654 = vunpack.c.l.s4 1966171168
    %v2655 = vunpack.c.0.s8 %v2654
    %v2656 = vlaneseq
    %v2657 = vshrl.u32 %v2656, 7
    %v2658 = vsub.s32 %v2655, %v2657
    %v2659 = vrot.slane %v2637, %v2658
    %v2661 = vunpack.c.l.s4 1966171168
    %v2662 = vunpack.c.0.s8 %v2661
    %v2663 = vlaneseq
    %v2664 = vshrl.u32 %v2663, 7
    %v2665 = vsub.s32 %v2662, %v2664
    %v2666 = vrot.slane %v2638, %v2665
    %v2667 = vcombine.high %v2645, %v2645
    %v2668 = vcombine.high %v2652, %v2652
    %v2669 = vcombine.high %v2659, %v2659
    %v2670 = vcombine.high %v2666, %v2666
    %v2671 = vcombine.high %v2031, %v2031
    %v2673 = vunpack.c.l.s4 1966171168
    %v2674 = vunpack.c.0.s8 %v2673
    %v2675 = vlaneseq
    %v2676 = vshrl.u32 %v2675, 7
    %v2677 = vsub.s32 %v2674, %v2676
    %v2678 = vrot.slane %v2031, %v2677
    %v2680 = vunpack.c.l.s4 1966171168
    %v2681 = vunpack.c.0.s8 %v2680
    %v2682 = vlaneseq
    %v2683 = vshrl.u32 %v2682, 7
    %v2684 = vsub.s32 %v2681, %v2683
    %v2685 = vrot.slane %v2671, %v2684
    %v2686 = vcombine.high %v2678, %v2678
    %v2687 = vcombine.high %v2685, %v2685
    %v2689 = vunpack.c.l.s4 1966171168
    %v2690 = vunpack.c.0.s8 %v2689
    %v2691 = vlaneseq
    %v2692 = vshrl.u32 %v2691, 7
    %v2693 = vsub.s32 %v2690, %v2692
    %v2694 = vrot.slane %v2678, %v2693
    %v2696 = vunpack.c.l.s4 1966171168
    %v2697 = vunpack.c.0.s8 %v2696
    %v2698 = vlaneseq
    %v2699 = vshrl.u32 %v2698, 7
    %v2700 = vsub.s32 %v2697, %v2699
    %v2701 = vrot.slane %v2685, %v2700
    %v2703 = vunpack.c.l.s4 1966171168
    %v2704 = vunpack.c.0.s8 %v2703
    %v2705 = vlaneseq
    %v2706 = vshrl.u32 %v2705, 7
    %v2707 = vsub.s32 %v2704, %v2706
    %v2708 = vrot.slane %v2686, %v2707
    %v2710 = vunpack.c.l.s4 1966171168
    %v2711 = vunpack.c.0.s8 %v2710
    %v2712 = vlaneseq
    %v2713 = vshrl.u32 %v2712, 7
    %v2714 = vsub.s32 %v2711, %v2713
    %v2715 = vrot.slane %v2687, %v2714
    %v2716 = vcombine.high %v2694, %v2694
    %v2717 = vcombine.high %v2701, %v2701
    %v2718 = vcombine.high %v2708, %v2708
    %v2719 = vcombine.high %v2715, %v2715
    %v2720 = vcombine.high %v2032, %v2032
    %v2722 = vunpack.c.l.s4 1966171168
    %v2723 = vunpack.c.0.s8 %v2722
    %v2724 = vlaneseq
    %v2725 = vshrl.u32 %v2724, 7
    %v2726 = vsub.s32 %v2723, %v2725
    %v2727 = vrot.slane %v2032, %v2726
    %v2729 = vunpack.c.l.s4 1966171168
    %v2730 = vunpack.c.0.s8 %v2729
    %v2731 = vlaneseq
    %v2732 = vshrl.u32 %v2731, 7
    %v2733 = vsub.s32 %v2730, %v2732
    %v2734 = vrot.slane %v2720, %v2733
    %v2735 = vcombine.high %v2727, %v2727
    %v2736 = vcombine.high %v2734, %v2734
    %v2738 = vunpack.c.l.s4 1966171168
    %v2739 = vunpack.c.0.s8 %v2738
    %v2740 = vlaneseq
    %v2741 = vshrl.u32 %v2740, 7
    %v2742 = vsub.s32 %v2739, %v2741
    %v2743 = vrot.slane %v2727, %v2742
    %v2745 = vunpack.c.l.s4 1966171168
    %v2746 = vunpack.c.0.s8 %v2745
    %v2747 = vlaneseq
    %v2748 = vshrl.u32 %v2747, 7
    %v2749 = vsub.s32 %v2746, %v2748
    %v2750 = vrot.slane %v2734, %v2749
    %v2752 = vunpack.c.l.s4 1966171168
    %v2753 = vunpack.c.0.s8 %v2752
    %v2754 = vlaneseq
    %v2755 = vshrl.u32 %v2754, 7
    %v2756 = vsub.s32 %v2753, %v2755
    %v2757 = vrot.slane %v2735, %v2756
    %v2759 = vunpack.c.l.s4 1966171168
    %v2760 = vunpack.c.0.s8 %v2759
    %v2761 = vlaneseq
    %v2762 = vshrl.u32 %v2761, 7
    %v2763 = vsub.s32 %v2760, %v2762
    %v2764 = vrot.slane %v2736, %v2763
    %v2765 = vcombine.high %v2743, %v2743
    %v2766 = vcombine.high %v2750, %v2750
    %v2767 = vcombine.high %v2757, %v2757
    %v2768 = vcombine.high %v2764, %v2764
    %v2769 = vcombine.high %v2033, %v2033
    %v2771 = vunpack.c.l.s4 1966171168
    %v2772 = vunpack.c.0.s8 %v2771
    %v2773 = vlaneseq
    %v2774 = vshrl.u32 %v2773, 7
    %v2775 = vsub.s32 %v2772, %v2774
    %v2776 = vrot.slane %v2033, %v2775
    %v2778 = vunpack.c.l.s4 1966171168
    %v2779 = vunpack.c.0.s8 %v2778
    %v2780 = vlaneseq
    %v2781 = vshrl.u32 %v2780, 7
    %v2782 = vsub.s32 %v2779, %v2781
    %v2783 = vrot.slane %v2769, %v2782
    %v2784 = vcombine.high %v2776, %v2776
    %v2785 = vcombine.high %v2783, %v2783
    %v2787 = vunpack.c.l.s4 1966171168
    %v2788 = vunpack.c.0.s8 %v2787
    %v2789 = vlaneseq
    %v2790 = vshrl.u32 %v2789, 7
    %v2791 = vsub.s32 %v2788, %v2790
    %v2792 = vrot.slane %v2776, %v2791
    %v2794 = vunpack.c.l.s4 1966171168
    %v2795 = vunpack.c.0.s8 %v2794
    %v2796 = vlaneseq
    %v2797 = vshrl.u32 %v2796, 7
    %v2798 = vsub.s32 %v2795, %v2797
    %v2799 = vrot.slane %v2783, %v2798
    %v2801 = vunpack.c.l.s4 1966171168
    %v2802 = vunpack.c.0.s8 %v2801
    %v2803 = vlaneseq
    %v2804 = vshrl.u32 %v2803, 7
    %v2805 = vsub.s32 %v2802, %v2804
    %v2806 = vrot.slane %v2784, %v2805
    %v2808 = vunpack.c.l.s4 1966171168
    %v2809 = vunpack.c.0.s8 %v2808
    %v2810 = vlaneseq
    %v2811 = vshrl.u32 %v2810, 7
    %v2812 = vsub.s32 %v2809, %v2811
    %v2813 = vrot.slane %v2785, %v2812
    %v2814 = vcombine.high %v2792, %v2792
    %v2815 = vcombine.high %v2799, %v2799
    %v2816 = vcombine.high %v2806, %v2806
    %v2817 = vcombine.high %v2813, %v2813
    %v2818 = vcombine.high %v2034, %v2034
    %v2820 = vunpack.c.l.s4 1966171168
    %v2821 = vunpack.c.0.s8 %v2820
    %v2822 = vlaneseq
    %v2823 = vshrl.u32 %v2822, 7
    %v2824 = vsub.s32 %v2821, %v2823
    %v2825 = vrot.slane %v2034, %v2824
    %v2827 = vunpack.c.l.s4 1966171168
    %v2828 = vunpack.c.0.s8 %v2827
    %v2829 = vlaneseq
    %v2830 = vshrl.u32 %v2829, 7
    %v2831 = vsub.s32 %v2828, %v2830
    %v2832 = vrot.slane %v2818, %v2831
    %v2833 = vcombine.high %v2825, %v2825
    %v2834 = vcombine.high %v2832, %v2832
    %v2836 = vunpack.c.l.s4 1966171168
    %v2837 = vunpack.c.0.s8 %v2836
    %v2838 = vlaneseq
    %v2839 = vshrl.u32 %v2838, 7
    %v2840 = vsub.s32 %v2837, %v2839
    %v2841 = vrot.slane %v2825, %v2840
    %v2843 = vunpack.c.l.s4 1966171168
    %v2844 = vunpack.c.0.s8 %v2843
    %v2845 = vlaneseq
    %v2846 = vshrl.u32 %v2845, 7
    %v2847 = vsub.s32 %v2844, %v2846
    %v2848 = vrot.slane %v2832, %v2847
    %v2850 = vunpack.c.l.s4 1966171168
    %v2851 = vunpack.c.0.s8 %v2850
    %v2852 = vlaneseq
    %v2853 = vshrl.u32 %v2852, 7
    %v2854 = vsub.s32 %v2851, %v2853
    %v2855 = vrot.slane %v2833, %v2854
    %v2857 = vunpack.c.l.s4 1966171168
    %v2858 = vunpack.c.0.s8 %v2857
    %v2859 = vlaneseq
    %v2860 = vshrl.u32 %v2859, 7
    %v2861 = vsub.s32 %v2858, %v2860
    %v2862 = vrot.slane %v2834, %v2861
    %v2863 = vcombine.high %v2841, %v2841
    %v2864 = vcombine.high %v2848, %v2848
    %v2865 = vcombine.high %v2855, %v2855
    %v2866 = vcombine.high %v2862, %v2862
    %v2867 = vcombine.high %v2035, %v2035
    %v2869 = vunpack.c.l.s4 1966171168
    %v2870 = vunpack.c.0.s8 %v2869
    %v2871 = vlaneseq
    %v2872 = vshrl.u32 %v2871, 7
    %v2873 = vsub.s32 %v2870, %v2872
    %v2874 = vrot.slane %v2035, %v2873
    %v2876 = vunpack.c.l.s4 1966171168
    %v2877 = vunpack.c.0.s8 %v2876
    %v2878 = vlaneseq
    %v2879 = vshrl.u32 %v2878, 7
    %v2880 = vsub.s32 %v2877, %v2879
    %v2881 = vrot.slane %v2867, %v2880
    %v2882 = vcombine.high %v2874, %v2874
    %v2883 = vcombine.high %v2881, %v2881
    %v2885 = vunpack.c.l.s4 1966171168
    %v2886 = vunpack.c.0.s8 %v2885
    %v2887 = vlaneseq
    %v2888 = vshrl.u32 %v2887, 7
    %v2889 = vsub.s32 %v2886, %v2888
    %v2890 = vrot.slane %v2874, %v2889
    %v2892 = vunpack.c.l.s4 1966171168
    %v2893 = vunpack.c.0.s8 %v2892
    %v2894 = vlaneseq
    %v2895 = vshrl.u32 %v2894, 7
    %v2896 = vsub.s32 %v2893, %v2895
    %v2897 = vrot.slane %v2881, %v2896
    %v2899 = vunpack.c.l.s4 1966171168
    %v2900 = vunpack.c.0.s8 %v2899
    %v2901 = vlaneseq
    %v2902 = vshrl.u32 %v2901, 7
    %v2903 = vsub.s32 %v2900, %v2902
    %v2904 = vrot.slane %v2882, %v2903
    %v2906 = vunpack.c.l.s4 1966171168
    %v2907 = vunpack.c.0.s8 %v2906
    %v2908 = vlaneseq
    %v2909 = vshrl.u32 %v2908, 7
    %v2910 = vsub.s32 %v2907, %v2909
    %v2911 = vrot.slane %v2883, %v2910
    %v2912 = vcombine.high %v2890, %v2890
    %v2913 = vcombine.high %v2897, %v2897
    %v2914 = vcombine.high %v2904, %v2904
    %v2915 = vcombine.high %v2911, %v2911
    %v2916 = vcombine.high %v2036, %v2036
    %v2918 = vunpack.c.l.s4 1966171168
    %v2919 = vunpack.c.0.s8 %v2918
    %v2920 = vlaneseq
    %v2921 = vshrl.u32 %v2920, 7
    %v2922 = vsub.s32 %v2919, %v2921
    %v2923 = vrot.slane %v2036, %v2922
    %v2925 = vunpack.c.l.s4 1966171168
    %v2926 = vunpack.c.0.s8 %v2925
    %v2927 = vlaneseq
    %v2928 = vshrl.u32 %v2927, 7
    %v2929 = vsub.s32 %v2926, %v2928
    %v2930 = vrot.slane %v2916, %v2929
    %v2931 = vcombine.high %v2923, %v2923
    %v2932 = vcombine.high %v2930, %v2930
    %v2934 = vunpack.c.l.s4 1966171168
    %v2935 = vunpack.c.0.s8 %v2934
    %v2936 = vlaneseq
    %v2937 = vshrl.u32 %v2936, 7
    %v2938 = vsub.s32 %v2935, %v2937
    %v2939 = vrot.slane %v2923, %v2938
    %v2941 = vunpack.c.l.s4 1966171168
    %v2942 = vunpack.c.0.s8 %v2941
    %v2943 = vlaneseq
    %v2944 = vshrl.u32 %v2943, 7
    %v2945 = vsub.s32 %v2942, %v2944
    %v2946 = vrot.slane %v2930, %v2945
    %v2948 = vunpack.c.l.s4 1966171168
    %v2949 = vunpack.c.0.s8 %v2948
    %v2950 = vlaneseq
    %v2951 = vshrl.u32 %v2950, 7
    %v2952 = vsub.s32 %v2949, %v2951
    %v2953 = vrot.slane %v2931, %v2952
    %v2955 = vunpack.c.l.s4 1966171168
    %v2956 = vunpack.c.0.s8 %v2955
    %v2957 = vlaneseq
    %v2958 = vshrl.u32 %v2957, 7
    %v2959 = vsub.s32 %v2956, %v2958
    %v2960 = vrot.slane %v2932, %v2959
    %v2961 = vcombine.high %v2939, %v2939
    %v2962 = vcombine.high %v2946, %v2946
    %v2963 = vcombine.high %v2953, %v2953
    %v2964 = vcombine.high %v2960, %v2960
    %v2965 = vcombine.high %v2037, %v2037
    %v2967 = vunpack.c.l.s4 1966171168
    %v2968 = vunpack.c.0.s8 %v2967
    %v2969 = vlaneseq
    %v2970 = vshrl.u32 %v2969, 7
    %v2971 = vsub.s32 %v2968, %v2970
    %v2972 = vrot.slane %v2037, %v2971
    %v2974 = vunpack.c.l.s4 1966171168
    %v2975 = vunpack.c.0.s8 %v2974
    %v2976 = vlaneseq
    %v2977 = vshrl.u32 %v2976, 7
    %v2978 = vsub.s32 %v2975, %v2977
    %v2979 = vrot.slane %v2965, %v2978
    %v2980 = vcombine.high %v2972, %v2972
    %v2981 = vcombine.high %v2979, %v2979
    %v2983 = vunpack.c.l.s4 1966171168
    %v2984 = vunpack.c.0.s8 %v2983
    %v2985 = vlaneseq
    %v2986 = vshrl.u32 %v2985, 7
    %v2987 = vsub.s32 %v2984, %v2986
    %v2988 = vrot.slane %v2972, %v2987
    %v2990 = vunpack.c.l.s4 1966171168
    %v2991 = vunpack.c.0.s8 %v2990
    %v2992 = vlaneseq
    %v2993 = vshrl.u32 %v2992, 7
    %v2994 = vsub.s32 %v2991, %v2993
    %v2995 = vrot.slane %v2979, %v2994
    %v2997 = vunpack.c.l.s4 1966171168
    %v2998 = vunpack.c.0.s8 %v2997
    %v2999 = vlaneseq
    %v3000 = vshrl.u32 %v2999, 7
    %v3001 = vsub.s32 %v2998, %v3000
    %v3002 = vrot.slane %v2980, %v3001
    %v3004 = vunpack.c.l.s4 1966171168
    %v3005 = vunpack.c.0.s8 %v3004
    %v3006 = vlaneseq
    %v3007 = vshrl.u32 %v3006, 7
    %v3008 = vsub.s32 %v3005, %v3007
    %v3009 = vrot.slane %v2981, %v3008
    %v3010 = vcombine.high %v2988, %v2988
    %v3011 = vcombine.high %v2995, %v2995
    %v3012 = vcombine.high %v3002, %v3002
    %v3013 = vcombine.high %v3009, %v3009
    %v3014 = vcombine.high %v2038, %v2038
    %v3016 = vunpack.c.l.s4 1966171168
    %v3017 = vunpack.c.0.s8 %v3016
    %v3018 = vlaneseq
    %v3019 = vshrl.u32 %v3018, 7
    %v3020 = vsub.s32 %v3017, %v3019
    %v3021 = vrot.slane %v2038, %v3020
    %v3023 = vunpack.c.l.s4 1966171168
    %v3024 = vunpack.c.0.s8 %v3023
    %v3025 = vlaneseq
    %v3026 = vshrl.u32 %v3025, 7
    %v3027 = vsub.s32 %v3024, %v3026
    %v3028 = vrot.slane %v3014, %v3027
    %v3029 = vcombine.high %v3021, %v3021
    %v3030 = vcombine.high %v3028, %v3028
    %v3032 = vunpack.c.l.s4 1966171168
    %v3033 = vunpack.c.0.s8 %v3032
    %v3034 = vlaneseq
    %v3035 = vshrl.u32 %v3034, 7
    %v3036 = vsub.s32 %v3033, %v3035
    %v3037 = vrot.slane %v3021, %v3036
    %v3039 = vunpack.c.l.s4 1966171168
    %v3040 = vunpack.c.0.s8 %v3039
    %v3041 = vlaneseq
    %v3042 = vshrl.u32 %v3041, 7
    %v3043 = vsub.s32 %v3040, %v3042
    %v3044 = vrot.slane %v3028, %v3043
    %v3046 = vunpack.c.l.s4 1966171168
    %v3047 = vunpack.c.0.s8 %v3046
    %v3048 = vlaneseq
    %v3049 = vshrl.u32 %v3048, 7
    %v3050 = vsub.s32 %v3047, %v3049
    %v3051 = vrot.slane %v3029, %v3050
    %v3053 = vunpack.c.l.s4 1966171168
    %v3054 = vunpack.c.0.s8 %v3053
    %v3055 = vlaneseq
    %v3056 = vshrl.u32 %v3055, 7
    %v3057 = vsub.s32 %v3054, %v3056
    %v3058 = vrot.slane %v3030, %v3057
    %v3059 = vcombine.high %v3037, %v3037
    %v3060 = vcombine.high %v3044, %v3044
    %v3061 = vcombine.high %v3051, %v3051
    %v3062 = vcombine.high %v3058, %v3058
    %v3063 = vcombine.high %v2039, %v2039
    %v3065 = vunpack.c.l.s4 1966171168
    %v3066 = vunpack.c.0.s8 %v3065
    %v3067 = vlaneseq
    %v3068 = vshrl.u32 %v3067, 7
    %v3069 = vsub.s32 %v3066, %v3068
    %v3070 = vrot.slane %v2039, %v3069
    %v3072 = vunpack.c.l.s4 1966171168
    %v3073 = vunpack.c.0.s8 %v3072
    %v3074 = vlaneseq
    %v3075 = vshrl.u32 %v3074, 7
    %v3076 = vsub.s32 %v3073, %v3075
    %v3077 = vrot.slane %v3063, %v3076
    %v3078 = vcombine.high %v3070, %v3070
    %v3079 = vcombine.high %v3077, %v3077
    %v3081 = vunpack.c.l.s4 1966171168
    %v3082 = vunpack.c.0.s8 %v3081
    %v3083 = vlaneseq
    %v3084 = vshrl.u32 %v3083, 7
    %v3085 = vsub.s32 %v3082, %v3084
    %v3086 = vrot.slane %v3070, %v3085
    %v3088 = vunpack.c.l.s4 1966171168
    %v3089 = vunpack.c.0.s8 %v3088
    %v3090 = vlaneseq
    %v3091 = vshrl.u32 %v3090, 7
    %v3092 = vsub.s32 %v3089, %v3091
    %v3093 = vrot.slane %v3077, %v3092
    %v3095 = vunpack.c.l.s4 1966171168
    %v3096 = vunpack.c.0.s8 %v3095
    %v3097 = vlaneseq
    %v3098 = vshrl.u32 %v3097, 7
    %v3099 = vsub.s32 %v3096, %v3098
    %v3100 = vrot.slane %v3078, %v3099
    %v3102 = vunpack.c.l.s4 1966171168
    %v3103 = vunpack.c.0.s8 %v3102
    %v3104 = vlaneseq
    %v3105 = vshrl.u32 %v3104, 7
    %v3106 = vsub.s32 %v3103, %v3105
    %v3107 = vrot.slane %v3079, %v3106
    %v3108 = vcombine.high %v3086, %v3086
    %v3109 = vcombine.high %v3093, %v3093
    %v3110 = vcombine.high %v3100, %v3100
    %v3111 = vcombine.high %v3107, %v3107
    %v3112 = vcombine.high %v2040, %v2040
    %v3114 = vunpack.c.l.s4 1966171168
    %v3115 = vunpack.c.0.s8 %v3114
    %v3116 = vlaneseq
    %v3117 = vshrl.u32 %v3116, 7
    %v3118 = vsub.s32 %v3115, %v3117
    %v3119 = vrot.slane %v2040, %v3118
    %v3121 = vunpack.c.l.s4 1966171168
    %v3122 = vunpack.c.0.s8 %v3121
    %v3123 = vlaneseq
    %v3124 = vshrl.u32 %v3123, 7
    %v3125 = vsub.s32 %v3122, %v3124
    %v3126 = vrot.slane %v3112, %v3125
    %v3127 = vcombine.high %v3119, %v3119
    %v3128 = vcombine.high %v3126, %v3126
    %v3130 = vunpack.c.l.s4 1966171168
    %v3131 = vunpack.c.0.s8 %v3130
    %v3132 = vlaneseq
    %v3133 = vshrl.u32 %v3132, 7
    %v3134 = vsub.s32 %v3131, %v3133
    %v3135 = vrot.slane %v3119, %v3134
    %v3137 = vunpack.c.l.s4 1966171168
    %v3138 = vunpack.c.0.s8 %v3137
    %v3139 = vlaneseq
    %v3140 = vshrl.u32 %v3139, 7
    %v3141 = vsub.s32 %v3138, %v3140
    %v3142 = vrot.slane %v3126, %v3141
    %v3144 = vunpack.c.l.s4 1966171168
    %v3145 = vunpack.c.0.s8 %v3144
    %v3146 = vlaneseq
    %v3147 = vshrl.u32 %v3146, 7
    %v3148 = vsub.s32 %v3145, %v3147
    %v3149 = vrot.slane %v3127, %v3148
    %v3151 = vunpack.c.l.s4 1966171168
    %v3152 = vunpack.c.0.s8 %v3151
    %v3153 = vlaneseq
    %v3154 = vshrl.u32 %v3153, 7
    %v3155 = vsub.s32 %v3152, %v3154
    %v3156 = vrot.slane %v3128, %v3155
    %v3157 = vcombine.high %v3135, %v3135
    %v3158 = vcombine.high %v3142, %v3142
    %v3159 = vcombine.high %v3149, %v3149
    %v3160 = vcombine.high %v3156, %v3156
    %v3161 = vcombine.high %v2041, %v2041
    %v3163 = vunpack.c.l.s4 1966171168
    %v3164 = vunpack.c.0.s8 %v3163
    %v3165 = vlaneseq
    %v3166 = vshrl.u32 %v3165, 7
    %v3167 = vsub.s32 %v3164, %v3166
    %v3168 = vrot.slane %v2041, %v3167
    %v3170 = vunpack.c.l.s4 1966171168
    %v3171 = vunpack.c.0.s8 %v3170
    %v3172 = vlaneseq
    %v3173 = vshrl.u32 %v3172, 7
    %v3174 = vsub.s32 %v3171, %v3173
    %v3175 = vrot.slane %v3161, %v3174
    %v3176 = vcombine.high %v3168, %v3168
    %v3177 = vcombine.high %v3175, %v3175
    %v3179 = vunpack.c.l.s4 1966171168
    %v3180 = vunpack.c.0.s8 %v3179
    %v3181 = vlaneseq
    %v3182 = vshrl.u32 %v3181, 7
    %v3183 = vsub.s32 %v3180, %v3182
    %v3184 = vrot.slane %v3168, %v3183
    %v3186 = vunpack.c.l.s4 1966171168
    %v3187 = vunpack.c.0.s8 %v3186
    %v3188 = vlaneseq
    %v3189 = vshrl.u32 %v3188, 7
    %v3190 = vsub.s32 %v3187, %v3189
    %v3191 = vrot.slane %v3175, %v3190
    %v3193 = vunpack.c.l.s4 1966171168
    %v3194 = vunpack.c.0.s8 %v3193
    %v3195 = vlaneseq
    %v3196 = vshrl.u32 %v3195, 7
    %v3197 = vsub.s32 %v3194, %v3196
    %v3198 = vrot.slane %v3176, %v3197
    %v3200 = vunpack.c.l.s4 1966171168
    %v3201 = vunpack.c.0.s8 %v3200
    %v3202 = vlaneseq
    %v3203 = vshrl.u32 %v3202, 7
    %v3204 = vsub.s32 %v3201, %v3203
    %v3205 = vrot.slane %v3177, %v3204
    %v3206 = vcombine.high %v3184, %v3184
    %v3207 = vcombine.high %v3191, %v3191
    %v3208 = vcombine.high %v3198, %v3198
    %v3209 = vcombine.high %v3205, %v3205
    %v3210 = vcombine.high %v2042, %v2042
    %v3212 = vunpack.c.l.s4 1966171168
    %v3213 = vunpack.c.0.s8 %v3212
    %v3214 = vlaneseq
    %v3215 = vshrl.u32 %v3214, 7
    %v3216 = vsub.s32 %v3213, %v3215
    %v3217 = vrot.slane %v2042, %v3216
    %v3219 = vunpack.c.l.s4 1966171168
    %v3220 = vunpack.c.0.s8 %v3219
    %v3221 = vlaneseq
    %v3222 = vshrl.u32 %v3221, 7
    %v3223 = vsub.s32 %v3220, %v3222
    %v3224 = vrot.slane %v3210, %v3223
    %v3225 = vcombine.high %v3217, %v3217
    %v3226 = vcombine.high %v3224, %v3224
    %v3228 = vunpack.c.l.s4 1966171168
    %v3229 = vunpack.c.0.s8 %v3228
    %v3230 = vlaneseq
    %v3231 = vshrl.u32 %v3230, 7
    %v3232 = vsub.s32 %v3229, %v3231
    %v3233 = vrot.slane %v3217, %v3232
    %v3235 = vunpack.c.l.s4 1966171168
    %v3236 = vunpack.c.0.s8 %v3235
    %v3237 = vlaneseq
    %v3238 = vshrl.u32 %v3237, 7
    %v3239 = vsub.s32 %v3236, %v3238
    %v3240 = vrot.slane %v3224, %v3239
    %v3242 = vunpack.c.l.s4 1966171168
    %v3243 = vunpack.c.0.s8 %v3242
    %v3244 = vlaneseq
    %v3245 = vshrl.u32 %v3244, 7
    %v3246 = vsub.s32 %v3243, %v3245
    %v3247 = vrot.slane %v3225, %v3246
    %v3249 = vunpack.c.l.s4 1966171168
    %v3250 = vunpack.c.0.s8 %v3249
    %v3251 = vlaneseq
    %v3252 = vshrl.u32 %v3251, 7
    %v3253 = vsub.s32 %v3250, %v3252
    %v3254 = vrot.slane %v3226, %v3253
    %v3255 = vcombine.high %v3233, %v3233
    %v3256 = vcombine.high %v3240, %v3240
    %v3257 = vcombine.high %v3247, %v3247
    %v3258 = vcombine.high %v3254, %v3254
    %v3259 = vcombine.high %v2043, %v2043
    %v3261 = vunpack.c.l.s4 1966171168
    %v3262 = vunpack.c.0.s8 %v3261
    %v3263 = vlaneseq
    %v3264 = vshrl.u32 %v3263, 7
    %v3265 = vsub.s32 %v3262, %v3264
    %v3266 = vrot.slane %v2043, %v3265
    %v3268 = vunpack.c.l.s4 1966171168
    %v3269 = vunpack.c.0.s8 %v3268
    %v3270 = vlaneseq
    %v3271 = vshrl.u32 %v3270, 7
    %v3272 = vsub.s32 %v3269, %v3271
    %v3273 = vrot.slane %v3259, %v3272
    %v3274 = vcombine.high %v3266, %v3266
    %v3275 = vcombine.high %v3273, %v3273
    %v3277 = vunpack.c.l.s4 1966171168
    %v3278 = vunpack.c.0.s8 %v3277
    %v3279 = vlaneseq
    %v3280 = vshrl.u32 %v3279, 7
    %v3281 = vsub.s32 %v3278, %v3280
    %v3282 = vrot.slane %v3266, %v3281
    %v3284 = vunpack.c.l.s4 1966171168
    %v3285 = vunpack.c.0.s8 %v3284
    %v3286 = vlaneseq
    %v3287 = vshrl.u32 %v3286, 7
    %v3288 = vsub.s32 %v3285, %v3287
    %v3289 = vrot.slane %v3273, %v3288
    %v3291 = vunpack.c.l.s4 1966171168
    %v3292 = vunpack.c.0.s8 %v3291
    %v3293 = vlaneseq
    %v3294 = vshrl.u32 %v3293, 7
    %v3295 = vsub.s32 %v3292, %v3294
    %v3296 = vrot.slane %v3274, %v3295
    %v3298 = vunpack.c.l.s4 1966171168
    %v3299 = vunpack.c.0.s8 %v3298
    %v3300 = vlaneseq
    %v3301 = vshrl.u32 %v3300, 7
    %v3302 = vsub.s32 %v3299, %v3301
    %v3303 = vrot.slane %v3275, %v3302
    %v3304 = vcombine.high %v3282, %v3282
    %v3305 = vcombine.high %v3289, %v3289
    %v3306 = vcombine.high %v3296, %v3296
    %v3307 = vcombine.high %v3303, %v3303
    %v3308 = vcombine.high %v2044, %v2044
    %v3310 = vunpack.c.l.s4 1966171168
    %v3311 = vunpack.c.0.s8 %v3310
    %v3312 = vlaneseq
    %v3313 = vshrl.u32 %v3312, 7
    %v3314 = vsub.s32 %v3311, %v3313
    %v3315 = vrot.slane %v2044, %v3314
    %v3317 = vunpack.c.l.s4 1966171168
    %v3318 = vunpack.c.0.s8 %v3317
    %v3319 = vlaneseq
    %v3320 = vshrl.u32 %v3319, 7
    %v3321 = vsub.s32 %v3318, %v3320
    %v3322 = vrot.slane %v3308, %v3321
    %v3323 = vcombine.high %v3315, %v3315
    %v3324 = vcombine.high %v3322, %v3322
    %v3326 = vunpack.c.l.s4 1966171168
    %v3327 = vunpack.c.0.s8 %v3326
    %v3328 = vlaneseq
    %v3329 = vshrl.u32 %v3328, 7
    %v3330 = vsub.s32 %v3327, %v3329
    %v3331 = vrot.slane %v3315, %v3330
    %v3333 = vunpack.c.l.s4 1966171168
    %v3334 = vunpack.c.0.s8 %v3333
    %v3335 = vlaneseq
    %v3336 = vshrl.u32 %v3335, 7
    %v3337 = vsub.s32 %v3334, %v3336
    %v3338 = vrot.slane %v3322, %v3337
    %v3340 = vunpack.c.l.s4 1966171168
    %v3341 = vunpack.c.0.s8 %v3340
    %v3342 = vlaneseq
    %v3343 = vshrl.u32 %v3342, 7
    %v3344 = vsub.s32 %v3341, %v3343
    %v3345 = vrot.slane %v3323, %v3344
    %v3347 = vunpack.c.l.s4 1966171168
    %v3348 = vunpack.c.0.s8 %v3347
    %v3349 = vlaneseq
    %v3350 = vshrl.u32 %v3349, 7
    %v3351 = vsub.s32 %v3348, %v3350
    %v3352 = vrot.slane %v3324, %v3351
    %v3353 = vcombine.high %v3331, %v3331
    %v3354 = vcombine.high %v3338, %v3338
    %v3355 = vcombine.high %v3345, %v3345
    %v3356 = vcombine.high %v3352, %v3352
    %v3357 = vcombine.high %v2045, %v2045
    %v3359 = vunpack.c.l.s4 1966171168
    %v3360 = vunpack.c.0.s8 %v3359
    %v3361 = vlaneseq
    %v3362 = vshrl.u32 %v3361, 7
    %v3363 = vsub.s32 %v3360, %v3362
    %v3364 = vrot.slane %v2045, %v3363
    %v3366 = vunpack.c.l.s4 1966171168
    %v3367 = vunpack.c.0.s8 %v3366
    %v3368 = vlaneseq
    %v3369 = vshrl.u32 %v3368, 7
    %v3370 = vsub.s32 %v3367, %v3369
    %v3371 = vrot.slane %v3357, %v3370
    %v3372 = vcombine.high %v3364, %v3364
    %v3373 = vcombine.high %v3371, %v3371
    %v3375 = vunpack.c.l.s4 1966171168
    %v3376 = vunpack.c.0.s8 %v3375
    %v3377 = vlaneseq
    %v3378 = vshrl.u32 %v3377, 7
    %v3379 = vsub.s32 %v3376, %v3378
    %v3380 = vrot.slane %v3364, %v3379
    %v3382 = vunpack.c.l.s4 1966171168
    %v3383 = vunpack.c.0.s8 %v3382
    %v3384 = vlaneseq
    %v3385 = vshrl.u32 %v3384, 7
    %v3386 = vsub.s32 %v3383, %v3385
    %v3387 = vrot.slane %v3371, %v3386
    %v3389 = vunpack.c.l.s4 1966171168
    %v3390 = vunpack.c.0.s8 %v3389
    %v3391 = vlaneseq
    %v3392 = vshrl.u32 %v3391, 7
    %v3393 = vsub.s32 %v3390, %v3392
    %v3394 = vrot.slane %v3372, %v3393
    %v3396 = vunpack.c.l.s4 1966171168
    %v3397 = vunpack.c.0.s8 %v3396
    %v3398 = vlaneseq
    %v3399 = vshrl.u32 %v3398, 7
    %v3400 = vsub.s32 %v3397, %v3399
    %v3401 = vrot.slane %v3373, %v3400
    %v3402 = vcombine.high %v3380, %v3380
    %v3403 = vcombine.high %v3387, %v3387
    %v3404 = vcombine.high %v3394, %v3394
    %v3405 = vcombine.high %v3401, %v3401
    %v3406 = vcombine.high %v2046, %v2046
    %v3408 = vunpack.c.l.s4 1966171168
    %v3409 = vunpack.c.0.s8 %v3408
    %v3410 = vlaneseq
    %v3411 = vshrl.u32 %v3410, 7
    %v3412 = vsub.s32 %v3409, %v3411
    %v3413 = vrot.slane %v2046, %v3412
    %v3415 = vunpack.c.l.s4 1966171168
    %v3416 = vunpack.c.0.s8 %v3415
    %v3417 = vlaneseq
    %v3418 = vshrl.u32 %v3417, 7
    %v3419 = vsub.s32 %v3416, %v3418
    %v3420 = vrot.slane %v3406, %v3419
    %v3421 = vcombine.high %v3413, %v3413
    %v3422 = vcombine.high %v3420, %v3420
    %v3424 = vunpack.c.l.s4 1966171168
    %v3425 = vunpack.c.0.s8 %v3424
    %v3426 = vlaneseq
    %v3427 = vshrl.u32 %v3426, 7
    %v3428 = vsub.s32 %v3425, %v3427
    %v3429 = vrot.slane %v3413, %v3428
    %v3431 = vunpack.c.l.s4 1966171168
    %v3432 = vunpack.c.0.s8 %v3431
    %v3433 = vlaneseq
    %v3434 = vshrl.u32 %v3433, 7
    %v3435 = vsub.s32 %v3432, %v3434
    %v3436 = vrot.slane %v3420, %v3435
    %v3438 = vunpack.c.l.s4 1966171168
    %v3439 = vunpack.c.0.s8 %v3438
    %v3440 = vlaneseq
    %v3441 = vshrl.u32 %v3440, 7
    %v3442 = vsub.s32 %v3439, %v3441
    %v3443 = vrot.slane %v3421, %v3442
    %v3445 = vunpack.c.l.s4 1966171168
    %v3446 = vunpack.c.0.s8 %v3445
    %v3447 = vlaneseq
    %v3448 = vshrl.u32 %v3447, 7
    %v3449 = vsub.s32 %v3446, %v3448
    %v3450 = vrot.slane %v3422, %v3449
    %v3451 = vcombine.high %v3429, %v3429
    %v3452 = vcombine.high %v3436, %v3436
    %v3453 = vcombine.high %v3443, %v3443
    %v3454 = vcombine.high %v3450, %v3450
    %v3455 = vcombine.high %v2047, %v2047
    %v3457 = vunpack.c.l.s4 1966171168
    %v3458 = vunpack.c.0.s8 %v3457
    %v3459 = vlaneseq
    %v3460 = vshrl.u32 %v3459, 7
    %v3461 = vsub.s32 %v3458, %v3460
    %v3462 = vrot.slane %v2047, %v3461
    %v3464 = vunpack.c.l.s4 1966171168
    %v3465 = vunpack.c.0.s8 %v3464
    %v3466 = vlaneseq
    %v3467 = vshrl.u32 %v3466, 7
    %v3468 = vsub.s32 %v3465, %v3467
    %v3469 = vrot.slane %v3455, %v3468
    %v3470 = vcombine.high %v3462, %v3462
    %v3471 = vcombine.high %v3469, %v3469
    %v3473 = vunpack.c.l.s4 1966171168
    %v3474 = vunpack.c.0.s8 %v3473
    %v3475 = vlaneseq
    %v3476 = vshrl.u32 %v3475, 7
    %v3477 = vsub.s32 %v3474, %v3476
    %v3478 = vrot.slane %v3462, %v3477
    %v3480 = vunpack.c.l.s4 1966171168
    %v3481 = vunpack.c.0.s8 %v3480
    %v3482 = vlaneseq
    %v3483 = vshrl.u32 %v3482, 7
    %v3484 = vsub.s32 %v3481, %v3483
    %v3485 = vrot.slane %v3469, %v3484
    %v3487 = vunpack.c.l.s4 1966171168
    %v3488 = vunpack.c.0.s8 %v3487
    %v3489 = vlaneseq
    %v3490 = vshrl.u32 %v3489, 7
    %v3491 = vsub.s32 %v3488, %v3490
    %v3492 = vrot.slane %v3470, %v3491
    %v3494 = vunpack.c.l.s4 1966171168
    %v3495 = vunpack.c.0.s8 %v3494
    %v3496 = vlaneseq
    %v3497 = vshrl.u32 %v3496, 7
    %v3498 = vsub.s32 %v3495, %v3497
    %v3499 = vrot.slane %v3471, %v3498
    %v3500 = vcombine.high %v3478, %v3478
    %v3501 = vcombine.high %v3485, %v3485
    %v3502 = vcombine.high %v3492, %v3492
    %v3503 = vcombine.high %v3499, %v3499
    %v3504 = vcombine.high %v2048, %v2048
    %v3506 = vunpack.c.l.s4 1966171168
    %v3507 = vunpack.c.0.s8 %v3506
    %v3508 = vlaneseq
    %v3509 = vshrl.u32 %v3508, 7
    %v3510 = vsub.s32 %v3507, %v3509
    %v3511 = vrot.slane %v2048, %v3510
    %v3513 = vunpack.c.l.s4 1966171168
    %v3514 = vunpack.c.0.s8 %v3513
    %v3515 = vlaneseq
    %v3516 = vshrl.u32 %v3515, 7
    %v3517 = vsub.s32 %v3514, %v3516
    %v3518 = vrot.slane %v3504, %v3517
    %v3519 = vcombine.high %v3511, %v3511
    %v3520 = vcombine.high %v3518, %v3518
    %v3522 = vunpack.c.l.s4 1966171168
    %v3523 = vunpack.c.0.s8 %v3522
    %v3524 = vlaneseq
    %v3525 = vshrl.u32 %v3524, 7
    %v3526 = vsub.s32 %v3523, %v3525
    %v3527 = vrot.slane %v3511, %v3526
    %v3529 = vunpack.c.l.s4 1966171168
    %v3530 = vunpack.c.0.s8 %v3529
    %v3531 = vlaneseq
    %v3532 = vshrl.u32 %v3531, 7
    %v3533 = vsub.s32 %v3530, %v3532
    %v3534 = vrot.slane %v3518, %v3533
    %v3536 = vunpack.c.l.s4 1966171168
    %v3537 = vunpack.c.0.s8 %v3536
    %v3538 = vlaneseq
    %v3539 = vshrl.u32 %v3538, 7
    %v3540 = vsub.s32 %v3537, %v3539
    %v3541 = vrot.slane %v3519, %v3540
    %v3543 = vunpack.c.l.s4 1966171168
    %v3544 = vunpack.c.0.s8 %v3543
    %v3545 = vlaneseq
    %v3546 = vshrl.u32 %v3545, 7
    %v3547 = vsub.s32 %v3544, %v3546
    %v3548 = vrot.slane %v3520, %v3547
    %v3549 = vcombine.high %v3527, %v3527
    %v3550 = vcombine.high %v3534, %v3534
    %v3551 = vcombine.high %v3541, %v3541
    %v3552 = vcombine.high %v3548, %v3548
    %v3553 = vcombine.high %v2049, %v2049
    %v3555 = vunpack.c.l.s4 1966171168
    %v3556 = vunpack.c.0.s8 %v3555
    %v3557 = vlaneseq
    %v3558 = vshrl.u32 %v3557, 7
    %v3559 = vsub.s32 %v3556, %v3558
    %v3560 = vrot.slane %v2049, %v3559
    %v3562 = vunpack.c.l.s4 1966171168
    %v3563 = vunpack.c.0.s8 %v3562
    %v3564 = vlaneseq
    %v3565 = vshrl.u32 %v3564, 7
    %v3566 = vsub.s32 %v3563, %v3565
    %v3567 = vrot.slane %v3553, %v3566
    %v3568 = vcombine.high %v3560, %v3560
    %v3569 = vcombine.high %v3567, %v3567
    %v3571 = vunpack.c.l.s4 1966171168
    %v3572 = vunpack.c.0.s8 %v3571
    %v3573 = vlaneseq
    %v3574 = vshrl.u32 %v3573, 7
    %v3575 = vsub.s32 %v3572, %v3574
    %v3576 = vrot.slane %v3560, %v3575
    %v3578 = vunpack.c.l.s4 1966171168
    %v3579 = vunpack.c.0.s8 %v3578
    %v3580 = vlaneseq
    %v3581 = vshrl.u32 %v3580, 7
    %v3582 = vsub.s32 %v3579, %v3581
    %v3583 = vrot.slane %v3567, %v3582
    %v3585 = vunpack.c.l.s4 1966171168
    %v3586 = vunpack.c.0.s8 %v3585
    %v3587 = vlaneseq
    %v3588 = vshrl.u32 %v3587, 7
    %v3589 = vsub.s32 %v3586, %v3588
    %v3590 = vrot.slane %v3568, %v3589
    %v3592 = vunpack.c.l.s4 1966171168
    %v3593 = vunpack.c.0.s8 %v3592
    %v3594 = vlaneseq
    %v3595 = vshrl.u32 %v3594, 7
    %v3596 = vsub.s32 %v3593, %v3595
    %v3597 = vrot.slane %v3569, %v3596
    %v3598 = vcombine.high %v3576, %v3576
    %v3599 = vcombine.high %v3583, %v3583
    %v3600 = vcombine.high %v3590, %v3590
    %v3601 = vcombine.high %v3597, %v3597
    %v3602 = vcombine.high %v2050, %v2050
    %v3604 = vunpack.c.l.s4 1966171168
    %v3605 = vunpack.c.0.s8 %v3604
    %v3606 = vlaneseq
    %v3607 = vshrl.u32 %v3606, 7
    %v3608 = vsub.s32 %v3605, %v3607
    %v3609 = vrot.slane %v2050, %v3608
    %v3611 = vunpack.c.l.s4 1966171168
    %v3612 = vunpack.c.0.s8 %v3611
    %v3613 = vlaneseq
    %v3614 = vshrl.u32 %v3613, 7
    %v3615 = vsub.s32 %v3612, %v3614
    %v3616 = vrot.slane %v3602, %v3615
    %v3617 = vcombine.high %v3609, %v3609
    %v3618 = vcombine.high %v3616, %v3616
    %v3620 = vunpack.c.l.s4 1966171168
    %v3621 = vunpack.c.0.s8 %v3620
    %v3622 = vlaneseq
    %v3623 = vshrl.u32 %v3622, 7
    %v3624 = vsub.s32 %v3621, %v3623
    %v3625 = vrot.slane %v3609, %v3624
    %v3627 = vunpack.c.l.s4 1966171168
    %v3628 = vunpack.c.0.s8 %v3627
    %v3629 = vlaneseq
    %v3630 = vshrl.u32 %v3629, 7
    %v3631 = vsub.s32 %v3628, %v3630
    %v3632 = vrot.slane %v3616, %v3631
    %v3634 = vunpack.c.l.s4 1966171168
    %v3635 = vunpack.c.0.s8 %v3634
    %v3636 = vlaneseq
    %v3637 = vshrl.u32 %v3636, 7
    %v3638 = vsub.s32 %v3635, %v3637
    %v3639 = vrot.slane %v3617, %v3638
    %v3641 = vunpack.c.l.s4 1966171168
    %v3642 = vunpack.c.0.s8 %v3641
    %v3643 = vlaneseq
    %v3644 = vshrl.u32 %v3643, 7
    %v3645 = vsub.s32 %v3642, %v3644
    %v3646 = vrot.slane %v3618, %v3645
    %v3647 = vcombine.high %v3625, %v3625
    %v3648 = vcombine.high %v3632, %v3632
    %v3649 = vcombine.high %v3639, %v3639
    %v3650 = vcombine.high %v3646, %v3646
    %v3651 = vcombine.low %v2106, %v2120
    %v3652 = vcombine.low %v2128, %v2130
    %v3653 = vcombine.low %v2113, %v2127
    %v3654 = vcombine.low %v2129, %v2131
    %v3656 = vunpack.c.l.s4 1966171168
    %v3657 = vunpack.c.0.s8 %v3656
    %v3658 = vlaneseq
    %v3659 = vshrl.u32 %v3658, 7
    %v3660 = vsub.s32 %v3657, %v3659
    %v3661 = vrot.slane %v3651, %v3660
    %v3663 = vunpack.c.l.s4 1966171168
    %v3664 = vunpack.c.0.s8 %v3663
    %v3665 = vlaneseq
    %v3666 = vshrl.u32 %v3665, 7
    %v3667 = vsub.s32 %v3664, %v3666
    %v3668 = vrot.slane %v3652, %v3667
    %v3670 = vunpack.c.l.s4 1966171168
    %v3671 = vunpack.c.0.s8 %v3670
    %v3672 = vlaneseq
    %v3673 = vshrl.u32 %v3672, 7
    %v3674 = vsub.s32 %v3671, %v3673
    %v3675 = vrot.slane %v3653, %v3674
    %v3677 = vunpack.c.l.s4 1966171168
    %v3678 = vunpack.c.0.s8 %v3677
    %v3679 = vlaneseq
    %v3680 = vshrl.u32 %v3679, 7
    %v3681 = vsub.s32 %v3678, %v3680
    %v3682 = vrot.slane %v3654, %v3681
    %v3683 = vcombine.low %v3661, %v3668
    %v3684 = vcombine.low %v3675, %v3682
    %v3686 = vunpack.c.l.s4 1966171168
    %v3687 = vunpack.c.0.s8 %v3686
    %v3688 = vlaneseq
    %v3689 = vshrl.u32 %v3688, 7
    %v3690 = vsub.s32 %v3687, %v3689
    %v3691 = vrot.slane %v3683, %v3690
    %v3693 = vunpack.c.l.s4 1966171168
    %v3694 = vunpack.c.0.s8 %v3693
    %v3695 = vlaneseq
    %v3696 = vshrl.u32 %v3695, 7
    %v3697 = vsub.s32 %v3694, %v3696
    %v3698 = vrot.slane %v3684, %v3697
    %v3699 = vcombine.low %v3691, %v3698
    %v3700 = vcombine.low %v2155, %v2169
    %v3701 = vcombine.low %v2177, %v2179
    %v3702 = vcombine.low %v2162, %v2176
    %v3703 = vcombine.low %v2178, %v2180
    %v3705 = vunpack.c.l.s4 1966171168
    %v3706 = vunpack.c.0.s8 %v3705
    %v3707 = vlaneseq
    %v3708 = vshrl.u32 %v3707, 7
    %v3709 = vsub.s32 %v3706, %v3708
    %v3710 = vrot.slane %v3700, %v3709
    %v3712 = vunpack.c.l.s4 1966171168
    %v3713 = vunpack.c.0.s8 %v3712
    %v3714 = vlaneseq
    %v3715 = vshrl.u32 %v3714, 7
    %v3716 = vsub.s32 %v3713, %v3715
    %v3717 = vrot.slane %v3701, %v3716
    %v3719 = vunpack.c.l.s4 1966171168
    %v3720 = vunpack.c.0.s8 %v3719
    %v3721 = vlaneseq
    %v3722 = vshrl.u32 %v3721, 7
    %v3723 = vsub.s32 %v3720, %v3722
    %v3724 = vrot.slane %v3702, %v3723
    %v3726 = vunpack.c.l.s4 1966171168
    %v3727 = vunpack.c.0.s8 %v3726
    %v3728 = vlaneseq
    %v3729 = vshrl.u32 %v3728, 7
    %v3730 = vsub.s32 %v3727, %v3729
    %v3731 = vrot.slane %v3703, %v3730
    %v3732 = vcombine.low %v3710, %v3717
    %v3733 = vcombine.low %v3724, %v3731
    %v3735 = vunpack.c.l.s4 1966171168
    %v3736 = vunpack.c.0.s8 %v3735
    %v3737 = vlaneseq
    %v3738 = vshrl.u32 %v3737, 7
    %v3739 = vsub.s32 %v3736, %v3738
    %v3740 = vrot.slane %v3732, %v3739
    %v3742 = vunpack.c.l.s4 1966171168
    %v3743 = vunpack.c.0.s8 %v3742
    %v3744 = vlaneseq
    %v3745 = vshrl.u32 %v3744, 7
    %v3746 = vsub.s32 %v3743, %v3745
    %v3747 = vrot.slane %v3733, %v3746
    %v3748 = vcombine.low %v3740, %v3747
    %v3749 = vcombine.low %v2204, %v2218
    %v3750 = vcombine.low %v2226, %v2228
    %v3751 = vcombine.low %v2211, %v2225
    %v3752 = vcombine.low %v2227, %v2229
    %v3754 = vunpack.c.l.s4 1966171168
    %v3755 = vunpack.c.0.s8 %v3754
    %v3756 = vlaneseq
    %v3757 = vshrl.u32 %v3756, 7
    %v3758 = vsub.s32 %v3755, %v3757
    %v3759 = vrot.slane %v3749, %v3758
    %v3761 = vunpack.c.l.s4 1966171168
    %v3762 = vunpack.c.0.s8 %v3761
    %v3763 = vlaneseq
    %v3764 = vshrl.u32 %v3763, 7
    %v3765 = vsub.s32 %v3762, %v3764
    %v3766 = vrot.slane %v3750, %v3765
    %v3768 = vunpack.c.l.s4 1966171168
    %v3769 = vunpack.c.0.s8 %v3768
    %v3770 = vlaneseq
    %v3771 = vshrl.u32 %v3770, 7
    %v3772 = vsub.s32 %v3769, %v3771
    %v3773 = vrot.slane %v3751, %v3772
    %v3775 = vunpack.c.l.s4 1966171168
    %v3776 = vunpack.c.0.s8 %v3775
    %v3777 = vlaneseq
    %v3778 = vshrl.u32 %v3777, 7
    %v3779 = vsub.s32 %v3776, %v3778
    %v3780 = vrot.slane %v3752, %v3779
    %v3781 = vcombine.low %v3759, %v3766
    %v3782 = vcombine.low %v3773, %v3780
    %v3784 = vunpack.c.l.s4 1966171168
    %v3785 = vunpack.c.0.s8 %v3784
    %v3786 = vlaneseq
    %v3787 = vshrl.u32 %v3786, 7
    %v3788 = vsub.s32 %v3785, %v3787
    %v3789 = vrot.slane %v3781, %v3788
    %v3791 = vunpack.c.l.s4 1966171168
    %v3792 = vunpack.c.0.s8 %v3791
    %v3793 = vlaneseq
    %v3794 = vshrl.u32 %v3793, 7
    %v3795 = vsub.s32 %v3792, %v3794
    %v3796 = vrot.slane %v3782, %v3795
    %v3797 = vcombine.low %v3789, %v3796
    %v3798 = vcombine.low %v2253, %v2267
    %v3799 = vcombine.low %v2275, %v2277
    %v3800 = vcombine.low %v2260, %v2274
    %v3801 = vcombine.low %v2276, %v2278
    %v3803 = vunpack.c.l.s4 1966171168
    %v3804 = vunpack.c.0.s8 %v3803
    %v3805 = vlaneseq
    %v3806 = vshrl.u32 %v3805, 7
    %v3807 = vsub.s32 %v3804, %v3806
    %v3808 = vrot.slane %v3798, %v3807
    %v3810 = vunpack.c.l.s4 1966171168
    %v3811 = vunpack.c.0.s8 %v3810
    %v3812 = vlaneseq
    %v3813 = vshrl.u32 %v3812, 7
    %v3814 = vsub.s32 %v3811, %v3813
    %v3815 = vrot.slane %v3799, %v3814
    %v3817 = vunpack.c.l.s4 1966171168
    %v3818 = vunpack.c.0.s8 %v3817
    %v3819 = vlaneseq
    %v3820 = vshrl.u32 %v3819, 7
    %v3821 = vsub.s32 %v3818, %v3820
    %v3822 = vrot.slane %v3800, %v3821
    %v3824 = vunpack.c.l.s4 1966171168
    %v3825 = vunpack.c.0.s8 %v3824
    %v3826 = vlaneseq
    %v3827 = vshrl.u32 %v3826, 7
    %v3828 = vsub.s32 %v3825, %v3827
    %v3829 = vrot.slane %v3801, %v3828
    %v3830 = vcombine.low %v3808, %v3815
    %v3831 = vcombine.low %v3822, %v3829
    %v3833 = vunpack.c.l.s4 1966171168
    %v3834 = vunpack.c.0.s8 %v3833
    %v3835 = vlaneseq
    %v3836 = vshrl.u32 %v3835, 7
    %v3837 = vsub.s32 %v3834, %v3836
    %v3838 = vrot.slane %v3830, %v3837
    %v3840 = vunpack.c.l.s4 1966171168
    %v3841 = vunpack.c.0.s8 %v3840
    %v3842 = vlaneseq
    %v3843 = vshrl.u32 %v3842, 7
    %v3844 = vsub.s32 %v3841, %v3843
    %v3845 = vrot.slane %v3831, %v3844
    %v3846 = vcombine.low %v3838, %v3845
    %v3847 = vcombine.low %v2302, %v2316
    %v3848 = vcombine.low %v2324, %v2326
    %v3849 = vcombine.low %v2309, %v2323
    %v3850 = vcombine.low %v2325, %v2327
    %v3852 = vunpack.c.l.s4 1966171168
    %v3853 = vunpack.c.0.s8 %v3852
    %v3854 = vlaneseq
    %v3855 = vshrl.u32 %v3854, 7
    %v3856 = vsub.s32 %v3853, %v3855
    %v3857 = vrot.slane %v3847, %v3856
    %v3859 = vunpack.c.l.s4 1966171168
    %v3860 = vunpack.c.0.s8 %v3859
    %v3861 = vlaneseq
    %v3862 = vshrl.u32 %v3861, 7
    %v3863 = vsub.s32 %v3860, %v3862
    %v3864 = vrot.slane %v3848, %v3863
    %v3866 = vunpack.c.l.s4 1966171168
    %v3867 = vunpack.c.0.s8 %v3866
    %v3868 = vlaneseq
    %v3869 = vshrl.u32 %v3868, 7
    %v3870 = vsub.s32 %v3867, %v3869
    %v3871 = vrot.slane %v3849, %v3870
    %v3873 = vunpack.c.l.s4 1966171168
    %v3874 = vunpack.c.0.s8 %v3873
    %v3875 = vlaneseq
    %v3876 = vshrl.u32 %v3875, 7
    %v3877 = vsub.s32 %v3874, %v3876
    %v3878 = vrot.slane %v3850, %v3877
    %v3879 = vcombine.low %v3857, %v3864
    %v3880 = vcombine.low %v3871, %v3878
    %v3882 = vunpack.c.l.s4 1966171168
    %v3883 = vunpack.c.0.s8 %v3882
    %v3884 = vlaneseq
    %v3885 = vshrl.u32 %v3884, 7
    %v3886 = vsub.s32 %v3883, %v3885
    %v3887 = vrot.slane %v3879, %v3886
    %v3889 = vunpack.c.l.s4 1966171168
    %v3890 = vunpack.c.0.s8 %v3889
    %v3891 = vlaneseq
    %v3892 = vshrl.u32 %v3891, 7
    %v3893 = vsub.s32 %v3890, %v3892
    %v3894 = vrot.slane %v3880, %v3893
    %v3895 = vcombine.low %v3887, %v3894
    %v3896 = vcombine.low %v2351, %v2365
    %v3897 = vcombine.low %v2373, %v2375
    %v3898 = vcombine.low %v2358, %v2372
    %v3899 = vcombine.low %v2374, %v2376
    %v3901 = vunpack.c.l.s4 1966171168
    %v3902 = vunpack.c.0.s8 %v3901
    %v3903 = vlaneseq
    %v3904 = vshrl.u32 %v3903, 7
    %v3905 = vsub.s32 %v3902, %v3904
    %v3906 = vrot.slane %v3896, %v3905
    %v3908 = vunpack.c.l.s4 1966171168
    %v3909 = vunpack.c.0.s8 %v3908
    %v3910 = vlaneseq
    %v3911 = vshrl.u32 %v3910, 7
    %v3912 = vsub.s32 %v3909, %v3911
    %v3913 = vrot.slane %v3897, %v3912
    %v3915 = vunpack.c.l.s4 1966171168
    %v3916 = vunpack.c.0.s8 %v3915
    %v3917 = vlaneseq
    %v3918 = vshrl.u32 %v3917, 7
    %v3919 = vsub.s32 %v3916, %v3918
    %v3920 = vrot.slane %v3898, %v3919
    %v3922 = vunpack.c.l.s4 1966171168
    %v3923 = vunpack.c.0.s8 %v3922
    %v3924 = vlaneseq
    %v3925 = vshrl.u32 %v3924, 7
    %v3926 = vsub.s32 %v3923, %v3925
    %v3927 = vrot.slane %v3899, %v3926
    %v3928 = vcombine.low %v3906, %v3913
    %v3929 = vcombine.low %v3920, %v3927
    %v3931 = vunpack.c.l.s4 1966171168
    %v3932 = vunpack.c.0.s8 %v3931
    %v3933 = vlaneseq
    %v3934 = vshrl.u32 %v3933, 7
    %v3935 = vsub.s32 %v3932, %v3934
    %v3936 = vrot.slane %v3928, %v3935
    %v3938 = vunpack.c.l.s4 1966171168
    %v3939 = vunpack.c.0.s8 %v3938
    %v3940 = vlaneseq
    %v3941 = vshrl.u32 %v3940, 7
    %v3942 = vsub.s32 %v3939, %v3941
    %v3943 = vrot.slane %v3929, %v3942
    %v3944 = vcombine.low %v3936, %v3943
    %v3945 = vcombine.low %v2400, %v2414
    %v3946 = vcombine.low %v2422, %v2424
    %v3947 = vcombine.low %v2407, %v2421
    %v3948 = vcombine.low %v2423, %v2425
    %v3950 = vunpack.c.l.s4 1966171168
    %v3951 = vunpack.c.0.s8 %v3950
    %v3952 = vlaneseq
    %v3953 = vshrl.u32 %v3952, 7
    %v3954 = vsub.s32 %v3951, %v3953
    %v3955 = vrot.slane %v3945, %v3954
    %v3957 = vunpack.c.l.s4 1966171168
    %v3958 = vunpack.c.0.s8 %v3957
    %v3959 = vlaneseq
    %v3960 = vshrl.u32 %v3959, 7
    %v3961 = vsub.s32 %v3958, %v3960
    %v3962 = vrot.slane %v3946, %v3961
    %v3964 = vunpack.c.l.s4 1966171168
    %v3965 = vunpack.c.0.s8 %v3964
    %v3966 = vlaneseq
    %v3967 = vshrl.u32 %v3966, 7
    %v3968 = vsub.s32 %v3965, %v3967
    %v3969 = vrot.slane %v3947, %v3968
    %v3971 = vunpack.c.l.s4 1966171168
    %v3972 = vunpack.c.0.s8 %v3971
    %v3973 = vlaneseq
    %v3974 = vshrl.u32 %v3973, 7
    %v3975 = vsub.s32 %v3972, %v3974
    %v3976 = vrot.slane %v3948, %v3975
    %v3977 = vcombine.low %v3955, %v3962
    %v3978 = vcombine.low %v3969, %v3976
    %v3980 = vunpack.c.l.s4 1966171168
    %v3981 = vunpack.c.0.s8 %v3980
    %v3982 = vlaneseq
    %v3983 = vshrl.u32 %v3982, 7
    %v3984 = vsub.s32 %v3981, %v3983
    %v3985 = vrot.slane %v3977, %v3984
    %v3987 = vunpack.c.l.s4 1966171168
    %v3988 = vunpack.c.0.s8 %v3987
    %v3989 = vlaneseq
    %v3990 = vshrl.u32 %v3989, 7
    %v3991 = vsub.s32 %v3988, %v3990
    %v3992 = vrot.slane %v3978, %v3991
    %v3993 = vcombine.low %v3985, %v3992
    %v3994 = vcombine.low %v2449, %v2463
    %v3995 = vcombine.low %v2471, %v2473
    %v3996 = vcombine.low %v2456, %v2470
    %v3997 = vcombine.low %v2472, %v2474
    %v3999 = vunpack.c.l.s4 1966171168
    %v4000 = vunpack.c.0.s8 %v3999
    %v4001 = vlaneseq
    %v4002 = vshrl.u32 %v4001, 7
    %v4003 = vsub.s32 %v4000, %v4002
    %v4004 = vrot.slane %v3994, %v4003
    %v4006 = vunpack.c.l.s4 1966171168
    %v4007 = vunpack.c.0.s8 %v4006
    %v4008 = vlaneseq
    %v4009 = vshrl.u32 %v4008, 7
    %v4010 = vsub.s32 %v4007, %v4009
    %v4011 = vrot.slane %v3995, %v4010
    %v4013 = vunpack.c.l.s4 1966171168
    %v4014 = vunpack.c.0.s8 %v4013
    %v4015 = vlaneseq
    %v4016 = vshrl.u32 %v4015, 7
    %v4017 = vsub.s32 %v4014, %v4016
    %v4018 = vrot.slane %v3996, %v4017
    %v4020 = vunpack.c.l.s4 1966171168
    %v4021 = vunpack.c.0.s8 %v4020
    %v4022 = vlaneseq
    %v4023 = vshrl.u32 %v4022, 7
    %v4024 = vsub.s32 %v4021, %v4023
    %v4025 = vrot.slane %v3997, %v4024
    %v4026 = vcombine.low %v4004, %v4011
    %v4027 = vcombine.low %v4018, %v4025
    %v4029 = vunpack.c.l.s4 1966171168
    %v4030 = vunpack.c.0.s8 %v4029
    %v4031 = vlaneseq
    %v4032 = vshrl.u32 %v4031, 7
    %v4033 = vsub.s32 %v4030, %v4032
    %v4034 = vrot.slane %v4026, %v4033
    %v4036 = vunpack.c.l.s4 1966171168
    %v4037 = vunpack.c.0.s8 %v4036
    %v4038 = vlaneseq
    %v4039 = vshrl.u32 %v4038, 7
    %v4040 = vsub.s32 %v4037, %v4039
    %v4041 = vrot.slane %v4027, %v4040
    %v4042 = vcombine.low %v4034, %v4041
    %v4043 = vcombine.low %v2498, %v2512
    %v4044 = vcombine.low %v2520, %v2522
    %v4045 = vcombine.low %v2505, %v2519
    %v4046 = vcombine.low %v2521, %v2523
    %v4048 = vunpack.c.l.s4 1966171168
    %v4049 = vunpack.c.0.s8 %v4048
    %v4050 = vlaneseq
    %v4051 = vshrl.u32 %v4050, 7
    %v4052 = vsub.s32 %v4049, %v4051
    %v4053 = vrot.slane %v4043, %v4052
    %v4055 = vunpack.c.l.s4 1966171168
    %v4056 = vunpack.c.0.s8 %v4055
    %v4057 = vlaneseq
    %v4058 = vshrl.u32 %v4057, 7
    %v4059 = vsub.s32 %v4056, %v4058
    %v4060 = vrot.slane %v4044, %v4059
    %v4062 = vunpack.c.l.s4 1966171168
    %v4063 = vunpack.c.0.s8 %v4062
    %v4064 = vlaneseq
    %v4065 = vshrl.u32 %v4064, 7
    %v4066 = vsub.s32 %v4063, %v4065
    %v4067 = vrot.slane %v4045, %v4066
    %v4069 = vunpack.c.l.s4 1966171168
    %v4070 = vunpack.c.0.s8 %v4069
    %v4071 = vlaneseq
    %v4072 = vshrl.u32 %v4071, 7
    %v4073 = vsub.s32 %v4070, %v4072
    %v4074 = vrot.slane %v4046, %v4073
    %v4075 = vcombine.low %v4053, %v4060
    %v4076 = vcombine.low %v4067, %v4074
    %v4078 = vunpack.c.l.s4 1966171168
    %v4079 = vunpack.c.0.s8 %v4078
    %v4080 = vlaneseq
    %v4081 = vshrl.u32 %v4080, 7
    %v4082 = vsub.s32 %v4079, %v4081
    %v4083 = vrot.slane %v4075, %v4082
    %v4085 = vunpack.c.l.s4 1966171168
    %v4086 = vunpack.c.0.s8 %v4085
    %v4087 = vlaneseq
    %v4088 = vshrl.u32 %v4087, 7
    %v4089 = vsub.s32 %v4086, %v4088
    %v4090 = vrot.slane %v4076, %v4089
    %v4091 = vcombine.low %v4083, %v4090
    %v4092 = vcombine.low %v2547, %v2561
    %v4093 = vcombine.low %v2569, %v2571
    %v4094 = vcombine.low %v2554, %v2568
    %v4095 = vcombine.low %v2570, %v2572
    %v4097 = vunpack.c.l.s4 1966171168
    %v4098 = vunpack.c.0.s8 %v4097
    %v4099 = vlaneseq
    %v4100 = vshrl.u32 %v4099, 7
    %v4101 = vsub.s32 %v4098, %v4100
    %v4102 = vrot.slane %v4092, %v4101
    %v4104 = vunpack.c.l.s4 1966171168
    %v4105 = vunpack.c.0.s8 %v4104
    %v4106 = vlaneseq
    %v4107 = vshrl.u32 %v4106, 7
    %v4108 = vsub.s32 %v4105, %v4107
    %v4109 = vrot.slane %v4093, %v4108
    %v4111 = vunpack.c.l.s4 1966171168
    %v4112 = vunpack.c.0.s8 %v4111
    %v4113 = vlaneseq
    %v4114 = vshrl.u32 %v4113, 7
    %v4115 = vsub.s32 %v4112, %v4114
    %v4116 = vrot.slane %v4094, %v4115
    %v4118 = vunpack.c.l.s4 1966171168
    %v4119 = vunpack.c.0.s8 %v4118
    %v4120 = vlaneseq
    %v4121 = vshrl.u32 %v4120, 7
    %v4122 = vsub.s32 %v4119, %v4121
    %v4123 = vrot.slane %v4095, %v4122
    %v4124 = vcombine.low %v4102, %v4109
    %v4125 = vcombine.low %v4116, %v4123
    %v4127 = vunpack.c.l.s4 1966171168
    %v4128 = vunpack.c.0.s8 %v4127
    %v4129 = vlaneseq
    %v4130 = vshrl.u32 %v4129, 7
    %v4131 = vsub.s32 %v4128, %v4130
    %v4132 = vrot.slane %v4124, %v4131
    %v4134 = vunpack.c.l.s4 1966171168
    %v4135 = vunpack.c.0.s8 %v4134
    %v4136 = vlaneseq
    %v4137 = vshrl.u32 %v4136, 7
    %v4138 = vsub.s32 %v4135, %v4137
    %v4139 = vrot.slane %v4125, %v4138
    %v4140 = vcombine.low %v4132, %v4139
    %v4141 = vcombine.low %v2596, %v2610
    %v4142 = vcombine.low %v2618, %v2620
    %v4143 = vcombine.low %v2603, %v2617
    %v4144 = vcombine.low %v2619, %v2621
    %v4146 = vunpack.c.l.s4 1966171168
    %v4147 = vunpack.c.0.s8 %v4146
    %v4148 = vlaneseq
    %v4149 = vshrl.u32 %v4148, 7
    %v4150 = vsub.s32 %v4147, %v4149
    %v4151 = vrot.slane %v4141, %v4150
    %v4153 = vunpack.c.l.s4 1966171168
    %v4154 = vunpack.c.0.s8 %v4153
    %v4155 = vlaneseq
    %v4156 = vshrl.u32 %v4155, 7
    %v4157 = vsub.s32 %v4154, %v4156
    %v4158 = vrot.slane %v4142, %v4157
    %v4160 = vunpack.c.l.s4 1966171168
    %v4161 = vunpack.c.0.s8 %v4160
    %v4162 = vlaneseq
    %v4163 = vshrl.u32 %v4162, 7
    %v4164 = vsub.s32 %v4161, %v4163
    %v4165 = vrot.slane %v4143, %v4164
    %v4167 = vunpack.c.l.s4 1966171168
    %v4168 = vunpack.c.0.s8 %v4167
    %v4169 = vlaneseq
    %v4170 = vshrl.u32 %v4169, 7
    %v4171 = vsub.s32 %v4168, %v4170
    %v4172 = vrot.slane %v4144, %v4171
    %v4173 = vcombine.low %v4151, %v4158
    %v4174 = vcombine.low %v4165, %v4172
    %v4176 = vunpack.c.l.s4 1966171168
    %v4177 = vunpack.c.0.s8 %v4176
    %v4178 = vlaneseq
    %v4179 = vshrl.u32 %v4178, 7
    %v4180 = vsub.s32 %v4177, %v4179
    %v4181 = vrot.slane %v4173, %v4180
    %v4183 = vunpack.c.l.s4 1966171168
    %v4184 = vunpack.c.0.s8 %v4183
    %v4185 = vlaneseq
    %v4186 = vshrl.u32 %v4185, 7
    %v4187 = vsub.s32 %v4184, %v4186
    %v4188 = vrot.slane %v4174, %v4187
    %v4189 = vcombine.low %v4181, %v4188
    %v4190 = vcombine.low %v2645, %v2659
    %v4191 = vcombine.low %v2667, %v2669
    %v4192 = vcombine.low %v2652, %v2666
    %v4193 = vcombine.low %v2668, %v2670
    %v4195 = vunpack.c.l.s4 1966171168
    %v4196 = vunpack.c.0.s8 %v4195
    %v4197 = vlaneseq
    %v4198 = vshrl.u32 %v4197, 7
    %v4199 = vsub.s32 %v4196, %v4198
    %v4200 = vrot.slane %v4190, %v4199
    %v4202 = vunpack.c.l.s4 1966171168
    %v4203 = vunpack.c.0.s8 %v4202
    %v4204 = vlaneseq
    %v4205 = vshrl.u32 %v4204, 7
    %v4206 = vsub.s32 %v4203, %v4205
    %v4207 = vrot.slane %v4191, %v4206
    %v4209 = vunpack.c.l.s4 1966171168
    %v4210 = vunpack.c.0.s8 %v4209
    %v4211 = vlaneseq
    %v4212 = vshrl.u32 %v4211, 7
    %v4213 = vsub.s32 %v4210, %v4212
    %v4214 = vrot.slane %v4192, %v4213
    %v4216 = vunpack.c.l.s4 1966171168
    %v4217 = vunpack.c.0.s8 %v4216
    %v4218 = vlaneseq
    %v4219 = vshrl.u32 %v4218, 7
    %v4220 = vsub.s32 %v4217, %v4219
    %v4221 = vrot.slane %v4193, %v4220
    %v4222 = vcombine.low %v4200, %v4207
    %v4223 = vcombine.low %v4214, %v4221
    %v4225 = vunpack.c.l.s4 1966171168
    %v4226 = vunpack.c.0.s8 %v4225
    %v4227 = vlaneseq
    %v4228 = vshrl.u32 %v4227, 7
    %v4229 = vsub.s32 %v4226, %v4228
    %v4230 = vrot.slane %v4222, %v4229
    %v4232 = vunpack.c.l.s4 1966171168
    %v4233 = vunpack.c.0.s8 %v4232
    %v4234 = vlaneseq
    %v4235 = vshrl.u32 %v4234, 7
    %v4236 = vsub.s32 %v4233, %v4235
    %v4237 = vrot.slane %v4223, %v4236
    %v4238 = vcombine.low %v4230, %v4237
    %v4239 = vcombine.low %v2694, %v2708
    %v4240 = vcombine.low %v2716, %v2718
    %v4241 = vcombine.low %v2701, %v2715
    %v4242 = vcombine.low %v2717, %v2719
    %v4244 = vunpack.c.l.s4 1966171168
    %v4245 = vunpack.c.0.s8 %v4244
    %v4246 = vlaneseq
    %v4247 = vshrl.u32 %v4246, 7
    %v4248 = vsub.s32 %v4245, %v4247
    %v4249 = vrot.slane %v4239, %v4248
    %v4251 = vunpack.c.l.s4 1966171168
    %v4252 = vunpack.c.0.s8 %v4251
    %v4253 = vlaneseq
    %v4254 = vshrl.u32 %v4253, 7
    %v4255 = vsub.s32 %v4252, %v4254
    %v4256 = vrot.slane %v4240, %v4255
    %v4258 = vunpack.c.l.s4 1966171168
    %v4259 = vunpack.c.0.s8 %v4258
    %v4260 = vlaneseq
    %v4261 = vshrl.u32 %v4260, 7
    %v4262 = vsub.s32 %v4259, %v4261
    %v4263 = vrot.slane %v4241, %v4262
    %v4265 = vunpack.c.l.s4 1966171168
    %v4266 = vunpack.c.0.s8 %v4265
    %v4267 = vlaneseq
    %v4268 = vshrl.u32 %v4267, 7
    %v4269 = vsub.s32 %v4266, %v4268
    %v4270 = vrot.slane %v4242, %v4269
    %v4271 = vcombine.low %v4249, %v4256
    %v4272 = vcombine.low %v4263, %v4270
    %v4274 = vunpack.c.l.s4 1966171168
    %v4275 = vunpack.c.0.s8 %v4274
    %v4276 = vlaneseq
    %v4277 = vshrl.u32 %v4276, 7
    %v4278 = vsub.s32 %v4275, %v4277
    %v4279 = vrot.slane %v4271, %v4278
    %v4281 = vunpack.c.l.s4 1966171168
    %v4282 = vunpack.c.0.s8 %v4281
    %v4283 = vlaneseq
    %v4284 = vshrl.u32 %v4283, 7
    %v4285 = vsub.s32 %v4282, %v4284
    %v4286 = vrot.slane %v4272, %v4285
    %v4287 = vcombine.low %v4279, %v4286
    %v4288 = vcombine.low %v2743, %v2757
    %v4289 = vcombine.low %v2765, %v2767
    %v4290 = vcombine.low %v2750, %v2764
    %v4291 = vcombine.low %v2766, %v2768
    %v4293 = vunpack.c.l.s4 1966171168
    %v4294 = vunpack.c.0.s8 %v4293
    %v4295 = vlaneseq
    %v4296 = vshrl.u32 %v4295, 7
    %v4297 = vsub.s32 %v4294, %v4296
    %v4298 = vrot.slane %v4288, %v4297
    %v4300 = vunpack.c.l.s4 1966171168
    %v4301 = vunpack.c.0.s8 %v4300
    %v4302 = vlaneseq
    %v4303 = vshrl.u32 %v4302, 7
    %v4304 = vsub.s32 %v4301, %v4303
    %v4305 = vrot.slane %v4289, %v4304
    %v4307 = vunpack.c.l.s4 1966171168
    %v4308 = vunpack.c.0.s8 %v4307
    %v4309 = vlaneseq
    %v4310 = vshrl.u32 %v4309, 7
    %v4311 = vsub.s32 %v4308, %v4310
    %v4312 = vrot.slane %v4290, %v4311
    %v4314 = vunpack.c.l.s4 1966171168
    %v4315 = vunpack.c.0.s8 %v4314
    %v4316 = vlaneseq
    %v4317 = vshrl.u32 %v4316, 7
    %v4318 = vsub.s32 %v4315, %v4317
    %v4319 = vrot.slane %v4291, %v4318
    %v4320 = vcombine.low %v4298, %v4305
    %v4321 = vcombine.low %v4312, %v4319
    %v4323 = vunpack.c.l.s4 1966171168
    %v4324 = vunpack.c.0.s8 %v4323
    %v4325 = vlaneseq
    %v4326 = vshrl.u32 %v4325, 7
    %v4327 = vsub.s32 %v4324, %v4326
    %v4328 = vrot.slane %v4320, %v4327
    %v4330 = vunpack.c.l.s4 1966171168
    %v4331 = vunpack.c.0.s8 %v4330
    %v4332 = vlaneseq
    %v4333 = vshrl.u32 %v4332, 7
    %v4334 = vsub.s32 %v4331, %v4333
    %v4335 = vrot.slane %v4321, %v4334
    %v4336 = vcombine.low %v4328, %v4335
    %v4337 = vcombine.low %v2792, %v2806
    %v4338 = vcombine.low %v2814, %v2816
    %v4339 = vcombine.low %v2799, %v2813
    %v4340 = vcombine.low %v2815, %v2817
    %v4342 = vunpack.c.l.s4 1966171168
    %v4343 = vunpack.c.0.s8 %v4342
    %v4344 = vlaneseq
    %v4345 = vshrl.u32 %v4344, 7
    %v4346 = vsub.s32 %v4343, %v4345
    %v4347 = vrot.slane %v4337, %v4346
    %v4349 = vunpack.c.l.s4 1966171168
    %v4350 = vunpack.c.0.s8 %v4349
    %v4351 = vlaneseq
    %v4352 = vshrl.u32 %v4351, 7
    %v4353 = vsub.s32 %v4350, %v4352
    %v4354 = vrot.slane %v4338, %v4353
    %v4356 = vunpack.c.l.s4 1966171168
    %v4357 = vunpack.c.0.s8 %v4356
    %v4358 = vlaneseq
    %v4359 = vshrl.u32 %v4358, 7
    %v4360 = vsub.s32 %v4357, %v4359
    %v4361 = vrot.slane %v4339, %v4360
    %v4363 = vunpack.c.l.s4 1966171168
    %v4364 = vunpack.c.0.s8 %v4363
    %v4365 = vlaneseq
    %v4366 = vshrl.u32 %v4365, 7
    %v4367 = vsub.s32 %v4364, %v4366
    %v4368 = vrot.slane %v4340, %v4367
    %v4369 = vcombine.low %v4347, %v4354
    %v4370 = vcombine.low %v4361, %v4368
    %v4372 = vunpack.c.l.s4 1966171168
    %v4373 = vunpack.c.0.s8 %v4372
    %v4374 = vlaneseq
    %v4375 = vshrl.u32 %v4374, 7
    %v4376 = vsub.s32 %v4373, %v4375
    %v4377 = vrot.slane %v4369, %v4376
    %v4379 = vunpack.c.l.s4 1966171168
    %v4380 = vunpack.c.0.s8 %v4379
    %v4381 = vlaneseq
    %v4382 = vshrl.u32 %v4381, 7
    %v4383 = vsub.s32 %v4380, %v4382
    %v4384 = vrot.slane %v4370, %v4383
    %v4385 = vcombine.low %v4377, %v4384
    %v4386 = vcombine.low %v2841, %v2855
    %v4387 = vcombine.low %v2863, %v2865
    %v4388 = vcombine.low %v2848, %v2862
    %v4389 = vcombine.low %v2864, %v2866
    %v4391 = vunpack.c.l.s4 1966171168
    %v4392 = vunpack.c.0.s8 %v4391
    %v4393 = vlaneseq
    %v4394 = vshrl.u32 %v4393, 7
    %v4395 = vsub.s32 %v4392, %v4394
    %v4396 = vrot.slane %v4386, %v4395
    %v4398 = vunpack.c.l.s4 1966171168
    %v4399 = vunpack.c.0.s8 %v4398
    %v4400 = vlaneseq
    %v4401 = vshrl.u32 %v4400, 7
    %v4402 = vsub.s32 %v4399, %v4401
    %v4403 = vrot.slane %v4387, %v4402
    %v4405 = vunpack.c.l.s4 1966171168
    %v4406 = vunpack.c.0.s8 %v4405
    %v4407 = vlaneseq
    %v4408 = vshrl.u32 %v4407, 7
    %v4409 = vsub.s32 %v4406, %v4408
    %v4410 = vrot.slane %v4388, %v4409
    %v4412 = vunpack.c.l.s4 1966171168
    %v4413 = vunpack.c.0.s8 %v4412
    %v4414 = vlaneseq
    %v4415 = vshrl.u32 %v4414, 7
    %v4416 = vsub.s32 %v4413, %v4415
    %v4417 = vrot.slane %v4389, %v4416
    %v4418 = vcombine.low %v4396, %v4403
    %v4419 = vcombine.low %v4410, %v4417
    %v4421 = vunpack.c.l.s4 1966171168
    %v4422 = vunpack.c.0.s8 %v4421
    %v4423 = vlaneseq
    %v4424 = vshrl.u32 %v4423, 7
    %v4425 = vsub.s32 %v4422, %v4424
    %v4426 = vrot.slane %v4418, %v4425
    %v4428 = vunpack.c.l.s4 1966171168
    %v4429 = vunpack.c.0.s8 %v4428
    %v4430 = vlaneseq
    %v4431 = vshrl.u32 %v4430, 7
    %v4432 = vsub.s32 %v4429, %v4431
    %v4433 = vrot.slane %v4419, %v4432
    %v4434 = vcombine.low %v4426, %v4433
    %v4435 = vcombine.low %v2890, %v2904
    %v4436 = vcombine.low %v2912, %v2914
    %v4437 = vcombine.low %v2897, %v2911
    %v4438 = vcombine.low %v2913, %v2915
    %v4440 = vunpack.c.l.s4 1966171168
    %v4441 = vunpack.c.0.s8 %v4440
    %v4442 = vlaneseq
    %v4443 = vshrl.u32 %v4442, 7
    %v4444 = vsub.s32 %v4441, %v4443
    %v4445 = vrot.slane %v4435, %v4444
    %v4447 = vunpack.c.l.s4 1966171168
    %v4448 = vunpack.c.0.s8 %v4447
    %v4449 = vlaneseq
    %v4450 = vshrl.u32 %v4449, 7
    %v4451 = vsub.s32 %v4448, %v4450
    %v4452 = vrot.slane %v4436, %v4451
    %v4454 = vunpack.c.l.s4 1966171168
    %v4455 = vunpack.c.0.s8 %v4454
    %v4456 = vlaneseq
    %v4457 = vshrl.u32 %v4456, 7
    %v4458 = vsub.s32 %v4455, %v4457
    %v4459 = vrot.slane %v4437, %v4458
    %v4461 = vunpack.c.l.s4 1966171168
    %v4462 = vunpack.c.0.s8 %v4461
    %v4463 = vlaneseq
    %v4464 = vshrl.u32 %v4463, 7
    %v4465 = vsub.s32 %v4462, %v4464
    %v4466 = vrot.slane %v4438, %v4465
    %v4467 = vcombine.low %v4445, %v4452
    %v4468 = vcombine.low %v4459, %v4466
    %v4470 = vunpack.c.l.s4 1966171168
    %v4471 = vunpack.c.0.s8 %v4470
    %v4472 = vlaneseq
    %v4473 = vshrl.u32 %v4472, 7
    %v4474 = vsub.s32 %v4471, %v4473
    %v4475 = vrot.slane %v4467, %v4474
    %v4477 = vunpack.c.l.s4 1966171168
    %v4478 = vunpack.c.0.s8 %v4477
    %v4479 = vlaneseq
    %v4480 = vshrl.u32 %v4479, 7
    %v4481 = vsub.s32 %v4478, %v4480
    %v4482 = vrot.slane %v4468, %v4481
    %v4483 = vcombine.low %v4475, %v4482
    %v4484 = vcombine.low %v2939, %v2953
    %v4485 = vcombine.low %v2961, %v2963
    %v4486 = vcombine.low %v2946, %v2960
    %v4487 = vcombine.low %v2962, %v2964
    %v4489 = vunpack.c.l.s4 1966171168
    %v4490 = vunpack.c.0.s8 %v4489
    %v4491 = vlaneseq
    %v4492 = vshrl.u32 %v4491, 7
    %v4493 = vsub.s32 %v4490, %v4492
    %v4494 = vrot.slane %v4484, %v4493
    %v4496 = vunpack.c.l.s4 1966171168
    %v4497 = vunpack.c.0.s8 %v4496
    %v4498 = vlaneseq
    %v4499 = vshrl.u32 %v4498, 7
    %v4500 = vsub.s32 %v4497, %v4499
    %v4501 = vrot.slane %v4485, %v4500
    %v4503 = vunpack.c.l.s4 1966171168
    %v4504 = vunpack.c.0.s8 %v4503
    %v4505 = vlaneseq
    %v4506 = vshrl.u32 %v4505, 7
    %v4507 = vsub.s32 %v4504, %v4506
    %v4508 = vrot.slane %v4486, %v4507
    %v4510 = vunpack.c.l.s4 1966171168
    %v4511 = vunpack.c.0.s8 %v4510
    %v4512 = vlaneseq
    %v4513 = vshrl.u32 %v4512, 7
    %v4514 = vsub.s32 %v4511, %v4513
    %v4515 = vrot.slane %v4487, %v4514
    %v4516 = vcombine.low %v4494, %v4501
    %v4517 = vcombine.low %v4508, %v4515
    %v4519 = vunpack.c.l.s4 1966171168
    %v4520 = vunpack.c.0.s8 %v4519
    %v4521 = vlaneseq
    %v4522 = vshrl.u32 %v4521, 7
    %v4523 = vsub.s32 %v4520, %v4522
    %v4524 = vrot.slane %v4516, %v4523
    %v4526 = vunpack.c.l.s4 1966171168
    %v4527 = vunpack.c.0.s8 %v4526
    %v4528 = vlaneseq
    %v4529 = vshrl.u32 %v4528, 7
    %v4530 = vsub.s32 %v4527, %v4529
    %v4531 = vrot.slane %v4517, %v4530
    %v4532 = vcombine.low %v4524, %v4531
    %v4533 = vcombine.low %v2988, %v3002
    %v4534 = vcombine.low %v3010, %v3012
    %v4535 = vcombine.low %v2995, %v3009
    %v4536 = vcombine.low %v3011, %v3013
    %v4538 = vunpack.c.l.s4 1966171168
    %v4539 = vunpack.c.0.s8 %v4538
    %v4540 = vlaneseq
    %v4541 = vshrl.u32 %v4540, 7
    %v4542 = vsub.s32 %v4539, %v4541
    %v4543 = vrot.slane %v4533, %v4542
    %v4545 = vunpack.c.l.s4 1966171168
    %v4546 = vunpack.c.0.s8 %v4545
    %v4547 = vlaneseq
    %v4548 = vshrl.u32 %v4547, 7
    %v4549 = vsub.s32 %v4546, %v4548
    %v4550 = vrot.slane %v4534, %v4549
    %v4552 = vunpack.c.l.s4 1966171168
    %v4553 = vunpack.c.0.s8 %v4552
    %v4554 = vlaneseq
    %v4555 = vshrl.u32 %v4554, 7
    %v4556 = vsub.s32 %v4553, %v4555
    %v4557 = vrot.slane %v4535, %v4556
    %v4559 = vunpack.c.l.s4 1966171168
    %v4560 = vunpack.c.0.s8 %v4559
    %v4561 = vlaneseq
    %v4562 = vshrl.u32 %v4561, 7
    %v4563 = vsub.s32 %v4560, %v4562
    %v4564 = vrot.slane %v4536, %v4563
    %v4565 = vcombine.low %v4543, %v4550
    %v4566 = vcombine.low %v4557, %v4564
    %v4568 = vunpack.c.l.s4 1966171168
    %v4569 = vunpack.c.0.s8 %v4568
    %v4570 = vlaneseq
    %v4571 = vshrl.u32 %v4570, 7
    %v4572 = vsub.s32 %v4569, %v4571
    %v4573 = vrot.slane %v4565, %v4572
    %v4575 = vunpack.c.l.s4 1966171168
    %v4576 = vunpack.c.0.s8 %v4575
    %v4577 = vlaneseq
    %v4578 = vshrl.u32 %v4577, 7
    %v4579 = vsub.s32 %v4576, %v4578
    %v4580 = vrot.slane %v4566, %v4579
    %v4581 = vcombine.low %v4573, %v4580
    %v4582 = vcombine.low %v3037, %v3051
    %v4583 = vcombine.low %v3059, %v3061
    %v4584 = vcombine.low %v3044, %v3058
    %v4585 = vcombine.low %v3060, %v3062
    %v4587 = vunpack.c.l.s4 1966171168
    %v4588 = vunpack.c.0.s8 %v4587
    %v4589 = vlaneseq
    %v4590 = vshrl.u32 %v4589, 7
    %v4591 = vsub.s32 %v4588, %v4590
    %v4592 = vrot.slane %v4582, %v4591
    %v4594 = vunpack.c.l.s4 1966171168
    %v4595 = vunpack.c.0.s8 %v4594
    %v4596 = vlaneseq
    %v4597 = vshrl.u32 %v4596, 7
    %v4598 = vsub.s32 %v4595, %v4597
    %v4599 = vrot.slane %v4583, %v4598
    %v4601 = vunpack.c.l.s4 1966171168
    %v4602 = vunpack.c.0.s8 %v4601
    %v4603 = vlaneseq
    %v4604 = vshrl.u32 %v4603, 7
    %v4605 = vsub.s32 %v4602, %v4604
    %v4606 = vrot.slane %v4584, %v4605
    %v4608 = vunpack.c.l.s4 1966171168
    %v4609 = vunpack.c.0.s8 %v4608
    %v4610 = vlaneseq
    %v4611 = vshrl.u32 %v4610, 7
    %v4612 = vsub.s32 %v4609, %v4611
    %v4613 = vrot.slane %v4585, %v4612
    %v4614 = vcombine.low %v4592, %v4599
    %v4615 = vcombine.low %v4606, %v4613
    %v4617 = vunpack.c.l.s4 1966171168
    %v4618 = vunpack.c.0.s8 %v4617
    %v4619 = vlaneseq
    %v4620 = vshrl.u32 %v4619, 7
    %v4621 = vsub.s32 %v4618, %v4620
    %v4622 = vrot.slane %v4614, %v4621
    %v4624 = vunpack.c.l.s4 1966171168
    %v4625 = vunpack.c.0.s8 %v4624
    %v4626 = vlaneseq
    %v4627 = vshrl.u32 %v4626, 7
    %v4628 = vsub.s32 %v4625, %v4627
    %v4629 = vrot.slane %v4615, %v4628
    %v4630 = vcombine.low %v4622, %v4629
    %v4631 = vcombine.low %v3086, %v3100
    %v4632 = vcombine.low %v3108, %v3110
    %v4633 = vcombine.low %v3093, %v3107
    %v4634 = vcombine.low %v3109, %v3111
    %v4636 = vunpack.c.l.s4 1966171168
    %v4637 = vunpack.c.0.s8 %v4636
    %v4638 = vlaneseq
    %v4639 = vshrl.u32 %v4638, 7
    %v4640 = vsub.s32 %v4637, %v4639
    %v4641 = vrot.slane %v4631, %v4640
    %v4643 = vunpack.c.l.s4 1966171168
    %v4644 = vunpack.c.0.s8 %v4643
    %v4645 = vlaneseq
    %v4646 = vshrl.u32 %v4645, 7
    %v4647 = vsub.s32 %v4644, %v4646
    %v4648 = vrot.slane %v4632, %v4647
    %v4650 = vunpack.c.l.s4 1966171168
    %v4651 = vunpack.c.0.s8 %v4650
    %v4652 = vlaneseq
    %v4653 = vshrl.u32 %v4652, 7
    %v4654 = vsub.s32 %v4651, %v4653
    %v4655 = vrot.slane %v4633, %v4654
    %v4657 = vunpack.c.l.s4 1966171168
    %v4658 = vunpack.c.0.s8 %v4657
    %v4659 = vlaneseq
    %v4660 = vshrl.u32 %v4659, 7
    %v4661 = vsub.s32 %v4658, %v4660
    %v4662 = vrot.slane %v4634, %v4661
    %v4663 = vcombine.low %v4641, %v4648
    %v4664 = vcombine.low %v4655, %v4662
    %v4666 = vunpack.c.l.s4 1966171168
    %v4667 = vunpack.c.0.s8 %v4666
    %v4668 = vlaneseq
    %v4669 = vshrl.u32 %v4668, 7
    %v4670 = vsub.s32 %v4667, %v4669
    %v4671 = vrot.slane %v4663, %v4670
    %v4673 = vunpack.c.l.s4 1966171168
    %v4674 = vunpack.c.0.s8 %v4673
    %v4675 = vlaneseq
    %v4676 = vshrl.u32 %v4675, 7
    %v4677 = vsub.s32 %v4674, %v4676
    %v4678 = vrot.slane %v4664, %v4677
    %v4679 = vcombine.low %v4671, %v4678
    %v4680 = vcombine.low %v3135, %v3149
    %v4681 = vcombine.low %v3157, %v3159
    %v4682 = vcombine.low %v3142, %v3156
    %v4683 = vcombine.low %v3158, %v3160
    %v4685 = vunpack.c.l.s4 1966171168
    %v4686 = vunpack.c.0.s8 %v4685
    %v4687 = vlaneseq
    %v4688 = vshrl.u32 %v4687, 7
    %v4689 = vsub.s32 %v4686, %v4688
    %v4690 = vrot.slane %v4680, %v4689
    %v4692 = vunpack.c.l.s4 1966171168
    %v4693 = vunpack.c.0.s8 %v4692
    %v4694 = vlaneseq
    %v4695 = vshrl.u32 %v4694, 7
    %v4696 = vsub.s32 %v4693, %v4695
    %v4697 = vrot.slane %v4681, %v4696
    %v4699 = vunpack.c.l.s4 1966171168
    %v4700 = vunpack.c.0.s8 %v4699
    %v4701 = vlaneseq
    %v4702 = vshrl.u32 %v4701, 7
    %v4703 = vsub.s32 %v4700, %v4702
    %v4704 = vrot.slane %v4682, %v4703
    %v4706 = vunpack.c.l.s4 1966171168
    %v4707 = vunpack.c.0.s8 %v4706
    %v4708 = vlaneseq
    %v4709 = vshrl.u32 %v4708, 7
    %v4710 = vsub.s32 %v4707, %v4709
    %v4711 = vrot.slane %v4683, %v4710
    %v4712 = vcombine.low %v4690, %v4697
    %v4713 = vcombine.low %v4704, %v4711
    %v4715 = vunpack.c.l.s4 1966171168
    %v4716 = vunpack.c.0.s8 %v4715
    %v4717 = vlaneseq
    %v4718 = vshrl.u32 %v4717, 7
    %v4719 = vsub.s32 %v4716, %v4718
    %v4720 = vrot.slane %v4712, %v4719
    %v4722 = vunpack.c.l.s4 1966171168
    %v4723 = vunpack.c.0.s8 %v4722
    %v4724 = vlaneseq
    %v4725 = vshrl.u32 %v4724, 7
    %v4726 = vsub.s32 %v4723, %v4725
    %v4727 = vrot.slane %v4713, %v4726
    %v4728 = vcombine.low %v4720, %v4727
    %v4729 = vcombine.low %v3184, %v3198
    %v4730 = vcombine.low %v3206, %v3208
    %v4731 = vcombine.low %v3191, %v3205
    %v4732 = vcombine.low %v3207, %v3209
    %v4734 = vunpack.c.l.s4 1966171168
    %v4735 = vunpack.c.0.s8 %v4734
    %v4736 = vlaneseq
    %v4737 = vshrl.u32 %v4736, 7
    %v4738 = vsub.s32 %v4735, %v4737
    %v4739 = vrot.slane %v4729, %v4738
    %v4741 = vunpack.c.l.s4 1966171168
    %v4742 = vunpack.c.0.s8 %v4741
    %v4743 = vlaneseq
    %v4744 = vshrl.u32 %v4743, 7
    %v4745 = vsub.s32 %v4742, %v4744
    %v4746 = vrot.slane %v4730, %v4745
    %v4748 = vunpack.c.l.s4 1966171168
    %v4749 = vunpack.c.0.s8 %v4748
    %v4750 = vlaneseq
    %v4751 = vshrl.u32 %v4750, 7
    %v4752 = vsub.s32 %v4749, %v4751
    %v4753 = vrot.slane %v4731, %v4752
    %v4755 = vunpack.c.l.s4 1966171168
    %v4756 = vunpack.c.0.s8 %v4755
    %v4757 = vlaneseq
    %v4758 = vshrl.u32 %v4757, 7
    %v4759 = vsub.s32 %v4756, %v4758
    %v4760 = vrot.slane %v4732, %v4759
    %v4761 = vcombine.low %v4739, %v4746
    %v4762 = vcombine.low %v4753, %v4760
    %v4764 = vunpack.c.l.s4 1966171168
    %v4765 = vunpack.c.0.s8 %v4764
    %v4766 = vlaneseq
    %v4767 = vshrl.u32 %v4766, 7
    %v4768 = vsub.s32 %v4765, %v4767
    %v4769 = vrot.slane %v4761, %v4768
    %v4771 = vunpack.c.l.s4 1966171168
    %v4772 = vunpack.c.0.s8 %v4771
    %v4773 = vlaneseq
    %v4774 = vshrl.u32 %v4773, 7
    %v4775 = vsub.s32 %v4772, %v4774
    %v4776 = vrot.slane %v4762, %v4775
    %v4777 = vcombine.low %v4769, %v4776
    %v4778 = vcombine.low %v3233, %v3247
    %v4779 = vcombine.low %v3255, %v3257
    %v4780 = vcombine.low %v3240, %v3254
    %v4781 = vcombine.low %v3256, %v3258
    %v4783 = vunpack.c.l.s4 1966171168
    %v4784 = vunpack.c.0.s8 %v4783
    %v4785 = vlaneseq
    %v4786 = vshrl.u32 %v4785, 7
    %v4787 = vsub.s32 %v4784, %v4786
    %v4788 = vrot.slane %v4778, %v4787
    %v4790 = vunpack.c.l.s4 1966171168
    %v4791 = vunpack.c.0.s8 %v4790
    %v4792 = vlaneseq
    %v4793 = vshrl.u32 %v4792, 7
    %v4794 = vsub.s32 %v4791, %v4793
    %v4795 = vrot.slane %v4779, %v4794
    %v4797 = vunpack.c.l.s4 1966171168
    %v4798 = vunpack.c.0.s8 %v4797
    %v4799 = vlaneseq
    %v4800 = vshrl.u32 %v4799, 7
    %v4801 = vsub.s32 %v4798, %v4800
    %v4802 = vrot.slane %v4780, %v4801
    %v4804 = vunpack.c.l.s4 1966171168
    %v4805 = vunpack.c.0.s8 %v4804
    %v4806 = vlaneseq
    %v4807 = vshrl.u32 %v4806, 7
    %v4808 = vsub.s32 %v4805, %v4807
    %v4809 = vrot.slane %v4781, %v4808
    %v4810 = vcombine.low %v4788, %v4795
    %v4811 = vcombine.low %v4802, %v4809
    %v4813 = vunpack.c.l.s4 1966171168
    %v4814 = vunpack.c.0.s8 %v4813
    %v4815 = vlaneseq
    %v4816 = vshrl.u32 %v4815, 7
    %v4817 = vsub.s32 %v4814, %v4816
    %v4818 = vrot.slane %v4810, %v4817
    %v4820 = vunpack.c.l.s4 1966171168
    %v4821 = vunpack.c.0.s8 %v4820
    %v4822 = vlaneseq
    %v4823 = vshrl.u32 %v4822, 7
    %v4824 = vsub.s32 %v4821, %v4823
    %v4825 = vrot.slane %v4811, %v4824
    %v4826 = vcombine.low %v4818, %v4825
    %v4827 = vcombine.low %v3282, %v3296
    %v4828 = vcombine.low %v3304, %v3306
    %v4829 = vcombine.low %v3289, %v3303
    %v4830 = vcombine.low %v3305, %v3307
    %v4832 = vunpack.c.l.s4 1966171168
    %v4833 = vunpack.c.0.s8 %v4832
    %v4834 = vlaneseq
    %v4835 = vshrl.u32 %v4834, 7
    %v4836 = vsub.s32 %v4833, %v4835
    %v4837 = vrot.slane %v4827, %v4836
    %v4839 = vunpack.c.l.s4 1966171168
    %v4840 = vunpack.c.0.s8 %v4839
    %v4841 = vlaneseq
    %v4842 = vshrl.u32 %v4841, 7
    %v4843 = vsub.s32 %v4840, %v4842
    %v4844 = vrot.slane %v4828, %v4843
    %v4846 = vunpack.c.l.s4 1966171168
    %v4847 = vunpack.c.0.s8 %v4846
    %v4848 = vlaneseq
    %v4849 = vshrl.u32 %v4848, 7
    %v4850 = vsub.s32 %v4847, %v4849
    %v4851 = vrot.slane %v4829, %v4850
    %v4853 = vunpack.c.l.s4 1966171168
    %v4854 = vunpack.c.0.s8 %v4853
    %v4855 = vlaneseq
    %v4856 = vshrl.u32 %v4855, 7
    %v4857 = vsub.s32 %v4854, %v4856
    %v4858 = vrot.slane %v4830, %v4857
    %v4859 = vcombine.low %v4837, %v4844
    %v4860 = vcombine.low %v4851, %v4858
    %v4862 = vunpack.c.l.s4 1966171168
    %v4863 = vunpack.c.0.s8 %v4862
    %v4864 = vlaneseq
    %v4865 = vshrl.u32 %v4864, 7
    %v4866 = vsub.s32 %v4863, %v4865
    %v4867 = vrot.slane %v4859, %v4866
    %v4869 = vunpack.c.l.s4 1966171168
    %v4870 = vunpack.c.0.s8 %v4869
    %v4871 = vlaneseq
    %v4872 = vshrl.u32 %v4871, 7
    %v4873 = vsub.s32 %v4870, %v4872
    %v4874 = vrot.slane %v4860, %v4873
    %v4875 = vcombine.low %v4867, %v4874
    %v4876 = vcombine.low %v3331, %v3345
    %v4877 = vcombine.low %v3353, %v3355
    %v4878 = vcombine.low %v3338, %v3352
    %v4879 = vcombine.low %v3354, %v3356
    %v4881 = vunpack.c.l.s4 1966171168
    %v4882 = vunpack.c.0.s8 %v4881
    %v4883 = vlaneseq
    %v4884 = vshrl.u32 %v4883, 7
    %v4885 = vsub.s32 %v4882, %v4884
    %v4886 = vrot.slane %v4876, %v4885
    %v4888 = vunpack.c.l.s4 1966171168
    %v4889 = vunpack.c.0.s8 %v4888
    %v4890 = vlaneseq
    %v4891 = vshrl.u32 %v4890, 7
    %v4892 = vsub.s32 %v4889, %v4891
    %v4893 = vrot.slane %v4877, %v4892
    %v4895 = vunpack.c.l.s4 1966171168
    %v4896 = vunpack.c.0.s8 %v4895
    %v4897 = vlaneseq
    %v4898 = vshrl.u32 %v4897, 7
    %v4899 = vsub.s32 %v4896, %v4898
    %v4900 = vrot.slane %v4878, %v4899
    %v4902 = vunpack.c.l.s4 1966171168
    %v4903 = vunpack.c.0.s8 %v4902
    %v4904 = vlaneseq
    %v4905 = vshrl.u32 %v4904, 7
    %v4906 = vsub.s32 %v4903, %v4905
    %v4907 = vrot.slane %v4879, %v4906
    %v4908 = vcombine.low %v4886, %v4893
    %v4909 = vcombine.low %v4900, %v4907
    %v4911 = vunpack.c.l.s4 1966171168
    %v4912 = vunpack.c.0.s8 %v4911
    %v4913 = vlaneseq
    %v4914 = vshrl.u32 %v4913, 7
    %v4915 = vsub.s32 %v4912, %v4914
    %v4916 = vrot.slane %v4908, %v4915
    %v4918 = vunpack.c.l.s4 1966171168
    %v4919 = vunpack.c.0.s8 %v4918
    %v4920 = vlaneseq
    %v4921 = vshrl.u32 %v4920, 7
    %v4922 = vsub.s32 %v4919, %v4921
    %v4923 = vrot.slane %v4909, %v4922
    %v4924 = vcombine.low %v4916, %v4923
    %v4925 = vcombine.low %v3380, %v3394
    %v4926 = vcombine.low %v3402, %v3404
    %v4927 = vcombine.low %v3387, %v3401
    %v4928 = vcombine.low %v3403, %v3405
    %v4930 = vunpack.c.l.s4 1966171168
    %v4931 = vunpack.c.0.s8 %v4930
    %v4932 = vlaneseq
    %v4933 = vshrl.u32 %v4932, 7
    %v4934 = vsub.s32 %v4931, %v4933
    %v4935 = vrot.slane %v4925, %v4934
    %v4937 = vunpack.c.l.s4 1966171168
    %v4938 = vunpack.c.0.s8 %v4937
    %v4939 = vlaneseq
    %v4940 = vshrl.u32 %v4939, 7
    %v4941 = vsub.s32 %v4938, %v4940
    %v4942 = vrot.slane %v4926, %v4941
    %v4944 = vunpack.c.l.s4 1966171168
    %v4945 = vunpack.c.0.s8 %v4944
    %v4946 = vlaneseq
    %v4947 = vshrl.u32 %v4946, 7
    %v4948 = vsub.s32 %v4945, %v4947
    %v4949 = vrot.slane %v4927, %v4948
    %v4951 = vunpack.c.l.s4 1966171168
    %v4952 = vunpack.c.0.s8 %v4951
    %v4953 = vlaneseq
    %v4954 = vshrl.u32 %v4953, 7
    %v4955 = vsub.s32 %v4952, %v4954
    %v4956 = vrot.slane %v4928, %v4955
    %v4957 = vcombine.low %v4935, %v4942
    %v4958 = vcombine.low %v4949, %v4956
    %v4960 = vunpack.c.l.s4 1966171168
    %v4961 = vunpack.c.0.s8 %v4960
    %v4962 = vlaneseq
    %v4963 = vshrl.u32 %v4962, 7
    %v4964 = vsub.s32 %v4961, %v4963
    %v4965 = vrot.slane %v4957, %v4964
    %v4967 = vunpack.c.l.s4 1966171168
    %v4968 = vunpack.c.0.s8 %v4967
    %v4969 = vlaneseq
    %v4970 = vshrl.u32 %v4969, 7
    %v4971 = vsub.s32 %v4968, %v4970
    %v4972 = vrot.slane %v4958, %v4971
    %v4973 = vcombine.low %v4965, %v4972
    %v4974 = vcombine.low %v3429, %v3443
    %v4975 = vcombine.low %v3451, %v3453
    %v4976 = vcombine.low %v3436, %v3450
    %v4977 = vcombine.low %v3452, %v3454
    %v4979 = vunpack.c.l.s4 1966171168
    %v4980 = vunpack.c.0.s8 %v4979
    %v4981 = vlaneseq
    %v4982 = vshrl.u32 %v4981, 7
    %v4983 = vsub.s32 %v4980, %v4982
    %v4984 = vrot.slane %v4974, %v4983
    %v4986 = vunpack.c.l.s4 1966171168
    %v4987 = vunpack.c.0.s8 %v4986
    %v4988 = vlaneseq
    %v4989 = vshrl.u32 %v4988, 7
    %v4990 = vsub.s32 %v4987, %v4989
    %v4991 = vrot.slane %v4975, %v4990
    %v4993 = vunpack.c.l.s4 1966171168
    %v4994 = vunpack.c.0.s8 %v4993
    %v4995 = vlaneseq
    %v4996 = vshrl.u32 %v4995, 7
    %v4997 = vsub.s32 %v4994, %v4996
    %v4998 = vrot.slane %v4976, %v4997
    %v5000 = vunpack.c.l.s4 1966171168
    %v5001 = vunpack.c.0.s8 %v5000
    %v5002 = vlaneseq
    %v5003 = vshrl.u32 %v5002, 7
    %v5004 = vsub.s32 %v5001, %v5003
    %v5005 = vrot.slane %v4977, %v5004
    %v5006 = vcombine.low %v4984, %v4991
    %v5007 = vcombine.low %v4998, %v5005
    %v5009 = vunpack.c.l.s4 1966171168
    %v5010 = vunpack.c.0.s8 %v5009
    %v5011 = vlaneseq
    %v5012 = vshrl.u32 %v5011, 7
    %v5013 = vsub.s32 %v5010, %v5012
    %v5014 = vrot.slane %v5006, %v5013
    %v5016 = vunpack.c.l.s4 1966171168
    %v5017 = vunpack.c.0.s8 %v5016
    %v5018 = vlaneseq
    %v5019 = vshrl.u32 %v5018, 7
    %v5020 = vsub.s32 %v5017, %v5019
    %v5021 = vrot.slane %v5007, %v5020
    %v5022 = vcombine.low %v5014, %v5021
    %v5023 = vcombine.low %v3478, %v3492
    %v5024 = vcombine.low %v3500, %v3502
    %v5025 = vcombine.low %v3485, %v3499
    %v5026 = vcombine.low %v3501, %v3503
    %v5028 = vunpack.c.l.s4 1966171168
    %v5029 = vunpack.c.0.s8 %v5028
    %v5030 = vlaneseq
    %v5031 = vshrl.u32 %v5030, 7
    %v5032 = vsub.s32 %v5029, %v5031
    %v5033 = vrot.slane %v5023, %v5032
    %v5035 = vunpack.c.l.s4 1966171168
    %v5036 = vunpack.c.0.s8 %v5035
    %v5037 = vlaneseq
    %v5038 = vshrl.u32 %v5037, 7
    %v5039 = vsub.s32 %v5036, %v5038
    %v5040 = vrot.slane %v5024, %v5039
    %v5042 = vunpack.c.l.s4 1966171168
    %v5043 = vunpack.c.0.s8 %v5042
    %v5044 = vlaneseq
    %v5045 = vshrl.u32 %v5044, 7
    %v5046 = vsub.s32 %v5043, %v5045
    %v5047 = vrot.slane %v5025, %v5046
    %v5049 = vunpack.c.l.s4 1966171168
    %v5050 = vunpack.c.0.s8 %v5049
    %v5051 = vlaneseq
    %v5052 = vshrl.u32 %v5051, 7
    %v5053 = vsub.s32 %v5050, %v5052
    %v5054 = vrot.slane %v5026, %v5053
    %v5055 = vcombine.low %v5033, %v5040
    %v5056 = vcombine.low %v5047, %v5054
    %v5058 = vunpack.c.l.s4 1966171168
    %v5059 = vunpack.c.0.s8 %v5058
    %v5060 = vlaneseq
    %v5061 = vshrl.u32 %v5060, 7
    %v5062 = vsub.s32 %v5059, %v5061
    %v5063 = vrot.slane %v5055, %v5062
    %v5065 = vunpack.c.l.s4 1966171168
    %v5066 = vunpack.c.0.s8 %v5065
    %v5067 = vlaneseq
    %v5068 = vshrl.u32 %v5067, 7
    %v5069 = vsub.s32 %v5066, %v5068
    %v5070 = vrot.slane %v5056, %v5069
    %v5071 = vcombine.low %v5063, %v5070
    %v5072 = vcombine.low %v3527, %v3541
    %v5073 = vcombine.low %v3549, %v3551
    %v5074 = vcombine.low %v3534, %v3548
    %v5075 = vcombine.low %v3550, %v3552
    %v5077 = vunpack.c.l.s4 1966171168
    %v5078 = vunpack.c.0.s8 %v5077
    %v5079 = vlaneseq
    %v5080 = vshrl.u32 %v5079, 7
    %v5081 = vsub.s32 %v5078, %v5080
    %v5082 = vrot.slane %v5072, %v5081
    %v5084 = vunpack.c.l.s4 1966171168
    %v5085 = vunpack.c.0.s8 %v5084
    %v5086 = vlaneseq
    %v5087 = vshrl.u32 %v5086, 7
    %v5088 = vsub.s32 %v5085, %v5087
    %v5089 = vrot.slane %v5073, %v5088
    %v5091 = vunpack.c.l.s4 1966171168
    %v5092 = vunpack.c.0.s8 %v5091
    %v5093 = vlaneseq
    %v5094 = vshrl.u32 %v5093, 7
    %v5095 = vsub.s32 %v5092, %v5094
    %v5096 = vrot.slane %v5074, %v5095
    %v5098 = vunpack.c.l.s4 1966171168
    %v5099 = vunpack.c.0.s8 %v5098
    %v5100 = vlaneseq
    %v5101 = vshrl.u32 %v5100, 7
    %v5102 = vsub.s32 %v5099, %v5101
    %v5103 = vrot.slane %v5075, %v5102
    %v5104 = vcombine.low %v5082, %v5089
    %v5105 = vcombine.low %v5096, %v5103
    %v5107 = vunpack.c.l.s4 1966171168
    %v5108 = vunpack.c.0.s8 %v5107
    %v5109 = vlaneseq
    %v5110 = vshrl.u32 %v5109, 7
    %v5111 = vsub.s32 %v5108, %v5110
    %v5112 = vrot.slane %v5104, %v5111
    %v5114 = vunpack.c.l.s4 1966171168
    %v5115 = vunpack.c.0.s8 %v5114
    %v5116 = vlaneseq
    %v5117 = vshrl.u32 %v5116, 7
    %v5118 = vsub.s32 %v5115, %v5117
    %v5119 = vrot.slane %v5105, %v5118
    %v5120 = vcombine.low %v5112, %v5119
    %v5121 = vcombine.low %v3576, %v3590
    %v5122 = vcombine.low %v3598, %v3600
    %v5123 = vcombine.low %v3583, %v3597
    %v5124 = vcombine.low %v3599, %v3601
    %v5126 = vunpack.c.l.s4 1966171168
    %v5127 = vunpack.c.0.s8 %v5126
    %v5128 = vlaneseq
    %v5129 = vshrl.u32 %v5128, 7
    %v5130 = vsub.s32 %v5127, %v5129
    %v5131 = vrot.slane %v5121, %v5130
    %v5133 = vunpack.c.l.s4 1966171168
    %v5134 = vunpack.c.0.s8 %v5133
    %v5135 = vlaneseq
    %v5136 = vshrl.u32 %v5135, 7
    %v5137 = vsub.s32 %v5134, %v5136
    %v5138 = vrot.slane %v5122, %v5137
    %v5140 = vunpack.c.l.s4 1966171168
    %v5141 = vunpack.c.0.s8 %v5140
    %v5142 = vlaneseq
    %v5143 = vshrl.u32 %v5142, 7
    %v5144 = vsub.s32 %v5141, %v5143
    %v5145 = vrot.slane %v5123, %v5144
    %v5147 = vunpack.c.l.s4 1966171168
    %v5148 = vunpack.c.0.s8 %v5147
    %v5149 = vlaneseq
    %v5150 = vshrl.u32 %v5149, 7
    %v5151 = vsub.s32 %v5148, %v5150
    %v5152 = vrot.slane %v5124, %v5151
    %v5153 = vcombine.low %v5131, %v5138
    %v5154 = vcombine.low %v5145, %v5152
    %v5156 = vunpack.c.l.s4 1966171168
    %v5157 = vunpack.c.0.s8 %v5156
    %v5158 = vlaneseq
    %v5159 = vshrl.u32 %v5158, 7
    %v5160 = vsub.s32 %v5157, %v5159
    %v5161 = vrot.slane %v5153, %v5160
    %v5163 = vunpack.c.l.s4 1966171168
    %v5164 = vunpack.c.0.s8 %v5163
    %v5165 = vlaneseq
    %v5166 = vshrl.u32 %v5165, 7
    %v5167 = vsub.s32 %v5164, %v5166
    %v5168 = vrot.slane %v5154, %v5167
    %v5169 = vcombine.low %v5161, %v5168
    %v5170 = vcombine.low %v3625, %v3639
    %v5171 = vcombine.low %v3647, %v3649
    %v5172 = vcombine.low %v3632, %v3646
    %v5173 = vcombine.low %v3648, %v3650
    %v5175 = vunpack.c.l.s4 1966171168
    %v5176 = vunpack.c.0.s8 %v5175
    %v5177 = vlaneseq
    %v5178 = vshrl.u32 %v5177, 7
    %v5179 = vsub.s32 %v5176, %v5178
    %v5180 = vrot.slane %v5170, %v5179
    %v5182 = vunpack.c.l.s4 1966171168
    %v5183 = vunpack.c.0.s8 %v5182
    %v5184 = vlaneseq
    %v5185 = vshrl.u32 %v5184, 7
    %v5186 = vsub.s32 %v5183, %v5185
    %v5187 = vrot.slane %v5171, %v5186
    %v5189 = vunpack.c.l.s4 1966171168
    %v5190 = vunpack.c.0.s8 %v5189
    %v5191 = vlaneseq
    %v5192 = vshrl.u32 %v5191, 7
    %v5193 = vsub.s32 %v5190, %v5192
    %v5194 = vrot.slane %v5172, %v5193
    %v5196 = vunpack.c.l.s4 1966171168
    %v5197 = vunpack.c.0.s8 %v5196
    %v5198 = vlaneseq
    %v5199 = vshrl.u32 %v5198, 7
    %v5200 = vsub.s32 %v5197, %v5199
    %v5201 = vrot.slane %v5173, %v5200
    %v5202 = vcombine.low %v5180, %v5187
    %v5203 = vcombine.low %v5194, %v5201
    %v5205 = vunpack.c.l.s4 1966171168
    %v5206 = vunpack.c.0.s8 %v5205
    %v5207 = vlaneseq
    %v5208 = vshrl.u32 %v5207, 7
    %v5209 = vsub.s32 %v5206, %v5208
    %v5210 = vrot.slane %v5202, %v5209
    %v5212 = vunpack.c.l.s4 1966171168
    %v5213 = vunpack.c.0.s8 %v5212
    %v5214 = vlaneseq
    %v5215 = vshrl.u32 %v5214, 7
    %v5216 = vsub.s32 %v5213, %v5215
    %v5217 = vrot.slane %v5203, %v5216
    %v5218 = vcombine.low %v5210, %v5217
    %5219 = vset.pattern.permute.xlu0 0
    %5220 = vperm.xlu0 %5219, %v3699
    %v5221 = vpop.permute.xlu0 %5220
    %5222 = vset.pattern.permute.xlu0 0
    %5223 = vperm.xlu0 %5222, %v3748
    %v5224 = vpop.permute.xlu0 %5223
    %5225 = vset.pattern.permute.xlu0 0
    %5226 = vperm.xlu0 %5225, %v3797
    %v5227 = vpop.permute.xlu0 %5226
    %5228 = vset.pattern.permute.xlu0 0
    %5229 = vperm.xlu0 %5228, %v3846
    %v5230 = vpop.permute.xlu0 %5229
    %5231 = vset.pattern.permute.xlu0 0
    %5232 = vperm.xlu0 %5231, %v3895
    %v5233 = vpop.permute.xlu0 %5232
    %5234 = vset.pattern.permute.xlu0 0
    %5235 = vperm.xlu0 %5234, %v3944
    %v5236 = vpop.permute.xlu0 %5235
    %5237 = vset.pattern.permute.xlu0 0
    %5238 = vperm.xlu0 %5237, %v3993
    %v5239 = vpop.permute.xlu0 %5238
    %5240 = vset.pattern.permute.xlu0 0
    %5241 = vperm.xlu0 %5240, %v4042
    %v5242 = vpop.permute.xlu0 %5241
    %5243 = vset.pattern.permute.xlu0 0
    %5244 = vperm.xlu0 %5243, %v4091
    %v5245 = vpop.permute.xlu0 %5244
    %5246 = vset.pattern.permute.xlu0 0
    %5247 = vperm.xlu0 %5246, %v4140
    %v5248 = vpop.permute.xlu0 %5247
    %5249 = vset.pattern.permute.xlu0 0
    %5250 = vperm.xlu0 %5249, %v4189
    %v5251 = vpop.permute.xlu0 %5250
    %5252 = vset.pattern.permute.xlu0 0
    %5253 = vperm.xlu0 %5252, %v4238
    %v5254 = vpop.permute.xlu0 %5253
    %5255 = vset.pattern.permute.xlu0 0
    %5256 = vperm.xlu0 %5255, %v4287
    %v5257 = vpop.permute.xlu0 %5256
    %5258 = vset.pattern.permute.xlu0 0
    %5259 = vperm.xlu0 %5258, %v4336
    %v5260 = vpop.permute.xlu0 %5259
    %5261 = vset.pattern.permute.xlu0 0
    %5262 = vperm.xlu0 %5261, %v4385
    %v5263 = vpop.permute.xlu0 %5262
    %5264 = vset.pattern.permute.xlu0 0
    %5265 = vperm.xlu0 %5264, %v4434
    %v5266 = vpop.permute.xlu0 %5265
    %5267 = vset.pattern.permute.xlu0 0
    %5268 = vperm.xlu0 %5267, %v4483
    %v5269 = vpop.permute.xlu0 %5268
    %5270 = vset.pattern.permute.xlu0 0
    %5271 = vperm.xlu0 %5270, %v4532
    %v5272 = vpop.permute.xlu0 %5271
    %5273 = vset.pattern.permute.xlu0 0
    %5274 = vperm.xlu0 %5273, %v4581
    %v5275 = vpop.permute.xlu0 %5274
    %5276 = vset.pattern.permute.xlu0 0
    %5277 = vperm.xlu0 %5276, %v4630
    %v5278 = vpop.permute.xlu0 %5277
    %5279 = vset.pattern.permute.xlu0 0
    %5280 = vperm.xlu0 %5279, %v4679
    %v5281 = vpop.permute.xlu0 %5280
    %5282 = vset.pattern.permute.xlu0 0
    %5283 = vperm.xlu0 %5282, %v4728
    %v5284 = vpop.permute.xlu0 %5283
    %5285 = vset.pattern.permute.xlu0 0
    %5286 = vperm.xlu0 %5285, %v4777
    %v5287 = vpop.permute.xlu0 %5286
    %5288 = vset.pattern.permute.xlu0 0
    %5289 = vperm.xlu0 %5288, %v4826
    %v5290 = vpop.permute.xlu0 %5289
    %5291 = vset.pattern.permute.xlu0 0
    %5292 = vperm.xlu0 %5291, %v4875
    %v5293 = vpop.permute.xlu0 %5292
    %5294 = vset.pattern.permute.xlu0 0
    %5295 = vperm.xlu0 %5294, %v4924
    %v5296 = vpop.permute.xlu0 %5295
    %5297 = vset.pattern.permute.xlu0 0
    %5298 = vperm.xlu0 %5297, %v4973
    %v5299 = vpop.permute.xlu0 %5298
    %5300 = vset.pattern.permute.xlu0 0
    %5301 = vperm.xlu0 %5300, %v5022
    %v5302 = vpop.permute.xlu0 %5301
    %5303 = vset.pattern.permute.xlu0 0
    %5304 = vperm.xlu0 %5303, %v5071
    %v5305 = vpop.permute.xlu0 %5304
    %5306 = vset.pattern.permute.xlu0 0
    %5307 = vperm.xlu0 %5306, %v5120
    %v5308 = vpop.permute.xlu0 %5307
    %5309 = vset.pattern.permute.xlu0 0
    %5310 = vperm.xlu0 %5309, %v5169
    %v5311 = vpop.permute.xlu0 %5310
    %5312 = vset.pattern.permute.xlu0 0
    %5313 = vperm.xlu0 %5312, %v5218
    %v5314 = vpop.permute.xlu0 %5313
    %v5315 = vlaneseq
    %v5316 = vand.u32 %v5315, 127
    %v5317 = vlaneseq
    %v5318 = vshrl.u32 %v5317, 7
    %v5319 = vsub.s32 %v5316, %v5318
    %v5320 = vrot.slane %v5221, %v5319
    %v5321 = vadd.s32 %v5316, 4294967288
    %v5322 = vlaneseq
    %v5323 = vshrl.u32 %v5322, 7
    %v5324 = vsub.s32 %v5321, %v5323
    %v5325 = vrot.slane %v5224, %v5324
    %vm5326 = vcmask 130112
    %v5327 = vsel %vm5326, %v5325, %v5320
    %v5328 = vadd.s32 %v5316, 4294967280
    %v5329 = vlaneseq
    %v5330 = vshrl.u32 %v5329, 7
    %v5331 = vsub.s32 %v5328, %v5330
    %v5332 = vrot.slane %v5227, %v5331
    %vm5333 = vcmask 195712
    %v5334 = vsel %vm5333, %v5332, %v5327
    %v5335 = vadd.s32 %v5316, 4294967272
    %v5336 = vlaneseq
    %v5337 = vshrl.u32 %v5336, 7
    %v5338 = vsub.s32 %v5335, %v5337
    %v5339 = vrot.slane %v5230, %v5338
    %vm5340 = vcmask 261312
    %v5341 = vsel %vm5340, %v5339, %v5334
    %v5342 = vadd.s32 %v5316, 4294967264
    %v5343 = vlaneseq
    %v5344 = vshrl.u32 %v5343, 7
    %v5345 = vsub.s32 %v5342, %v5344
    %v5346 = vrot.slane %v5233, %v5345
    %vm5347 = vcmask 326912
    %v5348 = vsel %vm5347, %v5346, %v5341
    %v5349 = vadd.s32 %v5316, 4294967256
    %v5350 = vlaneseq
    %v5351 = vshrl.u32 %v5350, 7
    %v5352 = vsub.s32 %v5349, %v5351
    %v5353 = vrot.slane %v5236, %v5352
    %vm5354 = vcmask 392512
    %v5355 = vsel %vm5354, %v5353, %v5348
    %v5356 = vadd.s32 %v5316, 4294967248
    %v5357 = vlaneseq
    %v5358 = vshrl.u32 %v5357, 7
    %v5359 = vsub.s32 %v5356, %v5358
    %v5360 = vrot.slane %v5239, %v5359
    %vm5361 = vcmask 458112
    %v5362 = vsel %vm5361, %v5360, %v5355
    %v5363 = vadd.s32 %v5316, 4294967240
    %v5364 = vlaneseq
    %v5365 = vshrl.u32 %v5364, 7
    %v5366 = vsub.s32 %v5363, %v5365
    %v5367 = vrot.slane %v5242, %v5366
    %vm5368 = vcmask 523712
    %v5369 = vsel %vm5368, %v5367, %v5362
    %v5370 = vadd.s32 %v5316, 4294967232
    %v5371 = vlaneseq
    %v5372 = vshrl.u32 %v5371, 7
    %v5373 = vsub.s32 %v5370, %v5372
    %v5374 = vrot.slane %v5245, %v5373
    %vm5375 = vcmask 589312
    %v5376 = vsel %vm5375, %v5374, %v5369
    %v5377 = vadd.s32 %v5316, 4294967224
    %v5378 = vlaneseq
    %v5379 = vshrl.u32 %v5378, 7
    %v5380 = vsub.s32 %v5377, %v5379
    %v5381 = vrot.slane %v5248, %v5380
    %vm5382 = vcmask 654912
    %v5383 = vsel %vm5382, %v5381, %v5376
    %v5384 = vadd.s32 %v5316, 4294967216
    %v5385 = vlaneseq
    %v5386 = vshrl.u32 %v5385, 7
    %v5387 = vsub.s32 %v5384, %v5386
    %v5388 = vrot.slane %v5251, %v5387
    %vm5389 = vcmask 720512
    %v5390 = vsel %vm5389, %v5388, %v5383
    %v5391 = vadd.s32 %v5316, 4294967208
    %v5392 = vlaneseq
    %v5393 = vshrl.u32 %v5392, 7
    %v5394 = vsub.s32 %v5391, %v5393
    %v5395 = vrot.slane %v5254, %v5394
    %vm5396 = vcmask 786112
    %v5397 = vsel %vm5396, %v5395, %v5390
    %v5398 = vadd.s32 %v5316, 4294967200
    %v5399 = vlaneseq
    %v5400 = vshrl.u32 %v5399, 7
    %v5401 = vsub.s32 %v5398, %v5400
    %v5402 = vrot.slane %v5257, %v5401
    %vm5403 = vcmask 851712
    %v5404 = vsel %vm5403, %v5402, %v5397
    %v5405 = vadd.s32 %v5316, 4294967192
    %v5406 = vlaneseq
    %v5407 = vshrl.u32 %v5406, 7
    %v5408 = vsub.s32 %v5405, %v5407
    %v5409 = vrot.slane %v5260, %v5408
    %vm5410 = vcmask 917312
    %v5411 = vsel %vm5410, %v5409, %v5404
    %v5412 = vadd.s32 %v5316, 4294967184
    %v5413 = vlaneseq
    %v5414 = vshrl.u32 %v5413, 7
    %v5415 = vsub.s32 %v5412, %v5414
    %v5416 = vrot.slane %v5263, %v5415
    %vm5417 = vcmask 982912
    %v5418 = vsel %vm5417, %v5416, %v5411
    %v5419 = vadd.s32 %v5316, 4294967176
    %v5420 = vlaneseq
    %v5421 = vshrl.u32 %v5420, 7
    %v5422 = vsub.s32 %v5419, %v5421
    %v5423 = vrot.slane %v5266, %v5422
    %vm5424 = vcmask 1048512
    %v5425 = vsel %vm5424, %v5423, %v5418
    %v5426 = vlaneseq
    %v5427 = vshrl.u32 %v5426, 7
    %v5428 = vsub.s32 %v5316, %v5427
    %v5429 = vrot.slane %v5269, %v5428
    %v5430 = vlaneseq
    %v5431 = vshrl.u32 %v5430, 7
    %v5432 = vsub.s32 %v5321, %v5431
    %v5433 = vrot.slane %v5272, %v5432
    %v5434 = vsel %vm5326, %v5433, %v5429
    %v5435 = vlaneseq
    %v5436 = vshrl.u32 %v5435, 7
    %v5437 = vsub.s32 %v5328, %v5436
    %v5438 = vrot.slane %v5275, %v5437
    %v5439 = vsel %vm5333, %v5438, %v5434
    %v5440 = vlaneseq
    %v5441 = vshrl.u32 %v5440, 7
    %v5442 = vsub.s32 %v5335, %v5441
    %v5443 = vrot.slane %v5278, %v5442
    %v5444 = vsel %vm5340, %v5443, %v5439
    %v5445 = vlaneseq
    %v5446 = vshrl.u32 %v5445, 7
    %v5447 = vsub.s32 %v5342, %v5446
    %v5448 = vrot.slane %v5281, %v5447
    %v5449 = vsel %vm5347, %v5448, %v5444
    %v5450 = vlaneseq
    %v5451 = vshrl.u32 %v5450, 7
    %v5452 = vsub.s32 %v5349, %v5451
    %v5453 = vrot.slane %v5284, %v5452
    %v5454 = vsel %vm5354, %v5453, %v5449
    %v5455 = vlaneseq
    %v5456 = vshrl.u32 %v5455, 7
    %v5457 = vsub.s32 %v5356, %v5456
    %v5458 = vrot.slane %v5287, %v5457
    %v5459 = vsel %vm5361, %v5458, %v5454
    %v5460 = vlaneseq
    %v5461 = vshrl.u32 %v5460, 7
    %v5462 = vsub.s32 %v5363, %v5461
    %v5463 = vrot.slane %v5290, %v5462
    %v5464 = vsel %vm5368, %v5463, %v5459
    %v5465 = vlaneseq
    %v5466 = vshrl.u32 %v5465, 7
    %v5467 = vsub.s32 %v5370, %v5466
    %v5468 = vrot.slane %v5293, %v5467
    %v5469 = vsel %vm5375, %v5468, %v5464
    %v5470 = vlaneseq
    %v5471 = vshrl.u32 %v5470, 7
    %v5472 = vsub.s32 %v5377, %v5471
    %v5473 = vrot.slane %v5296, %v5472
    %v5474 = vsel %vm5382, %v5473, %v5469
    %v5475 = vlaneseq
    %v5476 = vshrl.u32 %v5475, 7
    %v5477 = vsub.s32 %v5384, %v5476
    %v5478 = vrot.slane %v5299, %v5477
    %v5479 = vsel %vm5389, %v5478, %v5474
    %v5480 = vlaneseq
    %v5481 = vshrl.u32 %v5480, 7
    %v5482 = vsub.s32 %v5391, %v5481
    %v5483 = vrot.slane %v5302, %v5482
    %v5484 = vsel %vm5396, %v5483, %v5479
    %v5485 = vlaneseq
    %v5486 = vshrl.u32 %v5485, 7
    %v5487 = vsub.s32 %v5398, %v5486
    %v5488 = vrot.slane %v5305, %v5487
    %v5489 = vsel %vm5403, %v5488, %v5484
    %v5490 = vlaneseq
    %v5491 = vshrl.u32 %v5490, 7
    %v5492 = vsub.s32 %v5405, %v5491
    %v5493 = vrot.slane %v5308, %v5492
    %v5494 = vsel %vm5410, %v5493, %v5489
    %v5495 = vlaneseq
    %v5496 = vshrl.u32 %v5495, 7
    %v5497 = vsub.s32 %v5412, %v5496
    %v5498 = vrot.slane %v5311, %v5497
    %v5499 = vsel %vm5417, %v5498, %v5494
    %v5500 = vlaneseq
    %v5501 = vshrl.u32 %v5500, 7
    %v5502 = vsub.s32 %v5419, %v5501
    %v5503 = vrot.slane %v5314, %v5502
    %v5504 = vsel %vm5424, %v5503, %v5499
    %v5505 = vcombine.low %v5425, %v5504
    %v5507 = vunpack.c.l.s4 1966171168
    %v5508 = vunpack.c.0.s8 %v5507
    %v5509 = vlaneseq
    %v5510 = vshrl.u32 %v5509, 7
    %v5511 = vsub.s32 %v5508, %v5510
    %v5512 = vrot.slane %v5505, %v5511
    %v5514 = vunpack.c.l.s4 1966171168
    %v5515 = vunpack.c.0.s8 %v5514
    %v5516 = vlaneseq
    %v5517 = vshrl.u32 %v5516, 7
    %v5518 = vsub.s32 %v5515, %v5517
    %v5519 = vrot.slane %v5512, %v5518
    %v5521 = vlaneseq
    %vm5522 = vcmp.ge.s32.totalorder %v5521, 0
    %vm5523 = vcmp.lt.s32.totalorder %v5521, 256
    %vm5524 = vmand %vm5522, %vm5523
    %5525 = vst.msk [vmem:[#allocation2] sm:$0x3] %vm5524, %v5519
    // Predicated region
    $region18: #{tpu_custom_call.1} parent=1 // pred_check
      _
    $region19: #{tpu_custom_call.1} parent=1 // pred_check_branch
      %5527 = sbr.rel (0) target = $region21
    $region20: #{tpu_custom_call.1} parent=1 // pred_region
      %s5529 = ssub.s32 32, 32
      %5530 = vsyncadd [#allocation3], %s5529
      %s5532 = sshll.u32 [#allocation2], 4
      %s5533 = int_to_ptr.vmem [resolvable:$true] %s5532
      %5535 = dma.vmem_to_hbm [thread:$0]  %s5533, 32, %s4, [#allocation3]
    $region21: #{tpu_custom_call.1} parent=1 // pred_fallthru
      _
    // Predicated region
    $region22: #{tpu_custom_call.1} parent=1 // pred_check
      _
    $region23: #{tpu_custom_call.1} parent=1 // pred_check_branch
      %5537 = sbr.rel (0) target = $region25
    $region24: #{tpu_custom_call.1} parent=1 // pred_region
      %5538 = dma.done [#allocation3], 32
    $region25: #{tpu_custom_call.1} parent=1 // pred_fallthru
      _
    %5539 = vsyncpa [#allocation3], 1

</llo_original>
